<compile_context>
chip_gen: v7x
topology: tpu7x:2x2x1
jax: 0.10.0
libtpu: 0.0.40
codegen_flags: <defaults>
</compile_context>

<pallas_src>
import functools
import numpy as np
import jax
import jax.numpy as jnp
from jax.experimental import pallas as pl
from jax.experimental.pallas import tpu as pltpu

LANE = 128
_VMEM_LIMIT = 32 * 1024 * 1024      # explicit scoped-VMEM limit, safe on v5e/v6e/v7x
_VMEM_BUDGET = 20 * 1024 * 1024     # tile-sizing budget (double-buffered blocks)


def _round_up(x, m):
    return (x + m - 1) // m * m


def _choose_tile_rows(m, k, n, out_bytes):
    """Largest row tile (multiple of 8, <=512) whose double-buffered blocks fit."""
    fixed = 2 * k * n * 2 + 4 * n * 4 + 1024          # bf16 weight (x2 bufs) + biases
    tm = 512
    while tm > 8 and fixed + 2 * tm * (k * 2 + n * out_bytes) > _VMEM_BUDGET:
        tm //= 2
    if m <= tm:
        return max(_round_up(m, 8), 8)                # single full-M tile
    return tm


# ----------------------------------------------------------------------------
# Pallas kernel 1: M-tiled fused (scale * (x @ w) + b) with optional ReLU.
#   x, w : bf16 (MXU), accumulation + epilogue in f32, scale is an SMEM scalar.
# ----------------------------------------------------------------------------
def _matmul_bias_act_kernel(x_ref, w_ref, b_ref, s_ref, o_ref, *, relu):
    acc = jnp.dot(x_ref[...], w_ref[...], preferred_element_type=jnp.float32)
    acc = acc * s_ref[0] + b_ref[...]
    if relu:
        acc = jnp.maximum(acc, 0.0)
    o_ref[...] = acc.astype(o_ref.dtype)


def pallas_matmul_bias_act(x, w, b, *, relu, scale=None, out_dtype=jnp.bfloat16):
    """(M, K) @ (K, N) * scale + b (+ReLU).  N must be a multiple of 128."""
    m, k = x.shape
    kw_, n = w.shape
    assert k == kw_ and n % LANE == 0, (x.shape, w.shape)
    out_bytes = jnp.dtype(out_dtype).itemsize
    tm = _choose_tile_rows(m, k, n, out_bytes)
    m_pad = _round_up(m, tm)
    if m_pad != m:
        x = jnp.pad(x, ((0, m_pad - m), (0, 0)))
    s = jnp.reshape(jnp.asarray(1.0 if scale is None else scale, jnp.float32), (1,))

    out = pl.pallas_call(
        functools.partial(_matmul_bias_act_kernel, relu=relu),
        out_shape=jax.ShapeDtypeStruct((m_pad, n), out_dtype),
        grid=(m_pad // tm,),
        in_specs=[
            pl.BlockSpec((tm, k), lambda i: (i, 0)),
            pl.BlockSpec((k, n), lambda i: (0, 0)),
            pl.BlockSpec((1, n), lambda i: (0, 0)),
            pl.BlockSpec(memory_space=pltpu.MemorySpace.SMEM),
        ],
        out_specs=pl.BlockSpec((tm, n), lambda i: (i, 0)),
        compiler_params=pltpu.CompilerParams(
            dimension_semantics=("parallel",),
            vmem_limit_bytes=_VMEM_LIMIT),
    )(x.astype(jnp.bfloat16), w.astype(jnp.bfloat16),
      b.reshape(1, n).astype(jnp.float32), s)
    return out[:m] if m_pad != m else out


# ----------------------------------------------------------------------------
# Pallas kernel 2: fused FC head  relu(x @ w1 + b1) @ w2 + b2
#   Hidden activations stay in VMEM; batch-tiled "parallel" grid.
# ----------------------------------------------------------------------------
def _fc_head_kernel(x_ref, w1_ref, b1_ref, w2_ref, b2_ref, o_ref):
    h = jnp.dot(x_ref[...], w1_ref[...], preferred_element_type=jnp.float32)
    h = jnp.maximum(h + b1_ref[...], 0.0).astype(jnp.bfloat16)
    acc = jnp.dot(h, w2_ref[...], preferred_element_type=jnp.float32)
    o_ref[...] = (acc + b2_ref[...]).astype(o_ref.dtype)


def pallas_fc_head(x, w1, b1, w2, b2):
    bsz, k1 = x.shape
    k1w, n1 = w1.shape
    n1w, n2 = w2.shape
    assert k1 == k1w and n1 == n1w
    tb = 256 if bsz > 256 else max(_round_up(bsz, 8), 8)
    b_pad = _round_up(bsz, tb)
    if b_pad != bsz:
        x = jnp.pad(x, ((0, b_pad - bsz), (0, 0)))
    out = pl.pallas_call(
        _fc_head_kernel,
        out_shape=jax.ShapeDtypeStruct((b_pad, n2), jnp.float32),
        grid=(b_pad // tb,),
        in_specs=[
            pl.BlockSpec((tb, k1), lambda i: (i, 0)),
            pl.BlockSpec((k1, n1), lambda i: (0, 0)),
            pl.BlockSpec((1, n1), lambda i: (0, 0)),
            pl.BlockSpec((n1, n2), lambda i: (0, 0)),
            pl.BlockSpec((1, n2), lambda i: (0, 0)),
        ],
        out_specs=pl.BlockSpec((tb, n2), lambda i: (i, 0)),
        compiler_params=pltpu.CompilerParams(
            dimension_semantics=("parallel",),
            vmem_limit_bytes=_VMEM_LIMIT),
    )(x.astype(jnp.bfloat16), w1.astype(jnp.bfloat16),
      b1.reshape(1, n1).astype(jnp.float32), w2.astype(jnp.bfloat16),
      b2.reshape(1, n2).astype(jnp.float32))
    return out[:bsz]


# ----------------------------------------------------------------------------
# Glue: NHWC im2col (no transposes; channels stay on the lane axis).
# Feature order is (kh, kw, c), matching the packed weights below.
# ----------------------------------------------------------------------------
def im2col_nhwc(x, kh, kw, stride):
    b, h, w, c = x.shape
    oh = (h - kh) // stride + 1
    ow = (w - kw) // stride + 1
    cols = []
    for i in range(kh):
        for j in range(kw):
            cols.append(x[:, i:i + stride * oh:stride, j:j + stride * ow:stride, :])
    p = jnp.concatenate(cols, axis=-1)                # (B, OH, OW, kh*kw*C)
    return p.reshape(b * oh * ow, kh * kw * c), oh, ow


# ----------------------------------------------------------------------------
# Parameter init (orthogonal, gain sqrt(2), zero bias — mirrors the module) and
# one-time packing into MXU-ready (K, N_pad) bf16 matrices.
# ----------------------------------------------------------------------------
def orthogonal_init(key, shape, gain):
    rows = shape[0]
    cols = int(np.prod(shape[1:]))
    big, small = max(rows, cols), min(rows, cols)
    a = jax.random.normal(key, (big, small), dtype=jnp.float32)
    q, r = jnp.linalg.qr(a)
    q = q * jnp.sign(jnp.diag(r))
    if rows < cols:
        q = q.T
    return (gain * q[:rows, :cols]).reshape(shape).astype(jnp.float32)


def init_nature_cnn_params(key, input_shape, output_dim):
    c, h, w = input_shape
    h1, w1 = (h - 8) // 4 + 1, (w - 8) // 4 + 1
    h2, w2 = (h1 - 4) // 2 + 1, (w1 - 4) // 2 + 1
    h3, w3 = (h2 - 3) // 1 + 1, (w2 - 3) // 1 + 1
    conv_out = 64 * h3 * w3
    gain = float(np.sqrt(2.0))                        # calculate_gain('relu')
    ks = jax.random.split(key, 5)
    params = {
        "conv1_w": orthogonal_init(ks[0], (32, c, 8, 8), gain),
        "conv1_b": jnp.zeros((32,), jnp.float32),
        "conv2_w": orthogonal_init(ks[1], (64, 32, 4, 4), gain),
        "conv2_b": jnp.zeros((64,), jnp.float32),
        "conv3_w": orthogonal_init(ks[2], (64, 64, 3, 3), gain),
        "conv3_b": jnp.zeros((64,), jnp.float32),
        "fc1_w": orthogonal_init(ks[3], (512, conv_out), gain),
        "fc1_b": jnp.zeros((512,), jnp.float32),
        "fc2_w": orthogonal_init(ks[4], (output_dim, 512), gain),
        "fc2_b": jnp.zeros((output_dim,), jnp.float32),
    }
    return params, {"h3": h3, "w3": w3, "conv_out": conv_out}


def _pack_conv(w, b, c_in_pad, c_out_pad):
    o, i, kh, kw = w.shape
    wt = jnp.transpose(w, (2, 3, 1, 0))               # OIHW -> (KH, KW, I, O)
    wt = jnp.pad(wt, ((0, 0), (0, 0), (0, c_in_pad - i), (0, c_out_pad - o)))
    w_mat = wt.reshape(kh * kw * c_in_pad, c_out_pad).astype(jnp.bfloat16)
    b_pad = jnp.pad(b, (0, c_out_pad - o)).astype(jnp.float32)
    return w_mat, b_pad


def pack_nature_cnn_params(params, input_shape, output_dim, dims):
    c = input_shape[0]
    h3, w3 = dims["h3"], dims["w3"]
    n2 = _round_up(output_dim, LANE)
    c1w, c1b = _pack_conv(params["conv1_w"], params["conv1_b"], c, LANE)
    c2w, c2b = _pack_conv(params["conv2_w"], params["conv2_b"], LANE, LANE)
    c3w, c3b = _pack_conv(params["conv3_w"], params["conv3_b"], LANE, LANE)
    # fc1: torch flattens conv3 output as NCHW (c, h, w); our activations are
    # NHWC with channels padded to 128 -> permute / pad the columns once here.
    fc1 = params["fc1_w"].reshape(512, 64, h3, w3)
    fc1 = jnp.transpose(fc1, (2, 3, 1, 0))            # (h3, w3, 64, 512)
    fc1 = jnp.pad(fc1, ((0, 0), (0, 0), (0, LANE - 64), (0, 0)))
    fc1_w = fc1.reshape(h3 * w3 * LANE, 512).astype(jnp.bfloat16)
    fc2_w = jnp.pad(params["fc2_w"].T,
                    ((0, 0), (0, n2 - output_dim))).astype(jnp.bfloat16)
    fc2_b = jnp.pad(params["fc2_b"], (0, n2 - output_dim)).astype(jnp.float32)
    return {
        "c1_w": c1w, "c1_b": c1b,
        "c2_w": c2w, "c2_b": c2b,
        "c3_w": c3w, "c3_b": c3b,
        "fc1_w": fc1_w, "fc1_b": params["fc1_b"].astype(jnp.float32),
        "fc2_w": fc2_w, "fc2_b": fc2_b,
    }


# ----------------------------------------------------------------------------
# Full forward pass (matches NatureCNN.forward semantics).
# ----------------------------------------------------------------------------
def nature_cnn_forward(packed, x, *, input_shape, output_dim):
    if x.ndim == 3:
        x = x[None]
    if x.shape[1:] != tuple(input_shape) and x.shape[2:4] == tuple(input_shape)[1:]:
        x = jnp.transpose(x, (0, 3, 1, 2))            # NHWC input -> NCHW (mirror torch)
    x = x.astype(jnp.float32)
    # `if x.max() > 1.0: x = x / 255` -> data-dependent scale fused into conv1.
    scale = jnp.where(jnp.max(x) > 1.0, 1.0 / 255.0, 1.0)
    x = jnp.transpose(x, (0, 2, 3, 1)).astype(jnp.bfloat16)   # internal NHWC
    b = x.shape[0]

    p, oh, ow = im2col_nhwc(x, 8, 8, 4)
    y = pallas_matmul_bias_act(p, packed["c1_w"], packed["c1_b"],
                               relu=True, scale=scale)
    y = y.reshape(b, oh, ow, LANE)

    p, oh, ow = im2col_nhwc(y, 4, 4, 2)
    y = pallas_matmul_bias_act(p, packed["c2_w"], packed["c2_b"], relu=True)
    y = y.reshape(b, oh, ow, LANE)

    p, oh, ow = im2col_nhwc(y, 3, 3, 1)
    y = pallas_matmul_bias_act(p, packed["c3_w"], packed["c3_b"], relu=True)

    flat = y.reshape(b, oh * ow * LANE)               # NHWC-padded flatten
    # TODO(synk): fold conv3 into the fused head as well for small-batch latency.
    out = pallas_fc_head(flat, packed["fc1_w"], packed["fc1_b"],
                         packed["fc2_w"], packed["fc2_b"])
    return out[:, :output_dim]


# ----------------------------------------------------------------------------
# Pure-JAX reference (same bf16 rounding points as the Pallas path).
# ----------------------------------------------------------------------------
def nature_cnn_reference(params, x):
    x = x.astype(jnp.float32)
    scale = jnp.where(jnp.max(x) > 1.0, 1.0 / 255.0, 1.0)

    def conv(h, w, b, s, scl):
        y = jax.lax.conv_general_dilated(
            h, w.astype(jnp.bfloat16), (s, s), "VALID",
            dimension_numbers=("NCHW", "OIHW", "NCHW"),
            preferred_element_type=jnp.float32)
        y = y * scl + b[None, :, None, None]
        return jax.nn.relu(y).astype(jnp.bfloat16)

    h = conv(x.astype(jnp.bfloat16), params["conv1_w"], params["conv1_b"], 4, scale)
    h = conv(h, params["conv2_w"], params["conv2_b"], 2, 1.0)
    h = conv(h, params["conv3_w"], params["conv3_b"], 1, 1.0)
    h = h.reshape(h.shape[0], -1)
    h1 = jnp.dot(h, params["fc1_w"].T.astype(jnp.bfloat16),
                 preferred_element_type=jnp.float32) + params["fc1_b"]
    h1 = jax.nn.relu(h1).astype(jnp.bfloat16)
    out = jnp.dot(h1, params["fc2_w"].T.astype(jnp.bfloat16),
                  preferred_element_type=jnp.float32) + params["fc2_b"]
    return out


if __name__ == "__main__":
    # 36x36 is the minimum spatial size that survives the 8/4 -> 4/2 -> 3/1 stack.
    input_shape = (4, 36, 36)     # (C, H, W)
    output_dim = 6
    batch = 2

    key = jax.random.PRNGKey(0)
    k_params, k_x = jax.random.split(key)
    params, dims = init_nature_cnn_params(k_params, input_shape, output_dim)
    packed = pack_nature_cnn_params(params, input_shape, output_dim, dims)

    # uint8-style pixel input (exercises the /255 branch)
    x = jax.random.uniform(k_x, (batch,) + input_shape, dtype=jnp.float32,
                           minval=0.0, maxval=255.0)

    fwd = jax.jit(functools.partial(nature_cnn_forward,
                                    input_shape=input_shape, output_dim=output_dim))
    out = jax.block_until_ready(fwd(packed, x))
    assert out.shape == (batch, output_dim), out.shape

    ref = jax.block_until_ready(nature_cnn_reference(params, x))
    if not jnp.allclose(out, ref, atol=1e-2, rtol=1e-2):
        raise AssertionError(
            f"Pallas output mismatch vs reference: max abs err = "
            f"{float(jnp.max(jnp.abs(out - ref)))}")

    print("KERNEL_OK")
</pallas_src>

<mosaic_0001>
module attributes {stable_mosaic.version = 11 : i64} {
  func.func @_matmul_bias_act_kernel(%arg0: i32, %arg1: memref<128x256xbf16, #tpu.memory_space<vmem>>, %arg2: memref<256x128xbf16, #tpu.memory_space<vmem>>, %arg3: memref<1x128xf32, #tpu.memory_space<vmem>>, %arg4: memref<1xf32, #tpu.memory_space<smem>>, %arg5: memref<128x128xbf16, #tpu.memory_space<vmem>>) attributes {dimension_semantics = [#tpu.dimension_semantics<parallel>], iteration_bounds = array<i64: 1>, scalar_prefetch = 0 : i64, scratch_operands = 0 : i64, tpu.core_type = #tpu.core_type<tc>, window_params = [{transform_indices = @transform_0, window_bounds = array<i64: 128, 256>}, {pipeline_mode = #tpu.pipeline_mode<synchronous>, transform_indices = @transform_1, window_bounds = array<i64: 256, 128>}, {pipeline_mode = #tpu.pipeline_mode<synchronous>, transform_indices = @transform_2, window_bounds = array<i64: 1, 128>}, {transform_indices = @transform_3, window_bounds = array<i64: 1>}, {transform_indices = @transform_4, window_bounds = array<i64: 128, 128>}]} {
    %c0 = arith.constant 0 : index
    %c0_0 = arith.constant 0 : index
    %0 = vector.load %arg1[%c0, %c0_0] : memref<128x256xbf16, #tpu.memory_space<vmem>>, vector<128x256xbf16>
    %c0_1 = arith.constant 0 : index
    %c0_2 = arith.constant 0 : index
    %1 = vector.load %arg2[%c0_1, %c0_2] : memref<256x128xbf16, #tpu.memory_space<vmem>>, vector<256x128xbf16>
    %cst = arith.constant dense<0.000000e+00> : vector<128x128xf32>
    %2 = tpu.matmul %0, %1, %cst {dimension_numbers = #tpu.dot_dimension_numbers<[1], [0], [0], [1], [0, 0, 1, 1], [], []>} : vector<128x256xbf16>, vector<256x128xbf16>, vector<128x128xf32> -> vector<128x128xf32>
    %c0_3 = arith.constant 0 : index
    %3 = memref.load %arg4[%c0_3] : memref<1xf32, #tpu.memory_space<smem>>
    %4 = vector.broadcast %3 : f32 to vector<128x128xf32>
    %5 = arith.mulf %2, %4 : vector<128x128xf32>
    %c0_4 = arith.constant 0 : index
    %c0_5 = arith.constant 0 : index
    %6 = vector.load %arg3[%c0_4, %c0_5] : memref<1x128xf32, #tpu.memory_space<vmem>>, vector<1x128xf32>
    %7 = vector.broadcast %6 : vector<1x128xf32> to vector<128x128xf32>
    %8 = arith.addf %5, %7 : vector<128x128xf32>
    %cst_6 = arith.constant 0.000000e+00 : f32
    %9 = vector.broadcast %cst_6 : f32 to vector<128x128xf32>
    %10 = arith.maximumf %8, %9 : vector<128x128xf32>
    %11 = arith.truncf %10 : vector<128x128xf32> to vector<128x128xbf16>
    %c0_7 = arith.constant 0 : index
    %c0_8 = arith.constant 0 : index
    %12 = vector.load %arg5[%c0_7, %c0_8] : memref<128x128xbf16, #tpu.memory_space<vmem>>, vector<128x128xbf16>
    tpu.vector_store %arg5[%c0_7, %c0_8], %11 {strides = array<i32>} : memref<128x128xbf16, #tpu.memory_space<vmem>>, vector<128x128xbf16>,
    return
  }
  func.func @transform_0(%arg0: i32) -> (i32, i32) {
    %c0_i32 = arith.constant 0 : i32
    %c0_i32_0 = arith.constant 0 : i32
    return %arg0, %c0_i32 : i32, i32
  }
  func.func @transform_1(%arg0: i32) -> (i32, i32) {
    %c0_i32 = arith.constant 0 : i32
    %c0_i32_0 = arith.constant 0 : i32
    %c0_i32_1 = arith.constant 0 : i32
    return %c0_i32, %c0_i32_0 : i32, i32
  }
  func.func @transform_2(%arg0: i32) -> (i32, i32) {
    %c0_i32 = arith.constant 0 : i32
    %c0_i32_0 = arith.constant 0 : i32
    %c0_i32_1 = arith.constant 0 : i32
    return %c0_i32, %c0_i32_0 : i32, i32
  }
  func.func @transform_3(%arg0: i32) -> i32 {
    %c0_i32 = arith.constant 0 : i32
    %c0_i32_0 = arith.constant 0 : i32
    return %c0_i32 : i32
  }
  func.func @transform_4(%arg0: i32) -> (i32, i32) {
    %c0_i32 = arith.constant 0 : i32
    %c0_i32_0 = arith.constant 0 : i32
    return %arg0, %c0_i32 : i32, i32
  }
}

module attributes {stable_mosaic.version = 11 : i64} {
  func.func @_matmul_bias_act_kernel(%arg0: i32, %arg1: memref<24x2048xbf16, #tpu.memory_space<vmem>>, %arg2: memref<2048x128xbf16, #tpu.memory_space<vmem>>, %arg3: memref<1x128xf32, #tpu.memory_space<vmem>>, %arg4: memref<1xf32, #tpu.memory_space<smem>>, %arg5: memref<24x128xbf16, #tpu.memory_space<vmem>>) attributes {dimension_semantics = [#tpu.dimension_semantics<parallel>], iteration_bounds = array<i64: 1>, scalar_prefetch = 0 : i64, scratch_operands = 0 : i64, tpu.core_type = #tpu.core_type<tc>, window_params = [{transform_indices = @transform_0, window_bounds = array<i64: 24, 2048>}, {pipeline_mode = #tpu.pipeline_mode<synchronous>, transform_indices = @transform_1, window_bounds = array<i64: 2048, 128>}, {pipeline_mode = #tpu.pipeline_mode<synchronous>, transform_indices = @transform_2, window_bounds = array<i64: 1, 128>}, {transform_indices = @transform_3, window_bounds = array<i64: 1>}, {transform_indices = @transform_4, window_bounds = array<i64: 24, 128>}]} {
    %c0 = arith.constant 0 : index
    %c0_0 = arith.constant 0 : index
    %0 = vector.load %arg1[%c0, %c0_0] : memref<24x2048xbf16, #tpu.memory_space<vmem>>, vector<24x2048xbf16>
    %c0_1 = arith.constant 0 : index
    %c0_2 = arith.constant 0 : index
    %1 = vector.load %arg2[%c0_1, %c0_2] : memref<2048x128xbf16, #tpu.memory_space<vmem>>, vector<2048x128xbf16>
    %cst = arith.constant dense<0.000000e+00> : vector<24x128xf32>
    %2 = tpu.matmul %0, %1, %cst {dimension_numbers = #tpu.dot_dimension_numbers<[1], [0], [0], [1], [0, 0, 1, 1], [], []>} : vector<24x2048xbf16>, vector<2048x128xbf16>, vector<24x128xf32> -> vector<24x128xf32>
    %c0_3 = arith.constant 0 : index
    %3 = memref.load %arg4[%c0_3] : memref<1xf32, #tpu.memory_space<smem>>
    %4 = vector.broadcast %3 : f32 to vector<24x128xf32>
    %5 = arith.mulf %2, %4 : vector<24x128xf32>
    %c0_4 = arith.constant 0 : index
    %c0_5 = arith.constant 0 : index
    %6 = vector.load %arg3[%c0_4, %c0_5] : memref<1x128xf32, #tpu.memory_space<vmem>>, vector<1x128xf32>
    %7 = vector.broadcast %6 : vector<1x128xf32> to vector<24x128xf32>
    %8 = arith.addf %5, %7 : vector<24x128xf32>
    %cst_6 = arith.constant 0.000000e+00 : f32
    %9 = vector.broadcast %cst_6 : f32 to vector<24x128xf32>
    %10 = arith.maximumf %8, %9 : vector<24x128xf32>
    %11 = arith.truncf %10 : vector<24x128xf32> to vector<24x128xbf16>
    %c0_7 = arith.constant 0 : index
    %c0_8 = arith.constant 0 : index
    %12 = vector.load %arg5[%c0_7, %c0_8] : memref<24x128xbf16, #tpu.memory_space<vmem>>, vector<24x128xbf16>
    tpu.vector_store %arg5[%c0_7, %c0_8], %11 {strides = array<i32>} : memref<24x128xbf16, #tpu.memory_space<vmem>>, vector<24x128xbf16>,
    return
  }
  func.func @transform_0(%arg0: i32) -> (i32, i32) {
    %c0_i32 = arith.constant 0 : i32
    %c0_i32_0 = arith.constant 0 : i32
    return %arg0, %c0_i32 : i32, i32
  }
  func.func @transform_1(%arg0: i32) -> (i32, i32) {
    %c0_i32 = arith.constant 0 : i32
    %c0_i32_0 = arith.constant 0 : i32
    %c0_i32_1 = arith.constant 0 : i32
    return %c0_i32, %c0_i32_0 : i32, i32
  }
  func.func @transform_2(%arg0: i32) -> (i32, i32) {
    %c0_i32 = arith.constant 0 : i32
    %c0_i32_0 = arith.constant 0 : i32
    %c0_i32_1 = arith.constant 0 : i32
    return %c0_i32, %c0_i32_0 : i32, i32
  }
  func.func @transform_3(%arg0: i32) -> i32 {
    %c0_i32 = arith.constant 0 : i32
    %c0_i32_0 = arith.constant 0 : i32
    return %c0_i32 : i32
  }
  func.func @transform_4(%arg0: i32) -> (i32, i32) {
    %c0_i32 = arith.constant 0 : i32
    %c0_i32_0 = arith.constant 0 : i32
    return %arg0, %c0_i32 : i32, i32
  }
}

module attributes {stable_mosaic.version = 11 : i64} {
  func.func @_fc_head_kernel(%arg0: i32, %arg1: memref<8x128xbf16, #tpu.memory_space<vmem>>, %arg2: memref<128x512xbf16, #tpu.memory_space<vmem>>, %arg3: memref<1x512xf32, #tpu.memory_space<vmem>>, %arg4: memref<512x128xbf16, #tpu.memory_space<vmem>>, %arg5: memref<1x128xf32, #tpu.memory_space<vmem>>, %arg6: memref<8x128xf32, #tpu.memory_space<vmem>>) attributes {dimension_semantics = [#tpu.dimension_semantics<parallel>], iteration_bounds = array<i64: 1>, scalar_prefetch = 0 : i64, scratch_operands = 0 : i64, tpu.core_type = #tpu.core_type<tc>, window_params = [{transform_indices = @transform_0, window_bounds = array<i64: 8, 128>}, {pipeline_mode = #tpu.pipeline_mode<synchronous>, transform_indices = @transform_1, window_bounds = array<i64: 128, 512>}, {pipeline_mode = #tpu.pipeline_mode<synchronous>, transform_indices = @transform_2, window_bounds = array<i64: 1, 512>}, {pipeline_mode = #tpu.pipeline_mode<synchronous>, transform_indices = @transform_3, window_bounds = array<i64: 512, 128>}, {pipeline_mode = #tpu.pipeline_mode<synchronous>, transform_indices = @transform_4, window_bounds = array<i64: 1, 128>}, {transform_indices = @transform_5, window_bounds = array<i64: 8, 128>}]} {
    %c0 = arith.constant 0 : index
    %c0_0 = arith.constant 0 : index
    %0 = vector.load %arg1[%c0, %c0_0] : memref<8x128xbf16, #tpu.memory_space<vmem>>, vector<8x128xbf16>
    %c0_1 = arith.constant 0 : index
    %c0_2 = arith.constant 0 : index
    %1 = vector.load %arg2[%c0_1, %c0_2] : memref<128x512xbf16, #tpu.memory_space<vmem>>, vector<128x512xbf16>
    %cst = arith.constant dense<0.000000e+00> : vector<8x512xf32>
    %2 = tpu.matmul %0, %1, %cst {dimension_numbers = #tpu.dot_dimension_numbers<[1], [0], [0], [1], [0, 0, 1, 1], [], []>} : vector<8x128xbf16>, vector<128x512xbf16>, vector<8x512xf32> -> vector<8x512xf32>
    %c0_3 = arith.constant 0 : index
    %c0_4 = arith.constant 0 : index
    %3 = vector.load %arg3[%c0_3, %c0_4] : memref<1x512xf32, #tpu.memory_space<vmem>>, vector<1x512xf32>
    %4 = vector.broadcast %3 : vector<1x512xf32> to vector<8x512xf32>
    %5 = arith.addf %2, %4 : vector<8x512xf32>
    %cst_5 = arith.constant 0.000000e+00 : f32
    %6 = vector.broadcast %cst_5 : f32 to vector<8x512xf32>
    %7 = arith.maximumf %5, %6 : vector<8x512xf32>
    %8 = arith.truncf %7 : vector<8x512xf32> to vector<8x512xbf16>
    %c0_6 = arith.constant 0 : index
    %c0_7 = arith.constant 0 : index
    %9 = vector.load %arg4[%c0_6, %c0_7] : memref<512x128xbf16, #tpu.memory_space<vmem>>, vector<512x128xbf16>
    %cst_8 = arith.constant dense<0.000000e+00> : vector<8x128xf32>
    %10 = tpu.matmul %8, %9, %cst_8 {dimension_numbers = #tpu.dot_dimension_numbers<[1], [0], [0], [1], [0, 0, 1, 1], [], []>} : vector<8x512xbf16>, vector<512x128xbf16>, vector<8x128xf32> -> vector<8x128xf32>
    %c0_9 = arith.constant 0 : index
    %c0_10 = arith.constant 0 : index
    %11 = vector.load %arg5[%c0_9, %c0_10] : memref<1x128xf32, #tpu.memory_space<vmem>>, vector<1x128xf32>
    %12 = vector.broadcast %11 : vector<1x128xf32> to vector<8x128xf32>
    %13 = arith.addf %10, %12 : vector<8x128xf32>
    %c0_11 = arith.constant 0 : index
    %c0_12 = arith.constant 0 : index
    %14 = vector.load %arg6[%c0_11, %c0_12] : memref<8x128xf32, #tpu.memory_space<vmem>>, vector<8x128xf32>
    tpu.vector_store %arg6[%c0_11, %c0_12], %13 {strides = array<i32>} : memref<8x128xf32, #tpu.memory_space<vmem>>, vector<8x128xf32>,
    return
  }
  func.func @transform_0(%arg0: i32) -> (i32, i32) {
    %c0_i32 = arith.constant 0 : i32
    %c0_i32_0 = arith.constant 0 : i32
    return %arg0, %c0_i32 : i32, i32
  }
  func.func @transform_1(%arg0: i32) -> (i32, i32) {
    %c0_i32 = arith.constant 0 : i32
    %c0_i32_0 = arith.constant 0 : i32
    %c0_i32_1 = arith.constant 0 : i32
    return %c0_i32, %c0_i32_0 : i32, i32
  }
  func.func @transform_2(%arg0: i32) -> (i32, i32) {
    %c0_i32 = arith.constant 0 : i32
    %c0_i32_0 = arith.constant 0 : i32
    %c0_i32_1 = arith.constant 0 : i32
    return %c0_i32, %c0_i32_0 : i32, i32
  }
  func.func @transform_3(%arg0: i32) -> (i32, i32) {
    %c0_i32 = arith.constant 0 : i32
    %c0_i32_0 = arith.constant 0 : i32
    %c0_i32_1 = arith.constant 0 : i32
    return %c0_i32, %c0_i32_0 : i32, i32
  }
  func.func @transform_4(%arg0: i32) -> (i32, i32) {
    %c0_i32 = arith.constant 0 : i32
    %c0_i32_0 = arith.constant 0 : i32
    %c0_i32_1 = arith.constant 0 : i32
    return %c0_i32, %c0_i32_0 : i32, i32
  }
  func.func @transform_5(%arg0: i32) -> (i32, i32) {
    %c0_i32 = arith.constant 0 : i32
    %c0_i32_0 = arith.constant 0 : i32
    return %arg0, %c0_i32 : i32, i32
  }
}

module attributes {stable_mosaic.version = 11 : i64} {
  func.func @_matmul_bias_act_kernel(%arg0: i32, %arg1: memref<8x1152xbf16, #tpu.memory_space<vmem>>, %arg2: memref<1152x128xbf16, #tpu.memory_space<vmem>>, %arg3: memref<1x128xf32, #tpu.memory_space<vmem>>, %arg4: memref<1xf32, #tpu.memory_space<smem>>, %arg5: memref<8x128xbf16, #tpu.memory_space<vmem>>) attributes {dimension_semantics = [#tpu.dimension_semantics<parallel>], iteration_bounds = array<i64: 1>, scalar_prefetch = 0 : i64, scratch_operands = 0 : i64, tpu.core_type = #tpu.core_type<tc>, window_params = [{transform_indices = @transform_0, window_bounds = array<i64: 8, 1152>}, {pipeline_mode = #tpu.pipeline_mode<synchronous>, transform_indices = @transform_1, window_bounds = array<i64: 1152, 128>}, {pipeline_mode = #tpu.pipeline_mode<synchronous>, transform_indices = @transform_2, window_bounds = array<i64: 1, 128>}, {transform_indices = @transform_3, window_bounds = array<i64: 1>}, {transform_indices = @transform_4, window_bounds = array<i64: 8, 128>}]} {
    %c0 = arith.constant 0 : index
    %c0_0 = arith.constant 0 : index
    %0 = vector.load %arg1[%c0, %c0_0] : memref<8x1152xbf16, #tpu.memory_space<vmem>>, vector<8x1152xbf16>
    %c0_1 = arith.constant 0 : index
    %c0_2 = arith.constant 0 : index
    %1 = vector.load %arg2[%c0_1, %c0_2] : memref<1152x128xbf16, #tpu.memory_space<vmem>>, vector<1152x128xbf16>
    %cst = arith.constant dense<0.000000e+00> : vector<8x128xf32>
    %2 = tpu.matmul %0, %1, %cst {dimension_numbers = #tpu.dot_dimension_numbers<[1], [0], [0], [1], [0, 0, 1, 1], [], []>} : vector<8x1152xbf16>, vector<1152x128xbf16>, vector<8x128xf32> -> vector<8x128xf32>
    %c0_3 = arith.constant 0 : index
    %3 = memref.load %arg4[%c0_3] : memref<1xf32, #tpu.memory_space<smem>>
    %4 = vector.broadcast %3 : f32 to vector<8x128xf32>
    %5 = arith.mulf %2, %4 : vector<8x128xf32>
    %c0_4 = arith.constant 0 : index
    %c0_5 = arith.constant 0 : index
    %6 = vector.load %arg3[%c0_4, %c0_5] : memref<1x128xf32, #tpu.memory_space<vmem>>, vector<1x128xf32>
    %7 = vector.broadcast %6 : vector<1x128xf32> to vector<8x128xf32>
    %8 = arith.addf %5, %7 : vector<8x128xf32>
    %cst_6 = arith.constant 0.000000e+00 : f32
    %9 = vector.broadcast %cst_6 : f32 to vector<8x128xf32>
    %10 = arith.maximumf %8, %9 : vector<8x128xf32>
    %11 = arith.truncf %10 : vector<8x128xf32> to vector<8x128xbf16>
    %c0_7 = arith.constant 0 : index
    %c0_8 = arith.constant 0 : index
    %12 = vector.load %arg5[%c0_7, %c0_8] : memref<8x128xbf16, #tpu.memory_space<vmem>>, vector<8x128xbf16>
    tpu.vector_store %arg5[%c0_7, %c0_8], %11 {strides = array<i32>} : memref<8x128xbf16, #tpu.memory_space<vmem>>, vector<8x128xbf16>,
    return
  }
  func.func @transform_0(%arg0: i32) -> (i32, i32) {
    %c0_i32 = arith.constant 0 : i32
    %c0_i32_0 = arith.constant 0 : i32
    return %arg0, %c0_i32 : i32, i32
  }
  func.func @transform_1(%arg0: i32) -> (i32, i32) {
    %c0_i32 = arith.constant 0 : i32
    %c0_i32_0 = arith.constant 0 : i32
    %c0_i32_1 = arith.constant 0 : i32
    return %c0_i32, %c0_i32_0 : i32, i32
  }
  func.func @transform_2(%arg0: i32) -> (i32, i32) {
    %c0_i32 = arith.constant 0 : i32
    %c0_i32_0 = arith.constant 0 : i32
    %c0_i32_1 = arith.constant 0 : i32
    return %c0_i32, %c0_i32_0 : i32, i32
  }
  func.func @transform_3(%arg0: i32) -> i32 {
    %c0_i32 = arith.constant 0 : i32
    %c0_i32_0 = arith.constant 0 : i32
    return %c0_i32 : i32
  }
  func.func @transform_4(%arg0: i32) -> (i32, i32) {
    %c0_i32 = arith.constant 0 : i32
    %c0_i32_0 = arith.constant 0 : i32
    return %arg0, %c0_i32 : i32, i32
  }
}

</mosaic_0001>

<llo_original>
// kernel: nature_cnn_forward.4
$region0: #{nature_cnn_forward.4}
  #allocation0 [shape = 'u32[]', space=smem, size = 0x4, offset = 0x4, fixed_abs, tag = 'smem constant byte address 0x4 - core index']
  #allocation1 [shape = 'u32[144,128]{1,0:T(1,128)}', space=vmem, size = 0x12000, scoped, tag = 'internal scratch']
  #allocation2 [shape = 'f32[1]{0:T(128)S(6)}', space=smem, size = 0x200, scoped, tag = 'scoped memory for nature_cnn_forward.4']
  %s0 = inlined_call_operand.vmem [shape: bf16[128,256], index: 0, kind: input, shape index: {}]
  %s1 = inlined_call_operand.vmem [shape: bf16[256,128], index: 1, kind: input, shape index: {}]
  %s2 = inlined_call_operand.vmem [shape: f32[1,128], index: 2, kind: input, shape index: {}]
  %s3 = inlined_call_operand.<no memory space> [shape: f32[1], index: 3, kind: input, shape index: {}]
  %s4 = inlined_call_operand.vmem [shape: bf16[128,128], index: 4, kind: output, shape index: {}]
  %s5 = sld [smem:[#allocation0]]
  $region26: #{nature_cnn_forward.4} parent=0
    _
  %s7 = ssub.s32 1, %s5
  %s8 = scalar_select 0, %s7, %s5
  %9 = sst [smem:[#allocation2]] %s3
  // Predicated region
  $region2: #{nature_cnn_forward.4} parent=0 // pred_check
    _
  $region3: #{nature_cnn_forward.4} parent=0 // pred_check_branch
    %11 = sbr.rel (0) target = $region5
  $region4: #{nature_cnn_forward.4} parent=0 // pred_region
    _
  $region5: #{nature_cnn_forward.4} parent=0 // pred_fallthru
    _
  // Predicated region
  $region6: #{nature_cnn_forward.4} parent=0 // pred_check
    _
  $region7: #{nature_cnn_forward.4} parent=0 // pred_check_branch
    %13 = sbr.rel (0) target = $region9
  $region8: #{nature_cnn_forward.4} parent=0 // pred_region
    _
  $region9: #{nature_cnn_forward.4} parent=0 // pred_fallthru
    _
  // Predicated region
  $region10: #{nature_cnn_forward.4} parent=0 // pred_check
    _
  $region11: #{nature_cnn_forward.4} parent=0 // pred_check_branch
    %15 = sbr.rel (0) target = $region13
  $region12: #{nature_cnn_forward.4} parent=0 // pred_region
    _
  $region13: #{nature_cnn_forward.4} parent=0 // pred_fallthru
    _
  // Predicated region
  $region14: #{nature_cnn_forward.4} parent=0 // pred_check
    _
  $region15: #{nature_cnn_forward.4} parent=0 // pred_check_branch
    %17 = sbr.rel (0) target = $region17
  $region16: #{nature_cnn_forward.4} parent=0 // pred_region
    _
  $region17: #{nature_cnn_forward.4} parent=0 // pred_fallthru
    _
  %v19 = vld [vmem:[%s0] sm:$0xff]
  %v20 = vld [vmem:[%s0 + $0x8] sm:$0xff]
  %v21 = vld [vmem:[%s0 + $0x10] sm:$0xff]
  %v22 = vld [vmem:[%s0 + $0x18] sm:$0xff]
  %v23 = vld [vmem:[%s0 + $0x20] sm:$0xff]
  %v24 = vld [vmem:[%s0 + $0x28] sm:$0xff]
  %v25 = vld [vmem:[%s0 + $0x30] sm:$0xff]
  %v26 = vld [vmem:[%s0 + $0x38] sm:$0xff]
  %v27 = vld [vmem:[%s0 + $0x40] sm:$0xff]
  %v28 = vld [vmem:[%s0 + $0x48] sm:$0xff]
  %v29 = vld [vmem:[%s0 + $0x50] sm:$0xff]
  %v30 = vld [vmem:[%s0 + $0x58] sm:$0xff]
  %v31 = vld [vmem:[%s0 + $0x60] sm:$0xff]
  %v32 = vld [vmem:[%s0 + $0x68] sm:$0xff]
  %v33 = vld [vmem:[%s0 + $0x70] sm:$0xff]
  %v34 = vld [vmem:[%s0 + $0x78] sm:$0xff]
  %v35 = vld [vmem:[%s1] sm:$0xf]
  %v36 = vld [vmem:[%s1 + $0x4] sm:$0xf]
  %v37 = vld [vmem:[%s1 + $0x8] sm:$0xf]
  %v38 = vld [vmem:[%s1 + $0xc] sm:$0xf]
  %v39 = vld [vmem:[%s1 + $0x10] sm:$0xf]
  %v40 = vld [vmem:[%s1 + $0x14] sm:$0xf]
  %v41 = vld [vmem:[%s1 + $0x18] sm:$0xf]
  %v42 = vld [vmem:[%s1 + $0x1c] sm:$0xf]
  %v43 = vld [vmem:[%s1 + $0x20] sm:$0xf]
  %v44 = vld [vmem:[%s1 + $0x24] sm:$0xf]
  %v45 = vld [vmem:[%s1 + $0x28] sm:$0xf]
  %v46 = vld [vmem:[%s1 + $0x2c] sm:$0xf]
  %v47 = vld [vmem:[%s1 + $0x30] sm:$0xf]
  %v48 = vld [vmem:[%s1 + $0x34] sm:$0xf]
  %v49 = vld [vmem:[%s1 + $0x38] sm:$0xf]
  %v50 = vld [vmem:[%s1 + $0x3c] sm:$0xf]
  %v51 = vld [vmem:[%s1 + $0x40] sm:$0xf]
  %v52 = vld [vmem:[%s1 + $0x44] sm:$0xf]
  %v53 = vld [vmem:[%s1 + $0x48] sm:$0xf]
  %v54 = vld [vmem:[%s1 + $0x4c] sm:$0xf]
  %v55 = vld [vmem:[%s1 + $0x50] sm:$0xf]
  %v56 = vld [vmem:[%s1 + $0x54] sm:$0xf]
  %v57 = vld [vmem:[%s1 + $0x58] sm:$0xf]
  %v58 = vld [vmem:[%s1 + $0x5c] sm:$0xf]
  %v59 = vld [vmem:[%s1 + $0x60] sm:$0xf]
  %v60 = vld [vmem:[%s1 + $0x64] sm:$0xf]
  %v61 = vld [vmem:[%s1 + $0x68] sm:$0xf]
  %v62 = vld [vmem:[%s1 + $0x6c] sm:$0xf]
  %v63 = vld [vmem:[%s1 + $0x70] sm:$0xf]
  %v64 = vld [vmem:[%s1 + $0x74] sm:$0xf]
  %v65 = vld [vmem:[%s1 + $0x78] sm:$0xf]
  %v66 = vld [vmem:[%s1 + $0x7c] sm:$0xf]
  %v83 = vunpack.c.l.b16 %v19
  %v84 = vunpack.c.h.b16 %v19
  %v85 = vunpack.c.l.b16 %v20
  %v86 = vunpack.c.h.b16 %v20
  %v87 = vunpack.c.l.b16 %v21
  %v88 = vunpack.c.h.b16 %v21
  %v89 = vunpack.c.l.b16 %v22
  %v90 = vunpack.c.h.b16 %v22
  %v91 = vunpack.c.l.b16 %v23
  %v92 = vunpack.c.h.b16 %v23
  %v93 = vunpack.c.l.b16 %v24
  %v94 = vunpack.c.h.b16 %v24
  %v95 = vunpack.c.l.b16 %v25
  %v96 = vunpack.c.h.b16 %v25
  %v97 = vunpack.c.l.b16 %v26
  %v98 = vunpack.c.h.b16 %v26
  %v99 = vunpack.c.l.b16 %v27
  %v100 = vunpack.c.h.b16 %v27
  %v101 = vunpack.c.l.b16 %v28
  %v102 = vunpack.c.h.b16 %v28
  %v103 = vunpack.c.l.b16 %v29
  %v104 = vunpack.c.h.b16 %v29
  %v105 = vunpack.c.l.b16 %v30
  %v106 = vunpack.c.h.b16 %v30
  %v107 = vunpack.c.l.b16 %v31
  %v108 = vunpack.c.h.b16 %v31
  %v109 = vunpack.c.l.b16 %v32
  %v110 = vunpack.c.h.b16 %v32
  %v111 = vunpack.c.l.b16 %v33
  %v112 = vunpack.c.h.b16 %v33
  %v113 = vunpack.c.l.b16 %v34
  %v114 = vunpack.c.h.b16 %v34
  %v115 = vpack.c.b16 %v85, %v83
  %v116 = vpack.c.b16 %v86, %v84
  %v117 = vpack.c.b16 %v89, %v87
  %v118 = vpack.c.b16 %v90, %v88
  %v119 = vpack.c.b16 %v93, %v91
  %v120 = vpack.c.b16 %v94, %v92
  %v121 = vpack.c.b16 %v97, %v95
  %v122 = vpack.c.b16 %v98, %v96
  %v123 = vpack.c.b16 %v101, %v99
  %v124 = vpack.c.b16 %v102, %v100
  %v125 = vpack.c.b16 %v105, %v103
  %v126 = vpack.c.b16 %v106, %v104
  %v127 = vpack.c.b16 %v109, %v107
  %v128 = vpack.c.b16 %v110, %v108
  %v129 = vpack.c.b16 %v113, %v111
  %v130 = vpack.c.b16 %v114, %v112
  %v179 = vunpack.c.l.b16 %v35
  %v180 = vunpack.c.l.b16 %v36
  %v181 = vunpack.c.l.b16 %v37
  %v182 = vunpack.c.l.b16 %v38
  %v183 = vunpack.c.l.b16 %v39
  %v184 = vunpack.c.l.b16 %v40
  %v185 = vunpack.c.l.b16 %v41
  %v186 = vunpack.c.l.b16 %v42
  %v187 = vunpack.c.l.b16 %v43
  %v188 = vunpack.c.l.b16 %v44
  %v189 = vunpack.c.l.b16 %v45
  %v190 = vunpack.c.l.b16 %v46
  %v191 = vunpack.c.l.b16 %v47
  %v192 = vunpack.c.l.b16 %v48
  %v193 = vunpack.c.l.b16 %v49
  %v194 = vunpack.c.l.b16 %v50
  %v195 = vunpack.c.l.b16 %v51
  %v196 = vunpack.c.l.b16 %v52
  %v197 = vunpack.c.l.b16 %v53
  %v198 = vunpack.c.l.b16 %v54
  %v199 = vunpack.c.l.b16 %v55
  %v200 = vunpack.c.l.b16 %v56
  %v201 = vunpack.c.l.b16 %v57
  %v202 = vunpack.c.l.b16 %v58
  %v203 = vunpack.c.l.b16 %v59
  %v204 = vunpack.c.l.b16 %v60
  %v205 = vunpack.c.l.b16 %v61
  %v206 = vunpack.c.l.b16 %v62
  %v207 = vunpack.c.l.b16 %v63
  %v208 = vunpack.c.l.b16 %v64
  %v209 = vunpack.c.l.b16 %v65
  %v210 = vunpack.c.l.b16 %v66
  %v211 = vpack.c.b16 %v180, %v179
  %v212 = vpack.c.b16 %v182, %v181
  %v213 = vpack.c.b16 %v184, %v183
  %v214 = vpack.c.b16 %v186, %v185
  %v215 = vpack.c.b16 %v188, %v187
  %v216 = vpack.c.b16 %v190, %v189
  %v217 = vpack.c.b16 %v192, %v191
  %v218 = vpack.c.b16 %v194, %v193
  %v219 = vpack.c.b16 %v196, %v195
  %v220 = vpack.c.b16 %v198, %v197
  %v221 = vpack.c.b16 %v200, %v199
  %v222 = vpack.c.b16 %v202, %v201
  %v223 = vpack.c.b16 %v204, %v203
  %v224 = vpack.c.b16 %v206, %v205
  %v225 = vpack.c.b16 %v208, %v207
  %v226 = vpack.c.b16 %v210, %v209
  %243 = vmatprep.subr.bf16.mxu0 0
  %244 = vmatpush1.bf16.msra.mxu0 %v211
  %245 = vmatprep.subr.bf16.mxu0 0
  %246 = vmatpush1.bf16.msra.mxu0 %v212
  %247 = vmatprep.subr.bf16.mxu0 0
  %248 = vmatpush1.bf16.msra.mxu0 %v213
  %249 = vmatprep.subr.bf16.mxu0 0
  %250 = vmatpush1.bf16.msra.mxu0 %v214
  %251 = vmatprep.subr.bf16.mxu0 0
  %252 = vmatpush1.bf16.msra.mxu0 %v215
  %253 = vmatprep.subr.bf16.mxu0 0
  %254 = vmatpush1.bf16.msra.mxu0 %v216
  %255 = vmatprep.subr.bf16.mxu0 0
  %256 = vmatpush1.bf16.msra.mxu0 %v217
  %257 = vmatprep.subr.bf16.mxu0 0
  %258 = vmatpush1.bf16.msra.mxu0 %v218
  %259 = vmatprep.subr.bf16.mxu0 0
  %260 = vmatpush1.bf16.msra.mxu0 %v219
  %261 = vmatprep.subr.bf16.mxu0 0
  %262 = vmatpush1.bf16.msra.mxu0 %v220
  %263 = vmatprep.subr.bf16.mxu0 0
  %264 = vmatpush1.bf16.msra.mxu0 %v221
  %265 = vmatprep.subr.bf16.mxu0 0
  %266 = vmatpush1.bf16.msra.mxu0 %v222
  %267 = vmatprep.subr.bf16.mxu0 0
  %268 = vmatpush1.bf16.msra.mxu0 %v223
  %269 = vmatprep.subr.bf16.mxu0 0
  %270 = vmatpush1.bf16.msra.mxu0 %v224
  %271 = vmatprep.subr.bf16.mxu0 0
  %272 = vmatpush1.bf16.msra.mxu0 %v225
  %273 = vmatprep.subr.bf16.mxu0 0
  %274 = vmatpush1.bf16.msra.mxu0 %v226
  %275 = vmatprep.mubr.bf16.mxu0 %v116
  %276 = vmatmul.mubr.bf16.gmra.mrb[0].mxu0 %v115
  %v277 = vpop.f32.mrb[0].mxu0
  %v278 = vadd.f32 0.0, %v277
  %v279 = vpop.f32.mrb[0].mxu0
  %v280 = vpop.f32.mrb[0].mxu0
  %v281 = vadd.f32 0.0, %v280
  %v282 = vpop.f32.mrb[0].mxu0
  %283 = vmatprep.mubr.bf16.mxu0 %v118
  %284 = vmatmul.mubr.bf16.gmra.mrb[0].mxu0 %v117
  %v285 = vpop.f32.mrb[0].mxu0
  %v286 = vadd.f32 0.0, %v285
  %v287 = vpop.f32.mrb[0].mxu0
  %v288 = vpop.f32.mrb[0].mxu0
  %v289 = vadd.f32 0.0, %v288
  %v290 = vpop.f32.mrb[0].mxu0
  %291 = vmatprep.mubr.bf16.mxu0 %v120
  %292 = vmatmul.mubr.bf16.gmra.mrb[0].mxu0 %v119
  %v293 = vpop.f32.mrb[0].mxu0
  %v294 = vadd.f32 0.0, %v293
  %v295 = vpop.f32.mrb[0].mxu0
  %v296 = vpop.f32.mrb[0].mxu0
  %v297 = vadd.f32 0.0, %v296
  %v298 = vpop.f32.mrb[0].mxu0
  %299 = vmatprep.mubr.bf16.mxu0 %v122
  %300 = vmatmul.mubr.bf16.gmra.mrb[0].mxu0 %v121
  %v301 = vpop.f32.mrb[0].mxu0
  %v302 = vadd.f32 0.0, %v301
  %v303 = vpop.f32.mrb[0].mxu0
  %v304 = vpop.f32.mrb[0].mxu0
  %v305 = vadd.f32 0.0, %v304
  %v306 = vpop.f32.mrb[0].mxu0
  %307 = vmatprep.mubr.bf16.mxu0 %v124
  %308 = vmatmul.mubr.bf16.gmra.mrb[0].mxu0 %v123
  %v309 = vpop.f32.mrb[0].mxu0
  %v310 = vadd.f32 0.0, %v309
  %v311 = vpop.f32.mrb[0].mxu0
  %v312 = vpop.f32.mrb[0].mxu0
  %v313 = vadd.f32 0.0, %v312
  %v314 = vpop.f32.mrb[0].mxu0
  %315 = vmatprep.mubr.bf16.mxu0 %v126
  %316 = vmatmul.mubr.bf16.gmra.mrb[0].mxu0 %v125
  %v317 = vpop.f32.mrb[0].mxu0
  %v318 = vadd.f32 0.0, %v317
  %v319 = vpop.f32.mrb[0].mxu0
  %v320 = vpop.f32.mrb[0].mxu0
  %v321 = vadd.f32 0.0, %v320
  %v322 = vpop.f32.mrb[0].mxu0
  %323 = vmatprep.mubr.bf16.mxu0 %v128
  %324 = vmatmul.mubr.bf16.gmra.mrb[0].mxu0 %v127
  %v325 = vpop.f32.mrb[0].mxu0
  %v326 = vadd.f32 0.0, %v325
  %v327 = vpop.f32.mrb[0].mxu0
  %v328 = vpop.f32.mrb[0].mxu0
  %v329 = vadd.f32 0.0, %v328
  %v330 = vpop.f32.mrb[0].mxu0
  %331 = vmatprep.mubr.bf16.mxu0 %v130
  %332 = vmatmul.mubr.bf16.gmra.mrb[0].mxu0 %v129
  %v333 = vpop.f32.mrb[0].mxu0
  %v334 = vadd.f32 0.0, %v333
  %v335 = vpop.f32.mrb[0].mxu0
  %v336 = vpop.f32.mrb[0].mxu0
  %v337 = vadd.f32 0.0, %v336
  %v338 = vpop.f32.mrb[0].mxu0
  %339 = vdwg.mxu0
  %s340 = sld [smem:[#allocation2]]
  %v341 = vstv %s340
  %v342 = vmul.f32 %v278, %v341
  %v343 = vmul.f32 %v281, %v341
  %v344 = vmul.f32 %v286, %v341
  %v345 = vmul.f32 %v289, %v341
  %v346 = vmul.f32 %v294, %v341
  %v347 = vmul.f32 %v297, %v341
  %v348 = vmul.f32 %v302, %v341
  %v349 = vmul.f32 %v305, %v341
  %v350 = vmul.f32 %v310, %v341
  %v351 = vmul.f32 %v313, %v341
  %v352 = vmul.f32 %v318, %v341
  %v353 = vmul.f32 %v321, %v341
  %v354 = vmul.f32 %v326, %v341
  %v355 = vmul.f32 %v329, %v341
  %v356 = vmul.f32 %v334, %v341
  %v357 = vmul.f32 %v337, %v341
  %v358 = vld [vmem:[%s2] sm:$0x1]
  %v360 = vlaneseq
  %v361 = vshrl.u32 %v360, 7
  %v362 = vsub.s32 0, %v361
  %v363 = vrot.slane %v358, %v362
  %v365 = vadd.f32 %v342, %v363
  %v366 = vadd.f32 %v343, %v363
  %v367 = vadd.f32 %v344, %v363
  %v368 = vadd.f32 %v345, %v363
  %v369 = vadd.f32 %v346, %v363
  %v370 = vadd.f32 %v347, %v363
  %v371 = vadd.f32 %v348, %v363
  %v372 = vadd.f32 %v349, %v363
  %v373 = vadd.f32 %v350, %v363
  %v374 = vadd.f32 %v351, %v363
  %v375 = vadd.f32 %v352, %v363
  %v376 = vadd.f32 %v353, %v363
  %v377 = vadd.f32 %v354, %v363
  %v378 = vadd.f32 %v355, %v363
  %v379 = vadd.f32 %v356, %v363
  %v380 = vadd.f32 %v357, %v363
  %v381 = vmax.f32 %v365, 0.0
  %v382 = vmax.f32 %v366, 0.0
  %v383 = vmax.f32 %v367, 0.0
  %v384 = vmax.f32 %v368, 0.0
  %v385 = vmax.f32 %v369, 0.0
  %v386 = vmax.f32 %v370, 0.0
  %v387 = vmax.f32 %v371, 0.0
  %v388 = vmax.f32 %v372, 0.0
  %v389 = vmax.f32 %v373, 0.0
  %v390 = vmax.f32 %v374, 0.0
  %v391 = vmax.f32 %v375, 0.0
  %v392 = vmax.f32 %v376, 0.0
  %v393 = vmax.f32 %v377, 0.0
  %v394 = vmax.f32 %v378, 0.0
  %v395 = vmax.f32 %v379, 0.0
  %v396 = vmax.f32 %v380, 0.0
  %v397 = vpack.c.bf16 %v382, %v381
  %v398 = vpack.c.bf16 %v384, %v383
  %v399 = vpack.c.bf16 %v386, %v385
  %v400 = vpack.c.bf16 %v388, %v387
  %v401 = vpack.c.bf16 %v390, %v389
  %v402 = vpack.c.bf16 %v392, %v391
  %v403 = vpack.c.bf16 %v394, %v393
  %v404 = vpack.c.bf16 %v396, %v395
  %v413 = vunpack.c.l.b16 %v397
  %v414 = vunpack.c.h.b16 %v397
  %v415 = vunpack.c.l.b16 %v398
  %v416 = vunpack.c.h.b16 %v398
  %v417 = vunpack.c.l.b16 %v399
  %v418 = vunpack.c.h.b16 %v399
  %v419 = vunpack.c.l.b16 %v400
  %v420 = vunpack.c.h.b16 %v400
  %v421 = vunpack.c.l.b16 %v401
  %v422 = vunpack.c.h.b16 %v401
  %v423 = vunpack.c.l.b16 %v402
  %v424 = vunpack.c.h.b16 %v402
  %v425 = vunpack.c.l.b16 %v403
  %v426 = vunpack.c.h.b16 %v403
  %v427 = vunpack.c.l.b16 %v404
  %v428 = vunpack.c.h.b16 %v404
  %v429 = vpack.c.b16 %v413, %v413
  %v430 = vpack.c.b16 %v414, %v414
  %v431 = vpack.c.b16 %v415, %v415
  %v432 = vpack.c.b16 %v416, %v416
  %v433 = vpack.c.b16 %v417, %v417
  %v434 = vpack.c.b16 %v418, %v418
  %v435 = vpack.c.b16 %v419, %v419
  %v436 = vpack.c.b16 %v420, %v420
  %v437 = vpack.c.b16 %v421, %v421
  %v438 = vpack.c.b16 %v422, %v422
  %v439 = vpack.c.b16 %v423, %v423
  %v440 = vpack.c.b16 %v424, %v424
  %v441 = vpack.c.b16 %v425, %v425
  %v442 = vpack.c.b16 %v426, %v426
  %v443 = vpack.c.b16 %v427, %v427
  %v444 = vpack.c.b16 %v428, %v428
  %461 = vst [vmem:[%s4] sm:$0xf] %v429
  %462 = vst [vmem:[%s4 + $0x4] sm:$0xf] %v430
  %463 = vst [vmem:[%s4 + $0x8] sm:$0xf] %v431
  %464 = vst [vmem:[%s4 + $0xc] sm:$0xf] %v432
  %465 = vst [vmem:[%s4 + $0x10] sm:$0xf] %v433
  %466 = vst [vmem:[%s4 + $0x14] sm:$0xf] %v434
  %467 = vst [vmem:[%s4 + $0x18] sm:$0xf] %v435
  %468 = vst [vmem:[%s4 + $0x1c] sm:$0xf] %v436
  %469 = vst [vmem:[%s4 + $0x20] sm:$0xf] %v437
  %470 = vst [vmem:[%s4 + $0x24] sm:$0xf] %v438
  %471 = vst [vmem:[%s4 + $0x28] sm:$0xf] %v439
  %472 = vst [vmem:[%s4 + $0x2c] sm:$0xf] %v440
  %473 = vst [vmem:[%s4 + $0x30] sm:$0xf] %v441
  %474 = vst [vmem:[%s4 + $0x34] sm:$0xf] %v442
  %475 = vst [vmem:[%s4 + $0x38] sm:$0xf] %v443
  %476 = vst [vmem:[%s4 + $0x3c] sm:$0xf] %v444
  // Predicated region
  $region18: #{nature_cnn_forward.4} parent=0 // pred_check
    _
  $region19: #{nature_cnn_forward.4} parent=0 // pred_check_branch
    %478 = sbr.rel (0) target = $region21
  $region20: #{nature_cnn_forward.4} parent=0 // pred_region
    _
  $region21: #{nature_cnn_forward.4} parent=0 // pred_fallthru
    _
  // Predicated region
  $region22: #{nature_cnn_forward.4} parent=0 // pred_check
    _
  $region23: #{nature_cnn_forward.4} parent=0 // pred_check_branch
    %480 = sbr.rel (0) target = $region25
  $region24: #{nature_cnn_forward.4} parent=0 // pred_region
    _
  $region25: #{nature_cnn_forward.4} parent=0 // pred_fallthru
    _

// kernel: nature_cnn_forward.7
$region0: #{nature_cnn_forward.7}
  #allocation0 [shape = 'u32[]', space=smem, size = 0x4, offset = 0x4, fixed_abs, tag = 'smem constant byte address 0x4 - core index']
  #allocation1 [shape = 'u32[144,128]{1,0:T(1,128)}', space=vmem, size = 0x12000, scoped, tag = 'internal scratch']
  %s0 = inlined_call_operand.vmem [shape: bf16[8,128], index: 0, kind: input, shape index: {}]
  %s1 = inlined_call_operand.vmem [shape: bf16[128,512], index: 1, kind: input, shape index: {}]
  %s2 = inlined_call_operand.vmem [shape: f32[1,512], index: 2, kind: input, shape index: {}]
  %s3 = inlined_call_operand.vmem [shape: bf16[512,128], index: 3, kind: input, shape index: {}]
  %s4 = inlined_call_operand.vmem [shape: f32[1,128], index: 4, kind: input, shape index: {}]
  %s5 = inlined_call_operand.vmem [shape: f32[8,128], index: 5, kind: output, shape index: {}]
  %s6 = sld [smem:[#allocation0]]
  $region30: #{nature_cnn_forward.7} parent=0
    _
  %s8 = ssub.s32 1, %s6
  %s9 = scalar_select 0, %s8, %s6
  // Predicated region
  $region2: #{nature_cnn_forward.7} parent=0 // pred_check
    _
  $region3: #{nature_cnn_forward.7} parent=0 // pred_check_branch
    %11 = sbr.rel (0) target = $region5
  $region4: #{nature_cnn_forward.7} parent=0 // pred_region
    _
  $region5: #{nature_cnn_forward.7} parent=0 // pred_fallthru
    _
  // Predicated region
  $region6: #{nature_cnn_forward.7} parent=0 // pred_check
    _
  $region7: #{nature_cnn_forward.7} parent=0 // pred_check_branch
    %13 = sbr.rel (0) target = $region9
  $region8: #{nature_cnn_forward.7} parent=0 // pred_region
    _
  $region9: #{nature_cnn_forward.7} parent=0 // pred_fallthru
    _
  // Predicated region
  $region10: #{nature_cnn_forward.7} parent=0 // pred_check
    _
  $region11: #{nature_cnn_forward.7} parent=0 // pred_check_branch
    %15 = sbr.rel (0) target = $region13
  $region12: #{nature_cnn_forward.7} parent=0 // pred_region
    _
  $region13: #{nature_cnn_forward.7} parent=0 // pred_fallthru
    _
  // Predicated region
  $region14: #{nature_cnn_forward.7} parent=0 // pred_check
    _
  $region15: #{nature_cnn_forward.7} parent=0 // pred_check_branch
    %17 = sbr.rel (0) target = $region17
  $region16: #{nature_cnn_forward.7} parent=0 // pred_region
    _
  $region17: #{nature_cnn_forward.7} parent=0 // pred_fallthru
    _
  // Predicated region
  $region18: #{nature_cnn_forward.7} parent=0 // pred_check
    _
  $region19: #{nature_cnn_forward.7} parent=0 // pred_check_branch
    %19 = sbr.rel (0) target = $region21
  $region20: #{nature_cnn_forward.7} parent=0 // pred_region
    _
  $region21: #{nature_cnn_forward.7} parent=0 // pred_fallthru
    _
  %v21 = vld [vmem:[%s0] sm:$0xf]
  %v22 = vld [vmem:[%s1] sm:$0xff]
  %v23 = vld [vmem:[%s1 + $0x8] sm:$0xff]
  %v24 = vld [vmem:[%s1 + $0x10] sm:$0xff]
  %v25 = vld [vmem:[%s1 + $0x18] sm:$0xff]
  %v26 = vld [vmem:[%s1 + $0x20] sm:$0xff]
  %v27 = vld [vmem:[%s1 + $0x28] sm:$0xff]
  %v28 = vld [vmem:[%s1 + $0x30] sm:$0xff]
  %v29 = vld [vmem:[%s1 + $0x38] sm:$0xff]
  %v30 = vld [vmem:[%s1 + $0x40] sm:$0xff]
  %v31 = vld [vmem:[%s1 + $0x48] sm:$0xff]
  %v32 = vld [vmem:[%s1 + $0x50] sm:$0xff]
  %v33 = vld [vmem:[%s1 + $0x58] sm:$0xff]
  %v34 = vld [vmem:[%s1 + $0x60] sm:$0xff]
  %v35 = vld [vmem:[%s1 + $0x68] sm:$0xff]
  %v36 = vld [vmem:[%s1 + $0x70] sm:$0xff]
  %v37 = vld [vmem:[%s1 + $0x78] sm:$0xff]
  %v38 = vld [vmem:[%s1 + $0x80] sm:$0xff]
  %v39 = vld [vmem:[%s1 + $0x88] sm:$0xff]
  %v40 = vld [vmem:[%s1 + $0x90] sm:$0xff]
  %v41 = vld [vmem:[%s1 + $0x98] sm:$0xff]
  %v42 = vld [vmem:[%s1 + $0xa0] sm:$0xff]
  %v43 = vld [vmem:[%s1 + $0xa8] sm:$0xff]
  %v44 = vld [vmem:[%s1 + $0xb0] sm:$0xff]
  %v45 = vld [vmem:[%s1 + $0xb8] sm:$0xff]
  %v46 = vld [vmem:[%s1 + $0xc0] sm:$0xff]
  %v47 = vld [vmem:[%s1 + $0xc8] sm:$0xff]
  %v48 = vld [vmem:[%s1 + $0xd0] sm:$0xff]
  %v49 = vld [vmem:[%s1 + $0xd8] sm:$0xff]
  %v50 = vld [vmem:[%s1 + $0xe0] sm:$0xff]
  %v51 = vld [vmem:[%s1 + $0xe8] sm:$0xff]
  %v52 = vld [vmem:[%s1 + $0xf0] sm:$0xff]
  %v53 = vld [vmem:[%s1 + $0xf8] sm:$0xff]
  %v54 = vld [vmem:[%s2] sm:$0xf]
  %v56 = vlaneseq
  %v57 = vshrl.u32 %v56, 7
  %v58 = vsub.s32 0, %v57
  %v59 = vrot.slane %v54, %v58
  %v60 = vlaneseq
  %v61 = vshrl.u32 %v60, 7
  %v62 = vsub.s32 1, %v61
  %v63 = vrot.slane %v54, %v62
  %v64 = vlaneseq
  %v65 = vshrl.u32 %v64, 7
  %v66 = vsub.s32 2, %v65
  %v67 = vrot.slane %v54, %v66
  %v68 = vlaneseq
  %v69 = vshrl.u32 %v68, 7
  %v70 = vsub.s32 3, %v69
  %v71 = vrot.slane %v54, %v70
  %v108 = vunpack.c.l.b16 %v22
  %v109 = vunpack.c.h.b16 %v22
  %v110 = vunpack.c.l.b16 %v23
  %v111 = vunpack.c.h.b16 %v23
  %v112 = vunpack.c.l.b16 %v24
  %v113 = vunpack.c.h.b16 %v24
  %v114 = vunpack.c.l.b16 %v25
  %v115 = vunpack.c.h.b16 %v25
  %v116 = vunpack.c.l.b16 %v26
  %v117 = vunpack.c.h.b16 %v26
  %v118 = vunpack.c.l.b16 %v27
  %v119 = vunpack.c.h.b16 %v27
  %v120 = vunpack.c.l.b16 %v28
  %v121 = vunpack.c.h.b16 %v28
  %v122 = vunpack.c.l.b16 %v29
  %v123 = vunpack.c.h.b16 %v29
  %v124 = vunpack.c.l.b16 %v30
  %v125 = vunpack.c.h.b16 %v30
  %v126 = vunpack.c.l.b16 %v31
  %v127 = vunpack.c.h.b16 %v31
  %v128 = vunpack.c.l.b16 %v32
  %v129 = vunpack.c.h.b16 %v32
  %v130 = vunpack.c.l.b16 %v33
  %v131 = vunpack.c.h.b16 %v33
  %v132 = vunpack.c.l.b16 %v34
  %v133 = vunpack.c.h.b16 %v34
  %v134 = vunpack.c.l.b16 %v35
  %v135 = vunpack.c.h.b16 %v35
  %v136 = vunpack.c.l.b16 %v36
  %v137 = vunpack.c.h.b16 %v36
  %v138 = vunpack.c.l.b16 %v37
  %v139 = vunpack.c.h.b16 %v37
  %v140 = vunpack.c.l.b16 %v38
  %v141 = vunpack.c.h.b16 %v38
  %v142 = vunpack.c.l.b16 %v39
  %v143 = vunpack.c.h.b16 %v39
  %v144 = vunpack.c.l.b16 %v40
  %v145 = vunpack.c.h.b16 %v40
  %v146 = vunpack.c.l.b16 %v41
  %v147 = vunpack.c.h.b16 %v41
  %v148 = vunpack.c.l.b16 %v42
  %v149 = vunpack.c.h.b16 %v42
  %v150 = vunpack.c.l.b16 %v43
  %v151 = vunpack.c.h.b16 %v43
  %v152 = vunpack.c.l.b16 %v44
  %v153 = vunpack.c.h.b16 %v44
  %v154 = vunpack.c.l.b16 %v45
  %v155 = vunpack.c.h.b16 %v45
  %v156 = vunpack.c.l.b16 %v46
  %v157 = vunpack.c.h.b16 %v46
  %v158 = vunpack.c.l.b16 %v47
  %v159 = vunpack.c.h.b16 %v47
  %v160 = vunpack.c.l.b16 %v48
  %v161 = vunpack.c.h.b16 %v48
  %v162 = vunpack.c.l.b16 %v49
  %v163 = vunpack.c.h.b16 %v49
  %v164 = vunpack.c.l.b16 %v50
  %v165 = vunpack.c.h.b16 %v50
  %v166 = vunpack.c.l.b16 %v51
  %v167 = vunpack.c.h.b16 %v51
  %v168 = vunpack.c.l.b16 %v52
  %v169 = vunpack.c.h.b16 %v52
  %v170 = vunpack.c.l.b16 %v53
  %v171 = vunpack.c.h.b16 %v53
  %v172 = vpack.c.b16 %v112, %v108
  %v173 = vpack.c.b16 %v113, %v109
  %v174 = vpack.c.b16 %v114, %v110
  %v175 = vpack.c.b16 %v115, %v111
  %v176 = vpack.c.b16 %v120, %v116
  %v177 = vpack.c.b16 %v121, %v117
  %v178 = vpack.c.b16 %v122, %v118
  %v179 = vpack.c.b16 %v123, %v119
  %v180 = vpack.c.b16 %v128, %v124
  %v181 = vpack.c.b16 %v129, %v125
  %v182 = vpack.c.b16 %v130, %v126
  %v183 = vpack.c.b16 %v131, %v127
  %v184 = vpack.c.b16 %v136, %v132
  %v185 = vpack.c.b16 %v137, %v133
  %v186 = vpack.c.b16 %v138, %v134
  %v187 = vpack.c.b16 %v139, %v135
  %v188 = vpack.c.b16 %v144, %v140
  %v189 = vpack.c.b16 %v145, %v141
  %v190 = vpack.c.b16 %v146, %v142
  %v191 = vpack.c.b16 %v147, %v143
  %v192 = vpack.c.b16 %v152, %v148
  %v193 = vpack.c.b16 %v153, %v149
  %v194 = vpack.c.b16 %v154, %v150
  %v195 = vpack.c.b16 %v155, %v151
  %v196 = vpack.c.b16 %v160, %v156
  %v197 = vpack.c.b16 %v161, %v157
  %v198 = vpack.c.b16 %v162, %v158
  %v199 = vpack.c.b16 %v163, %v159
  %v200 = vpack.c.b16 %v168, %v164
  %v201 = vpack.c.b16 %v169, %v165
  %v202 = vpack.c.b16 %v170, %v166
  %v203 = vpack.c.b16 %v171, %v167
  %236 = vmatprep.subr.bf16.mxu0 %v173
  %237 = vmatpush1.bf16.msra.mxu0 %v172
  %238 = vmatprep.subr.bf16.mxu0 %v177
  %239 = vmatpush1.bf16.msra.mxu0 %v176
  %240 = vmatprep.subr.bf16.mxu0 %v181
  %241 = vmatpush1.bf16.msra.mxu0 %v180
  %242 = vmatprep.subr.bf16.mxu0 %v185
  %243 = vmatpush1.bf16.msra.mxu0 %v184
  %244 = vmatprep.subr.bf16.mxu0 %v189
  %245 = vmatpush1.bf16.msra.mxu0 %v188
  %246 = vmatprep.subr.bf16.mxu0 %v193
  %247 = vmatpush1.bf16.msra.mxu0 %v192
  %248 = vmatprep.subr.bf16.mxu0 %v197
  %249 = vmatpush1.bf16.msra.mxu0 %v196
  %250 = vmatprep.subr.bf16.mxu0 %v201
  %251 = vmatpush1.bf16.msra.mxu0 %v200
  %252 = vmatprep.subr.bf16.mxu0 0
  %253 = vmatpush1.bf16.msra.mxu0 0
  %254 = vmatprep.subr.bf16.mxu0 0
  %255 = vmatpush1.bf16.msra.mxu0 0
  %256 = vmatprep.subr.bf16.mxu0 0
  %257 = vmatpush1.bf16.msra.mxu0 0
  %258 = vmatprep.subr.bf16.mxu0 0
  %259 = vmatpush1.bf16.msra.mxu0 0
  %260 = vmatprep.subr.bf16.mxu0 0
  %261 = vmatpush1.bf16.msra.mxu0 0
  %262 = vmatprep.subr.bf16.mxu0 0
  %263 = vmatpush1.bf16.msra.mxu0 0
  %264 = vmatprep.subr.bf16.mxu0 0
  %265 = vmatpush1.bf16.msra.mxu0 0
  %266 = vmatprep.subr.bf16.mxu0 0
  %267 = vmatpush1.bf16.msra.mxu0 0
  %268 = vmatprep.mubr.bf16.mxu0 0
  %269 = vmatmul.mubr.bf16.gmra.mrb[0].mxu0 %v21
  %v270 = vpop.f32.mrb[0].mxu0
  %v271 = vadd.f32 %v59, %v270
  %v272 = vpop.f32.mrb[0].mxu0
  %v273 = vadd.f32 %v63, %v272
  %v274 = vpop.f32.mrb[0].mxu0
  %v275 = vpop.f32.mrb[0].mxu0
  %276 = vdwg.mxu0
  %277 = vmatprep.subr.bf16.mxu0 %v175
  %278 = vmatpush1.bf16.msra.mxu0 %v174
  %279 = vmatprep.subr.bf16.mxu0 %v179
  %280 = vmatpush1.bf16.msra.mxu0 %v178
  %281 = vmatprep.subr.bf16.mxu0 %v183
  %282 = vmatpush1.bf16.msra.mxu0 %v182
  %283 = vmatprep.subr.bf16.mxu0 %v187
  %284 = vmatpush1.bf16.msra.mxu0 %v186
  %285 = vmatprep.subr.bf16.mxu0 %v191
  %286 = vmatpush1.bf16.msra.mxu0 %v190
  %287 = vmatprep.subr.bf16.mxu0 %v195
  %288 = vmatpush1.bf16.msra.mxu0 %v194
  %289 = vmatprep.subr.bf16.mxu0 %v199
  %290 = vmatpush1.bf16.msra.mxu0 %v198
  %291 = vmatprep.subr.bf16.mxu0 %v203
  %292 = vmatpush1.bf16.msra.mxu0 %v202
  %293 = vmatprep.subr.bf16.mxu0 0
  %294 = vmatpush1.bf16.msra.mxu0 0
  %295 = vmatprep.subr.bf16.mxu0 0
  %296 = vmatpush1.bf16.msra.mxu0 0
  %297 = vmatprep.subr.bf16.mxu0 0
  %298 = vmatpush1.bf16.msra.mxu0 0
  %299 = vmatprep.subr.bf16.mxu0 0
  %300 = vmatpush1.bf16.msra.mxu0 0
  %301 = vmatprep.subr.bf16.mxu0 0
  %302 = vmatpush1.bf16.msra.mxu0 0
  %303 = vmatprep.subr.bf16.mxu0 0
  %304 = vmatpush1.bf16.msra.mxu0 0
  %305 = vmatprep.subr.bf16.mxu0 0
  %306 = vmatpush1.bf16.msra.mxu0 0
  %307 = vmatprep.subr.bf16.mxu0 0
  %308 = vmatpush1.bf16.msra.mxu0 0
  %309 = vmatprep.mubr.bf16.mxu0 0
  %310 = vmatmul.mubr.bf16.gmra.mrb[0].mxu0 %v21
  %v311 = vpop.f32.mrb[0].mxu0
  %v312 = vadd.f32 %v67, %v311
  %v313 = vpop.f32.mrb[0].mxu0
  %v314 = vadd.f32 %v71, %v313
  %v315 = vpop.f32.mrb[0].mxu0
  %v316 = vpop.f32.mrb[0].mxu0
  %317 = vdwg.mxu0
  %v318 = vmax.f32 %v271, 0.0
  %v319 = vmax.f32 %v273, 0.0
  %v320 = vmax.f32 %v312, 0.0
  %v321 = vmax.f32 %v314, 0.0
  %v322 = vpack.c.bf16 %v318, %v318
  %v323 = vpack.c.bf16 %v319, %v319
  %v324 = vpack.c.bf16 %v320, %v320
  %v325 = vpack.c.bf16 %v321, %v321
  %v326 = vld [vmem:[%s3] sm:$0xf]
  %v327 = vld [vmem:[%s3 + $0x4] sm:$0xf]
  %v328 = vld [vmem:[%s3 + $0x8] sm:$0xf]
  %v329 = vld [vmem:[%s3 + $0xc] sm:$0xf]
  %v330 = vld [vmem:[%s3 + $0x10] sm:$0xf]
  %v331 = vld [vmem:[%s3 + $0x14] sm:$0xf]
  %v332 = vld [vmem:[%s3 + $0x18] sm:$0xf]
  %v333 = vld [vmem:[%s3 + $0x1c] sm:$0xf]
  %v334 = vld [vmem:[%s3 + $0x20] sm:$0xf]
  %v335 = vld [vmem:[%s3 + $0x24] sm:$0xf]
  %v336 = vld [vmem:[%s3 + $0x28] sm:$0xf]
  %v337 = vld [vmem:[%s3 + $0x2c] sm:$0xf]
  %v338 = vld [vmem:[%s3 + $0x30] sm:$0xf]
  %v339 = vld [vmem:[%s3 + $0x34] sm:$0xf]
  %v340 = vld [vmem:[%s3 + $0x38] sm:$0xf]
  %v341 = vld [vmem:[%s3 + $0x3c] sm:$0xf]
  %v342 = vld [vmem:[%s3 + $0x40] sm:$0xf]
  %v343 = vld [vmem:[%s3 + $0x44] sm:$0xf]
  %v344 = vld [vmem:[%s3 + $0x48] sm:$0xf]
  %v345 = vld [vmem:[%s3 + $0x4c] sm:$0xf]
  %v346 = vld [vmem:[%s3 + $0x50] sm:$0xf]
  %v347 = vld [vmem:[%s3 + $0x54] sm:$0xf]
  %v348 = vld [vmem:[%s3 + $0x58] sm:$0xf]
  %v349 = vld [vmem:[%s3 + $0x5c] sm:$0xf]
  %v350 = vld [vmem:[%s3 + $0x60] sm:$0xf]
  %v351 = vld [vmem:[%s3 + $0x64] sm:$0xf]
  %v352 = vld [vmem:[%s3 + $0x68] sm:$0xf]
  %v353 = vld [vmem:[%s3 + $0x6c] sm:$0xf]
  %v354 = vld [vmem:[%s3 + $0x70] sm:$0xf]
  %v355 = vld [vmem:[%s3 + $0x74] sm:$0xf]
  %v356 = vld [vmem:[%s3 + $0x78] sm:$0xf]
  %v357 = vld [vmem:[%s3 + $0x7c] sm:$0xf]
  %v358 = vld [vmem:[%s3 + $0x80] sm:$0xf]
  %v359 = vld [vmem:[%s3 + $0x84] sm:$0xf]
  %v360 = vld [vmem:[%s3 + $0x88] sm:$0xf]
  %v361 = vld [vmem:[%s3 + $0x8c] sm:$0xf]
  %v362 = vld [vmem:[%s3 + $0x90] sm:$0xf]
  %v363 = vld [vmem:[%s3 + $0x94] sm:$0xf]
  %v364 = vld [vmem:[%s3 + $0x98] sm:$0xf]
  %v365 = vld [vmem:[%s3 + $0x9c] sm:$0xf]
  %v366 = vld [vmem:[%s3 + $0xa0] sm:$0xf]
  %v367 = vld [vmem:[%s3 + $0xa4] sm:$0xf]
  %v368 = vld [vmem:[%s3 + $0xa8] sm:$0xf]
  %v369 = vld [vmem:[%s3 + $0xac] sm:$0xf]
  %v370 = vld [vmem:[%s3 + $0xb0] sm:$0xf]
  %v371 = vld [vmem:[%s3 + $0xb4] sm:$0xf]
  %v372 = vld [vmem:[%s3 + $0xb8] sm:$0xf]
  %v373 = vld [vmem:[%s3 + $0xbc] sm:$0xf]
  %v374 = vld [vmem:[%s3 + $0xc0] sm:$0xf]
  %v375 = vld [vmem:[%s3 + $0xc4] sm:$0xf]
  %v376 = vld [vmem:[%s3 + $0xc8] sm:$0xf]
  %v377 = vld [vmem:[%s3 + $0xcc] sm:$0xf]
  %v378 = vld [vmem:[%s3 + $0xd0] sm:$0xf]
  %v379 = vld [vmem:[%s3 + $0xd4] sm:$0xf]
  %v380 = vld [vmem:[%s3 + $0xd8] sm:$0xf]
  %v381 = vld [vmem:[%s3 + $0xdc] sm:$0xf]
  %v382 = vld [vmem:[%s3 + $0xe0] sm:$0xf]
  %v383 = vld [vmem:[%s3 + $0xe4] sm:$0xf]
  %v384 = vld [vmem:[%s3 + $0xe8] sm:$0xf]
  %v385 = vld [vmem:[%s3 + $0xec] sm:$0xf]
  %v386 = vld [vmem:[%s3 + $0xf0] sm:$0xf]
  %v387 = vld [vmem:[%s3 + $0xf4] sm:$0xf]
  %v388 = vld [vmem:[%s3 + $0xf8] sm:$0xf]
  %v389 = vld [vmem:[%s3 + $0xfc] sm:$0xf]
  %v390 = vld [vmem:[%s4] sm:$0x1]
  %v392 = vlaneseq
  %v393 = vshrl.u32 %v392, 7
  %v394 = vsub.s32 0, %v393
  %v395 = vrot.slane %v390, %v394
  %v461 = vunpack.c.l.b16 %v326
  %v462 = vunpack.c.l.b16 %v327
  %v463 = vunpack.c.l.b16 %v328
  %v464 = vunpack.c.l.b16 %v329
  %v465 = vunpack.c.l.b16 %v330
  %v466 = vunpack.c.l.b16 %v331
  %v467 = vunpack.c.l.b16 %v332
  %v468 = vunpack.c.l.b16 %v333
  %v469 = vunpack.c.l.b16 %v334
  %v470 = vunpack.c.l.b16 %v335
  %v471 = vunpack.c.l.b16 %v336
  %v472 = vunpack.c.l.b16 %v337
  %v473 = vunpack.c.l.b16 %v338
  %v474 = vunpack.c.l.b16 %v339
  %v475 = vunpack.c.l.b16 %v340
  %v476 = vunpack.c.l.b16 %v341
  %v477 = vunpack.c.l.b16 %v342
  %v478 = vunpack.c.l.b16 %v343
  %v479 = vunpack.c.l.b16 %v344
  %v480 = vunpack.c.l.b16 %v345
  %v481 = vunpack.c.l.b16 %v346
  %v482 = vunpack.c.l.b16 %v347
  %v483 = vunpack.c.l.b16 %v348
  %v484 = vunpack.c.l.b16 %v349
  %v485 = vunpack.c.l.b16 %v350
  %v486 = vunpack.c.l.b16 %v351
  %v487 = vunpack.c.l.b16 %v352
  %v488 = vunpack.c.l.b16 %v353
  %v489 = vunpack.c.l.b16 %v354
  %v490 = vunpack.c.l.b16 %v355
  %v491 = vunpack.c.l.b16 %v356
  %v492 = vunpack.c.l.b16 %v357
  %v493 = vunpack.c.l.b16 %v358
  %v494 = vunpack.c.l.b16 %v359
  %v495 = vunpack.c.l.b16 %v360
  %v496 = vunpack.c.l.b16 %v361
  %v497 = vunpack.c.l.b16 %v362
  %v498 = vunpack.c.l.b16 %v363
  %v499 = vunpack.c.l.b16 %v364
  %v500 = vunpack.c.l.b16 %v365
  %v501 = vunpack.c.l.b16 %v366
  %v502 = vunpack.c.l.b16 %v367
  %v503 = vunpack.c.l.b16 %v368
  %v504 = vunpack.c.l.b16 %v369
  %v505 = vunpack.c.l.b16 %v370
  %v506 = vunpack.c.l.b16 %v371
  %v507 = vunpack.c.l.b16 %v372
  %v508 = vunpack.c.l.b16 %v373
  %v509 = vunpack.c.l.b16 %v374
  %v510 = vunpack.c.l.b16 %v375
  %v511 = vunpack.c.l.b16 %v376
  %v512 = vunpack.c.l.b16 %v377
  %v513 = vunpack.c.l.b16 %v378
  %v514 = vunpack.c.l.b16 %v379
  %v515 = vunpack.c.l.b16 %v380
  %v516 = vunpack.c.l.b16 %v381
  %v517 = vunpack.c.l.b16 %v382
  %v518 = vunpack.c.l.b16 %v383
  %v519 = vunpack.c.l.b16 %v384
  %v520 = vunpack.c.l.b16 %v385
  %v521 = vunpack.c.l.b16 %v386
  %v522 = vunpack.c.l.b16 %v387
  %v523 = vunpack.c.l.b16 %v388
  %v524 = vunpack.c.l.b16 %v389
  %v525 = vpack.c.b16 %v462, %v461
  %v526 = vpack.c.b16 %v464, %v463
  %v527 = vpack.c.b16 %v466, %v465
  %v528 = vpack.c.b16 %v468, %v467
  %v529 = vpack.c.b16 %v470, %v469
  %v530 = vpack.c.b16 %v472, %v471
  %v531 = vpack.c.b16 %v474, %v473
  %v532 = vpack.c.b16 %v476, %v475
  %v533 = vpack.c.b16 %v478, %v477
  %v534 = vpack.c.b16 %v480, %v479
  %v535 = vpack.c.b16 %v482, %v481
  %v536 = vpack.c.b16 %v484, %v483
  %v537 = vpack.c.b16 %v486, %v485
  %v538 = vpack.c.b16 %v488, %v487
  %v539 = vpack.c.b16 %v490, %v489
  %v540 = vpack.c.b16 %v492, %v491
  %v541 = vpack.c.b16 %v494, %v493
  %v542 = vpack.c.b16 %v496, %v495
  %v543 = vpack.c.b16 %v498, %v497
  %v544 = vpack.c.b16 %v500, %v499
  %v545 = vpack.c.b16 %v502, %v501
  %v546 = vpack.c.b16 %v504, %v503
  %v547 = vpack.c.b16 %v506, %v505
  %v548 = vpack.c.b16 %v508, %v507
  %v549 = vpack.c.b16 %v510, %v509
  %v550 = vpack.c.b16 %v512, %v511
  %v551 = vpack.c.b16 %v514, %v513
  %v552 = vpack.c.b16 %v516, %v515
  %v553 = vpack.c.b16 %v518, %v517
  %v554 = vpack.c.b16 %v520, %v519
  %v555 = vpack.c.b16 %v522, %v521
  %v556 = vpack.c.b16 %v524, %v523
  %589 = vmatprep.subr.bf16.mxu0 0
  %590 = vmatpush1.bf16.msra.mxu0 %v525
  %591 = vmatprep.subr.bf16.mxu0 0
  %592 = vmatpush1.bf16.msra.mxu0 %v526
  %593 = vmatprep.subr.bf16.mxu0 0
  %594 = vmatpush1.bf16.msra.mxu0 %v527
  %595 = vmatprep.subr.bf16.mxu0 0
  %596 = vmatpush1.bf16.msra.mxu0 %v528
  %597 = vmatprep.subr.bf16.mxu0 0
  %598 = vmatpush1.bf16.msra.mxu0 %v529
  %599 = vmatprep.subr.bf16.mxu0 0
  %600 = vmatpush1.bf16.msra.mxu0 %v530
  %601 = vmatprep.subr.bf16.mxu0 0
  %602 = vmatpush1.bf16.msra.mxu0 %v531
  %603 = vmatprep.subr.bf16.mxu0 0
  %604 = vmatpush1.bf16.msra.mxu0 %v532
  %605 = vmatprep.subr.bf16.mxu0 0
  %606 = vmatpush1.bf16.msra.mxu0 %v533
  %607 = vmatprep.subr.bf16.mxu0 0
  %608 = vmatpush1.bf16.msra.mxu0 %v534
  %609 = vmatprep.subr.bf16.mxu0 0
  %610 = vmatpush1.bf16.msra.mxu0 %v535
  %611 = vmatprep.subr.bf16.mxu0 0
  %612 = vmatpush1.bf16.msra.mxu0 %v536
  %613 = vmatprep.subr.bf16.mxu0 0
  %614 = vmatpush1.bf16.msra.mxu0 %v537
  %615 = vmatprep.subr.bf16.mxu0 0
  %616 = vmatpush1.bf16.msra.mxu0 %v538
  %617 = vmatprep.subr.bf16.mxu0 0
  %618 = vmatpush1.bf16.msra.mxu0 %v539
  %619 = vmatprep.subr.bf16.mxu0 0
  %620 = vmatpush1.bf16.msra.mxu0 %v540
  %621 = vmatprep.mubr.bf16.mxu0 %v323
  %622 = vmatmul.mubr.bf16.gmra.mrb[0].mxu0 %v322
  %v623 = vpop.f32.mrb[0].mxu0
  %v624 = vadd.f32 %v395, %v623
  %v625 = vpop.f32.mrb[0].mxu0
  %v626 = vpop.f32.mrb[0].mxu0
  %v627 = vpop.f32.mrb[0].mxu0
  %628 = vdwg.mxu0
  %629 = vmatprep.subr.bf16.mxu0 0
  %630 = vmatpush1.bf16.msra.mxu0 %v541
  %631 = vmatprep.subr.bf16.mxu0 0
  %632 = vmatpush1.bf16.msra.mxu0 %v542
  %633 = vmatprep.subr.bf16.mxu0 0
  %634 = vmatpush1.bf16.msra.mxu0 %v543
  %635 = vmatprep.subr.bf16.mxu0 0
  %636 = vmatpush1.bf16.msra.mxu0 %v544
  %637 = vmatprep.subr.bf16.mxu0 0
  %638 = vmatpush1.bf16.msra.mxu0 %v545
  %639 = vmatprep.subr.bf16.mxu0 0
  %640 = vmatpush1.bf16.msra.mxu0 %v546
  %641 = vmatprep.subr.bf16.mxu0 0
  %642 = vmatpush1.bf16.msra.mxu0 %v547
  %643 = vmatprep.subr.bf16.mxu0 0
  %644 = vmatpush1.bf16.msra.mxu0 %v548
  %645 = vmatprep.subr.bf16.mxu0 0
  %646 = vmatpush1.bf16.msra.mxu0 %v549
  %647 = vmatprep.subr.bf16.mxu0 0
  %648 = vmatpush1.bf16.msra.mxu0 %v550
  %649 = vmatprep.subr.bf16.mxu0 0
  %650 = vmatpush1.bf16.msra.mxu0 %v551
  %651 = vmatprep.subr.bf16.mxu0 0
  %652 = vmatpush1.bf16.msra.mxu0 %v552
  %653 = vmatprep.subr.bf16.mxu0 0
  %654 = vmatpush1.bf16.msra.mxu0 %v553
  %655 = vmatprep.subr.bf16.mxu0 0
  %656 = vmatpush1.bf16.msra.mxu0 %v554
  %657 = vmatprep.subr.bf16.mxu0 0
  %658 = vmatpush1.bf16.msra.mxu0 %v555
  %659 = vmatprep.subr.bf16.mxu0 0
  %660 = vmatpush1.bf16.msra.mxu0 %v556
  %661 = vmatprep.mubr.bf16.mxu0 %v325
  %662 = vmatmul.mubr.bf16.gmra.mrb[0].mxu0 %v324
  %v663 = vpop.f32.mrb[0].mxu0
  %v664 = vadd.f32 %v624, %v663
  %v665 = vpop.f32.mrb[0].mxu0
  %v666 = vpop.f32.mrb[0].mxu0
  %v667 = vpop.f32.mrb[0].mxu0
  %668 = vdwg.mxu0
  %669 = vst [vmem:[%s5] sm:$0xff] %v664
  // Predicated region
  $region22: #{nature_cnn_forward.7} parent=0 // pred_check
    _
  $region23: #{nature_cnn_forward.7} parent=0 // pred_check_branch
    %671 = sbr.rel (0) target = $region25
  $region24: #{nature_cnn_forward.7} parent=0 // pred_region
    _
  $region25: #{nature_cnn_forward.7} parent=0 // pred_fallthru
    _
  // Predicated region
  $region26: #{nature_cnn_forward.7} parent=0 // pred_check
    _
  $region27: #{nature_cnn_forward.7} parent=0 // pred_check_branch
    %673 = sbr.rel (0) target = $region29
  $region28: #{nature_cnn_forward.7} parent=0 // pred_region
    _
  $region29: #{nature_cnn_forward.7} parent=0 // pred_fallthru
    _

// kernel: nature_cnn_forward.6
$region0: #{nature_cnn_forward.6}
  #allocation0 [shape = 'u32[]', space=smem, size = 0x4, offset = 0x4, fixed_abs, tag = 'smem constant byte address 0x4 - core index']
  #allocation1 [shape = 'u32[144,128]{1,0:T(1,128)}', space=vmem, size = 0x12000, scoped, tag = 'internal scratch']
  #allocation2 [shape = 'f32[1]{0:T(128)S(6)}', space=smem, size = 0x200, scoped, tag = 'scoped memory for nature_cnn_forward.6']
  %s0 = inlined_call_operand.vmem [shape: bf16[8,1152], index: 0, kind: input, shape index: {}]
  %s1 = inlined_call_operand.vmem [shape: bf16[1152,128], index: 1, kind: input, shape index: {}]
  %s2 = inlined_call_operand.vmem [shape: f32[1,128], index: 2, kind: input, shape index: {}]
  %s3 = inlined_call_operand.<no memory space> [shape: f32[1], index: 3, kind: input, shape index: {}]
  %s4 = inlined_call_operand.vmem [shape: bf16[8,128], index: 4, kind: output, shape index: {}]
  %s5 = sld [smem:[#allocation0]]
  $region26: #{nature_cnn_forward.6} parent=0
    _
  %s7 = ssub.s32 1, %s5
  %s8 = scalar_select 0, %s7, %s5
  %9 = sst [smem:[#allocation2]] %s3
  // Predicated region
  $region2: #{nature_cnn_forward.6} parent=0 // pred_check
    _
  $region3: #{nature_cnn_forward.6} parent=0 // pred_check_branch
    %11 = sbr.rel (0) target = $region5
  $region4: #{nature_cnn_forward.6} parent=0 // pred_region
    _
  $region5: #{nature_cnn_forward.6} parent=0 // pred_fallthru
    _
  // Predicated region
  $region6: #{nature_cnn_forward.6} parent=0 // pred_check
    _
  $region7: #{nature_cnn_forward.6} parent=0 // pred_check_branch
    %13 = sbr.rel (0) target = $region9
  $region8: #{nature_cnn_forward.6} parent=0 // pred_region
    _
  $region9: #{nature_cnn_forward.6} parent=0 // pred_fallthru
    _
  // Predicated region
  $region10: #{nature_cnn_forward.6} parent=0 // pred_check
    _
  $region11: #{nature_cnn_forward.6} parent=0 // pred_check_branch
    %15 = sbr.rel (0) target = $region13
  $region12: #{nature_cnn_forward.6} parent=0 // pred_region
    _
  $region13: #{nature_cnn_forward.6} parent=0 // pred_fallthru
    _
  // Predicated region
  $region14: #{nature_cnn_forward.6} parent=0 // pred_check
    _
  $region15: #{nature_cnn_forward.6} parent=0 // pred_check_branch
    %17 = sbr.rel (0) target = $region17
  $region16: #{nature_cnn_forward.6} parent=0 // pred_region
    _
  $region17: #{nature_cnn_forward.6} parent=0 // pred_fallthru
    _
  %v19 = vld [vmem:[%s0] sm:$0xff]
  %v20 = vld [vmem:[%s0 + $0x8] sm:$0xff]
  %v21 = vld [vmem:[%s0 + $0x10] sm:$0xff]
  %v22 = vld [vmem:[%s0 + $0x18] sm:$0xff]
  %v23 = vld [vmem:[%s0 + $0x20] sm:$0xf]
  %v24 = vld [vmem:[%s1] sm:$0xf]
  %v25 = vld [vmem:[%s1 + $0x4] sm:$0xf]
  %v26 = vld [vmem:[%s1 + $0x8] sm:$0xf]
  %v27 = vld [vmem:[%s1 + $0xc] sm:$0xf]
  %v28 = vld [vmem:[%s1 + $0x10] sm:$0xf]
  %v29 = vld [vmem:[%s1 + $0x14] sm:$0xf]
  %v30 = vld [vmem:[%s1 + $0x18] sm:$0xf]
  %v31 = vld [vmem:[%s1 + $0x1c] sm:$0xf]
  %v32 = vld [vmem:[%s1 + $0x20] sm:$0xf]
  %v33 = vld [vmem:[%s1 + $0x24] sm:$0xf]
  %v34 = vld [vmem:[%s1 + $0x28] sm:$0xf]
  %v35 = vld [vmem:[%s1 + $0x2c] sm:$0xf]
  %v36 = vld [vmem:[%s1 + $0x30] sm:$0xf]
  %v37 = vld [vmem:[%s1 + $0x34] sm:$0xf]
  %v38 = vld [vmem:[%s1 + $0x38] sm:$0xf]
  %v39 = vld [vmem:[%s1 + $0x3c] sm:$0xf]
  %v40 = vld [vmem:[%s1 + $0x40] sm:$0xf]
  %v41 = vld [vmem:[%s1 + $0x44] sm:$0xf]
  %v42 = vld [vmem:[%s1 + $0x48] sm:$0xf]
  %v43 = vld [vmem:[%s1 + $0x4c] sm:$0xf]
  %v44 = vld [vmem:[%s1 + $0x50] sm:$0xf]
  %v45 = vld [vmem:[%s1 + $0x54] sm:$0xf]
  %v46 = vld [vmem:[%s1 + $0x58] sm:$0xf]
  %v47 = vld [vmem:[%s1 + $0x5c] sm:$0xf]
  %v48 = vld [vmem:[%s1 + $0x60] sm:$0xf]
  %v49 = vld [vmem:[%s1 + $0x64] sm:$0xf]
  %v50 = vld [vmem:[%s1 + $0x68] sm:$0xf]
  %v51 = vld [vmem:[%s1 + $0x6c] sm:$0xf]
  %v52 = vld [vmem:[%s1 + $0x70] sm:$0xf]
  %v53 = vld [vmem:[%s1 + $0x74] sm:$0xf]
  %v54 = vld [vmem:[%s1 + $0x78] sm:$0xf]
  %v55 = vld [vmem:[%s1 + $0x7c] sm:$0xf]
  %v56 = vld [vmem:[%s1 + $0x80] sm:$0xf]
  %v57 = vld [vmem:[%s1 + $0x84] sm:$0xf]
  %v58 = vld [vmem:[%s1 + $0x88] sm:$0xf]
  %v59 = vld [vmem:[%s1 + $0x8c] sm:$0xf]
  %v60 = vld [vmem:[%s1 + $0x90] sm:$0xf]
  %v61 = vld [vmem:[%s1 + $0x94] sm:$0xf]
  %v62 = vld [vmem:[%s1 + $0x98] sm:$0xf]
  %v63 = vld [vmem:[%s1 + $0x9c] sm:$0xf]
  %v64 = vld [vmem:[%s1 + $0xa0] sm:$0xf]
  %v65 = vld [vmem:[%s1 + $0xa4] sm:$0xf]
  %v66 = vld [vmem:[%s1 + $0xa8] sm:$0xf]
  %v67 = vld [vmem:[%s1 + $0xac] sm:$0xf]
  %v68 = vld [vmem:[%s1 + $0xb0] sm:$0xf]
  %v69 = vld [vmem:[%s1 + $0xb4] sm:$0xf]
  %v70 = vld [vmem:[%s1 + $0xb8] sm:$0xf]
  %v71 = vld [vmem:[%s1 + $0xbc] sm:$0xf]
  %v72 = vld [vmem:[%s1 + $0xc0] sm:$0xf]
  %v73 = vld [vmem:[%s1 + $0xc4] sm:$0xf]
  %v74 = vld [vmem:[%s1 + $0xc8] sm:$0xf]
  %v75 = vld [vmem:[%s1 + $0xcc] sm:$0xf]
  %v76 = vld [vmem:[%s1 + $0xd0] sm:$0xf]
  %v77 = vld [vmem:[%s1 + $0xd4] sm:$0xf]
  %v78 = vld [vmem:[%s1 + $0xd8] sm:$0xf]
  %v79 = vld [vmem:[%s1 + $0xdc] sm:$0xf]
  %v80 = vld [vmem:[%s1 + $0xe0] sm:$0xf]
  %v81 = vld [vmem:[%s1 + $0xe4] sm:$0xf]
  %v82 = vld [vmem:[%s1 + $0xe8] sm:$0xf]
  %v83 = vld [vmem:[%s1 + $0xec] sm:$0xf]
  %v84 = vld [vmem:[%s1 + $0xf0] sm:$0xf]
  %v85 = vld [vmem:[%s1 + $0xf4] sm:$0xf]
  %v86 = vld [vmem:[%s1 + $0xf8] sm:$0xf]
  %v87 = vld [vmem:[%s1 + $0xfc] sm:$0xf]
  %v88 = vld [vmem:[%s1 + $0x100] sm:$0xf]
  %v89 = vld [vmem:[%s1 + $0x104] sm:$0xf]
  %v90 = vld [vmem:[%s1 + $0x108] sm:$0xf]
  %v91 = vld [vmem:[%s1 + $0x10c] sm:$0xf]
  %v92 = vld [vmem:[%s1 + $0x110] sm:$0xf]
  %v93 = vld [vmem:[%s1 + $0x114] sm:$0xf]
  %v94 = vld [vmem:[%s1 + $0x118] sm:$0xf]
  %v95 = vld [vmem:[%s1 + $0x11c] sm:$0xf]
  %v96 = vld [vmem:[%s1 + $0x120] sm:$0xf]
  %v97 = vld [vmem:[%s1 + $0x124] sm:$0xf]
  %v98 = vld [vmem:[%s1 + $0x128] sm:$0xf]
  %v99 = vld [vmem:[%s1 + $0x12c] sm:$0xf]
  %v100 = vld [vmem:[%s1 + $0x130] sm:$0xf]
  %v101 = vld [vmem:[%s1 + $0x134] sm:$0xf]
  %v102 = vld [vmem:[%s1 + $0x138] sm:$0xf]
  %v103 = vld [vmem:[%s1 + $0x13c] sm:$0xf]
  %v104 = vld [vmem:[%s1 + $0x140] sm:$0xf]
  %v105 = vld [vmem:[%s1 + $0x144] sm:$0xf]
  %v106 = vld [vmem:[%s1 + $0x148] sm:$0xf]
  %v107 = vld [vmem:[%s1 + $0x14c] sm:$0xf]
  %v108 = vld [vmem:[%s1 + $0x150] sm:$0xf]
  %v109 = vld [vmem:[%s1 + $0x154] sm:$0xf]
  %v110 = vld [vmem:[%s1 + $0x158] sm:$0xf]
  %v111 = vld [vmem:[%s1 + $0x15c] sm:$0xf]
  %v112 = vld [vmem:[%s1 + $0x160] sm:$0xf]
  %v113 = vld [vmem:[%s1 + $0x164] sm:$0xf]
  %v114 = vld [vmem:[%s1 + $0x168] sm:$0xf]
  %v115 = vld [vmem:[%s1 + $0x16c] sm:$0xf]
  %v116 = vld [vmem:[%s1 + $0x170] sm:$0xf]
  %v117 = vld [vmem:[%s1 + $0x174] sm:$0xf]
  %v118 = vld [vmem:[%s1 + $0x178] sm:$0xf]
  %v119 = vld [vmem:[%s1 + $0x17c] sm:$0xf]
  %v120 = vld [vmem:[%s1 + $0x180] sm:$0xf]
  %v121 = vld [vmem:[%s1 + $0x184] sm:$0xf]
  %v122 = vld [vmem:[%s1 + $0x188] sm:$0xf]
  %v123 = vld [vmem:[%s1 + $0x18c] sm:$0xf]
  %v124 = vld [vmem:[%s1 + $0x190] sm:$0xf]
  %v125 = vld [vmem:[%s1 + $0x194] sm:$0xf]
  %v126 = vld [vmem:[%s1 + $0x198] sm:$0xf]
  %v127 = vld [vmem:[%s1 + $0x19c] sm:$0xf]
  %v128 = vld [vmem:[%s1 + $0x1a0] sm:$0xf]
  %v129 = vld [vmem:[%s1 + $0x1a4] sm:$0xf]
  %v130 = vld [vmem:[%s1 + $0x1a8] sm:$0xf]
  %v131 = vld [vmem:[%s1 + $0x1ac] sm:$0xf]
  %v132 = vld [vmem:[%s1 + $0x1b0] sm:$0xf]
  %v133 = vld [vmem:[%s1 + $0x1b4] sm:$0xf]
  %v134 = vld [vmem:[%s1 + $0x1b8] sm:$0xf]
  %v135 = vld [vmem:[%s1 + $0x1bc] sm:$0xf]
  %v136 = vld [vmem:[%s1 + $0x1c0] sm:$0xf]
  %v137 = vld [vmem:[%s1 + $0x1c4] sm:$0xf]
  %v138 = vld [vmem:[%s1 + $0x1c8] sm:$0xf]
  %v139 = vld [vmem:[%s1 + $0x1cc] sm:$0xf]
  %v140 = vld [vmem:[%s1 + $0x1d0] sm:$0xf]
  %v141 = vld [vmem:[%s1 + $0x1d4] sm:$0xf]
  %v142 = vld [vmem:[%s1 + $0x1d8] sm:$0xf]
  %v143 = vld [vmem:[%s1 + $0x1dc] sm:$0xf]
  %v144 = vld [vmem:[%s1 + $0x1e0] sm:$0xf]
  %v145 = vld [vmem:[%s1 + $0x1e4] sm:$0xf]
  %v146 = vld [vmem:[%s1 + $0x1e8] sm:$0xf]
  %v147 = vld [vmem:[%s1 + $0x1ec] sm:$0xf]
  %v148 = vld [vmem:[%s1 + $0x1f0] sm:$0xf]
  %v149 = vld [vmem:[%s1 + $0x1f4] sm:$0xf]
  %v150 = vld [vmem:[%s1 + $0x1f8] sm:$0xf]
  %v151 = vld [vmem:[%s1 + $0x1fc] sm:$0xf]
  %v152 = vld [vmem:[%s1 + $0x200] sm:$0xf]
  %v153 = vld [vmem:[%s1 + $0x204] sm:$0xf]
  %v154 = vld [vmem:[%s1 + $0x208] sm:$0xf]
  %v155 = vld [vmem:[%s1 + $0x20c] sm:$0xf]
  %v156 = vld [vmem:[%s1 + $0x210] sm:$0xf]
  %v157 = vld [vmem:[%s1 + $0x214] sm:$0xf]
  %v158 = vld [vmem:[%s1 + $0x218] sm:$0xf]
  %v159 = vld [vmem:[%s1 + $0x21c] sm:$0xf]
  %v160 = vld [vmem:[%s1 + $0x220] sm:$0xf]
  %v161 = vld [vmem:[%s1 + $0x224] sm:$0xf]
  %v162 = vld [vmem:[%s1 + $0x228] sm:$0xf]
  %v163 = vld [vmem:[%s1 + $0x22c] sm:$0xf]
  %v164 = vld [vmem:[%s1 + $0x230] sm:$0xf]
  %v165 = vld [vmem:[%s1 + $0x234] sm:$0xf]
  %v166 = vld [vmem:[%s1 + $0x238] sm:$0xf]
  %v167 = vld [vmem:[%s1 + $0x23c] sm:$0xf]
  %v173 = vunpack.c.l.b16 %v19
  %v174 = vunpack.c.h.b16 %v19
  %v175 = vunpack.c.l.b16 %v20
  %v176 = vunpack.c.h.b16 %v20
  %v177 = vunpack.c.l.b16 %v21
  %v178 = vunpack.c.h.b16 %v21
  %v179 = vunpack.c.l.b16 %v22
  %v180 = vunpack.c.h.b16 %v22
  %v181 = vunpack.c.l.b16 %v23
  %v182 = vpack.c.b16 %v173, %v173
  %v183 = vpack.c.b16 %v174, %v174
  %v184 = vpack.c.b16 %v175, %v175
  %v185 = vpack.c.b16 %v176, %v176
  %v186 = vpack.c.b16 %v177, %v177
  %v187 = vpack.c.b16 %v178, %v178
  %v188 = vpack.c.b16 %v179, %v179
  %v189 = vpack.c.b16 %v180, %v180
  %v190 = vpack.c.b16 %v181, %v181
  %v344 = vunpack.c.l.b16 %v24
  %v345 = vunpack.c.l.b16 %v25
  %v346 = vunpack.c.l.b16 %v26
  %v347 = vunpack.c.l.b16 %v27
  %v348 = vunpack.c.l.b16 %v28
  %v349 = vunpack.c.l.b16 %v29
  %v350 = vunpack.c.l.b16 %v30
  %v351 = vunpack.c.l.b16 %v31
  %v352 = vunpack.c.l.b16 %v32
  %v353 = vunpack.c.l.b16 %v33
  %v354 = vunpack.c.l.b16 %v34
  %v355 = vunpack.c.l.b16 %v35
  %v356 = vunpack.c.l.b16 %v36
  %v357 = vunpack.c.l.b16 %v37
  %v358 = vunpack.c.l.b16 %v38
  %v359 = vunpack.c.l.b16 %v39
  %v360 = vunpack.c.l.b16 %v40
  %v361 = vunpack.c.l.b16 %v41
  %v362 = vunpack.c.l.b16 %v42
  %v363 = vunpack.c.l.b16 %v43
  %v364 = vunpack.c.l.b16 %v44
  %v365 = vunpack.c.l.b16 %v45
  %v366 = vunpack.c.l.b16 %v46
  %v367 = vunpack.c.l.b16 %v47
  %v368 = vunpack.c.l.b16 %v48
  %v369 = vunpack.c.l.b16 %v49
  %v370 = vunpack.c.l.b16 %v50
  %v371 = vunpack.c.l.b16 %v51
  %v372 = vunpack.c.l.b16 %v52
  %v373 = vunpack.c.l.b16 %v53
  %v374 = vunpack.c.l.b16 %v54
  %v375 = vunpack.c.l.b16 %v55
  %v376 = vunpack.c.l.b16 %v56
  %v377 = vunpack.c.l.b16 %v57
  %v378 = vunpack.c.l.b16 %v58
  %v379 = vunpack.c.l.b16 %v59
  %v380 = vunpack.c.l.b16 %v60
  %v381 = vunpack.c.l.b16 %v61
  %v382 = vunpack.c.l.b16 %v62
  %v383 = vunpack.c.l.b16 %v63
  %v384 = vunpack.c.l.b16 %v64
  %v385 = vunpack.c.l.b16 %v65
  %v386 = vunpack.c.l.b16 %v66
  %v387 = vunpack.c.l.b16 %v67
  %v388 = vunpack.c.l.b16 %v68
  %v389 = vunpack.c.l.b16 %v69
  %v390 = vunpack.c.l.b16 %v70
  %v391 = vunpack.c.l.b16 %v71
  %v392 = vunpack.c.l.b16 %v72
  %v393 = vunpack.c.l.b16 %v73
  %v394 = vunpack.c.l.b16 %v74
  %v395 = vunpack.c.l.b16 %v75
  %v396 = vunpack.c.l.b16 %v76
  %v397 = vunpack.c.l.b16 %v77
  %v398 = vunpack.c.l.b16 %v78
  %v399 = vunpack.c.l.b16 %v79
  %v400 = vunpack.c.l.b16 %v80
  %v401 = vunpack.c.l.b16 %v81
  %v402 = vunpack.c.l.b16 %v82
  %v403 = vunpack.c.l.b16 %v83
  %v404 = vunpack.c.l.b16 %v84
  %v405 = vunpack.c.l.b16 %v85
  %v406 = vunpack.c.l.b16 %v86
  %v407 = vunpack.c.l.b16 %v87
  %v408 = vunpack.c.l.b16 %v88
  %v409 = vunpack.c.l.b16 %v89
  %v410 = vunpack.c.l.b16 %v90
  %v411 = vunpack.c.l.b16 %v91
  %v412 = vunpack.c.l.b16 %v92
  %v413 = vunpack.c.l.b16 %v93
  %v414 = vunpack.c.l.b16 %v94
  %v415 = vunpack.c.l.b16 %v95
  %v416 = vunpack.c.l.b16 %v96
  %v417 = vunpack.c.l.b16 %v97
  %v418 = vunpack.c.l.b16 %v98
  %v419 = vunpack.c.l.b16 %v99
  %v420 = vunpack.c.l.b16 %v100
  %v421 = vunpack.c.l.b16 %v101
  %v422 = vunpack.c.l.b16 %v102
  %v423 = vunpack.c.l.b16 %v103
  %v424 = vunpack.c.l.b16 %v104
  %v425 = vunpack.c.l.b16 %v105
  %v426 = vunpack.c.l.b16 %v106
  %v427 = vunpack.c.l.b16 %v107
  %v428 = vunpack.c.l.b16 %v108
  %v429 = vunpack.c.l.b16 %v109
  %v430 = vunpack.c.l.b16 %v110
  %v431 = vunpack.c.l.b16 %v111
  %v432 = vunpack.c.l.b16 %v112
  %v433 = vunpack.c.l.b16 %v113
  %v434 = vunpack.c.l.b16 %v114
  %v435 = vunpack.c.l.b16 %v115
  %v436 = vunpack.c.l.b16 %v116
  %v437 = vunpack.c.l.b16 %v117
  %v438 = vunpack.c.l.b16 %v118
  %v439 = vunpack.c.l.b16 %v119
  %v440 = vunpack.c.l.b16 %v120
  %v441 = vunpack.c.l.b16 %v121
  %v442 = vunpack.c.l.b16 %v122
  %v443 = vunpack.c.l.b16 %v123
  %v444 = vunpack.c.l.b16 %v124
  %v445 = vunpack.c.l.b16 %v125
  %v446 = vunpack.c.l.b16 %v126
  %v447 = vunpack.c.l.b16 %v127
  %v448 = vunpack.c.l.b16 %v128
  %v449 = vunpack.c.l.b16 %v129
  %v450 = vunpack.c.l.b16 %v130
  %v451 = vunpack.c.l.b16 %v131
  %v452 = vunpack.c.l.b16 %v132
  %v453 = vunpack.c.l.b16 %v133
  %v454 = vunpack.c.l.b16 %v134
  %v455 = vunpack.c.l.b16 %v135
  %v456 = vunpack.c.l.b16 %v136
  %v457 = vunpack.c.l.b16 %v137
  %v458 = vunpack.c.l.b16 %v138
  %v459 = vunpack.c.l.b16 %v139
  %v460 = vunpack.c.l.b16 %v140
  %v461 = vunpack.c.l.b16 %v141
  %v462 = vunpack.c.l.b16 %v142
  %v463 = vunpack.c.l.b16 %v143
  %v464 = vunpack.c.l.b16 %v144
  %v465 = vunpack.c.l.b16 %v145
  %v466 = vunpack.c.l.b16 %v146
  %v467 = vunpack.c.l.b16 %v147
  %v468 = vunpack.c.l.b16 %v148
  %v469 = vunpack.c.l.b16 %v149
  %v470 = vunpack.c.l.b16 %v150
  %v471 = vunpack.c.l.b16 %v151
  %v472 = vunpack.c.l.b16 %v152
  %v473 = vunpack.c.l.b16 %v153
  %v474 = vunpack.c.l.b16 %v154
  %v475 = vunpack.c.l.b16 %v155
  %v476 = vunpack.c.l.b16 %v156
  %v477 = vunpack.c.l.b16 %v157
  %v478 = vunpack.c.l.b16 %v158
  %v479 = vunpack.c.l.b16 %v159
  %v480 = vunpack.c.l.b16 %v160
  %v481 = vunpack.c.l.b16 %v161
  %v482 = vunpack.c.l.b16 %v162
  %v483 = vunpack.c.l.b16 %v163
  %v484 = vunpack.c.l.b16 %v164
  %v485 = vunpack.c.l.b16 %v165
  %v486 = vunpack.c.l.b16 %v166
  %v487 = vunpack.c.l.b16 %v167
  %v488 = vpack.c.b16 %v345, %v344
  %v489 = vpack.c.b16 %v347, %v346
  %v490 = vpack.c.b16 %v349, %v348
  %v491 = vpack.c.b16 %v351, %v350
  %v492 = vpack.c.b16 %v353, %v352
  %v493 = vpack.c.b16 %v355, %v354
  %v494 = vpack.c.b16 %v357, %v356
  %v495 = vpack.c.b16 %v359, %v358
  %v496 = vpack.c.b16 %v361, %v360
  %v497 = vpack.c.b16 %v363, %v362
  %v498 = vpack.c.b16 %v365, %v364
  %v499 = vpack.c.b16 %v367, %v366
  %v500 = vpack.c.b16 %v369, %v368
  %v501 = vpack.c.b16 %v371, %v370
  %v502 = vpack.c.b16 %v373, %v372
  %v503 = vpack.c.b16 %v375, %v374
  %v504 = vpack.c.b16 %v377, %v376
  %v505 = vpack.c.b16 %v379, %v378
  %v506 = vpack.c.b16 %v381, %v380
  %v507 = vpack.c.b16 %v383, %v382
  %v508 = vpack.c.b16 %v385, %v384
  %v509 = vpack.c.b16 %v387, %v386
  %v510 = vpack.c.b16 %v389, %v388
  %v511 = vpack.c.b16 %v391, %v390
  %v512 = vpack.c.b16 %v393, %v392
  %v513 = vpack.c.b16 %v395, %v394
  %v514 = vpack.c.b16 %v397, %v396
  %v515 = vpack.c.b16 %v399, %v398
  %v516 = vpack.c.b16 %v401, %v400
  %v517 = vpack.c.b16 %v403, %v402
  %v518 = vpack.c.b16 %v405, %v404
  %v519 = vpack.c.b16 %v407, %v406
  %v520 = vpack.c.b16 %v409, %v408
  %v521 = vpack.c.b16 %v411, %v410
  %v522 = vpack.c.b16 %v413, %v412
  %v523 = vpack.c.b16 %v415, %v414
  %v524 = vpack.c.b16 %v417, %v416
  %v525 = vpack.c.b16 %v419, %v418
  %v526 = vpack.c.b16 %v421, %v420
  %v527 = vpack.c.b16 %v423, %v422
  %v528 = vpack.c.b16 %v425, %v424
  %v529 = vpack.c.b16 %v427, %v426
  %v530 = vpack.c.b16 %v429, %v428
  %v531 = vpack.c.b16 %v431, %v430
  %v532 = vpack.c.b16 %v433, %v432
  %v533 = vpack.c.b16 %v435, %v434
  %v534 = vpack.c.b16 %v437, %v436
  %v535 = vpack.c.b16 %v439, %v438
  %v536 = vpack.c.b16 %v441, %v440
  %v537 = vpack.c.b16 %v443, %v442
  %v538 = vpack.c.b16 %v445, %v444
  %v539 = vpack.c.b16 %v447, %v446
  %v540 = vpack.c.b16 %v449, %v448
  %v541 = vpack.c.b16 %v451, %v450
  %v542 = vpack.c.b16 %v453, %v452
  %v543 = vpack.c.b16 %v455, %v454
  %v544 = vpack.c.b16 %v457, %v456
  %v545 = vpack.c.b16 %v459, %v458
  %v546 = vpack.c.b16 %v461, %v460
  %v547 = vpack.c.b16 %v463, %v462
  %v548 = vpack.c.b16 %v465, %v464
  %v549 = vpack.c.b16 %v467, %v466
  %v550 = vpack.c.b16 %v469, %v468
  %v551 = vpack.c.b16 %v471, %v470
  %v552 = vpack.c.b16 %v473, %v472
  %v553 = vpack.c.b16 %v475, %v474
  %v554 = vpack.c.b16 %v477, %v476
  %v555 = vpack.c.b16 %v479, %v478
  %v556 = vpack.c.b16 %v481, %v480
  %v557 = vpack.c.b16 %v483, %v482
  %v558 = vpack.c.b16 %v485, %v484
  %v559 = vpack.c.b16 %v487, %v486
  %632 = vmatprep.subr.bf16.mxu0 0
  %633 = vmatpush1.bf16.msra.mxu0 %v488
  %634 = vmatprep.subr.bf16.mxu0 0
  %635 = vmatpush1.bf16.msra.mxu0 %v489
  %636 = vmatprep.subr.bf16.mxu0 0
  %637 = vmatpush1.bf16.msra.mxu0 %v490
  %638 = vmatprep.subr.bf16.mxu0 0
  %639 = vmatpush1.bf16.msra.mxu0 %v491
  %640 = vmatprep.subr.bf16.mxu0 0
  %641 = vmatpush1.bf16.msra.mxu0 %v492
  %642 = vmatprep.subr.bf16.mxu0 0
  %643 = vmatpush1.bf16.msra.mxu0 %v493
  %644 = vmatprep.subr.bf16.mxu0 0
  %645 = vmatpush1.bf16.msra.mxu0 %v494
  %646 = vmatprep.subr.bf16.mxu0 0
  %647 = vmatpush1.bf16.msra.mxu0 %v495
  %648 = vmatprep.subr.bf16.mxu0 0
  %649 = vmatpush1.bf16.msra.mxu0 %v496
  %650 = vmatprep.subr.bf16.mxu0 0
  %651 = vmatpush1.bf16.msra.mxu0 %v497
  %652 = vmatprep.subr.bf16.mxu0 0
  %653 = vmatpush1.bf16.msra.mxu0 %v498
  %654 = vmatprep.subr.bf16.mxu0 0
  %655 = vmatpush1.bf16.msra.mxu0 %v499
  %656 = vmatprep.subr.bf16.mxu0 0
  %657 = vmatpush1.bf16.msra.mxu0 %v500
  %658 = vmatprep.subr.bf16.mxu0 0
  %659 = vmatpush1.bf16.msra.mxu0 %v501
  %660 = vmatprep.subr.bf16.mxu0 0
  %661 = vmatpush1.bf16.msra.mxu0 %v502
  %662 = vmatprep.subr.bf16.mxu0 0
  %663 = vmatpush1.bf16.msra.mxu0 %v503
  %664 = vmatprep.mubr.bf16.mxu0 %v183
  %665 = vmatmul.mubr.bf16.gmra.mrb[0].mxu0 %v182
  %v666 = vpop.f32.mrb[0].mxu0
  %v667 = vadd.f32 0.0, %v666
  %v668 = vpop.f32.mrb[0].mxu0
  %v669 = vpop.f32.mrb[0].mxu0
  %v670 = vpop.f32.mrb[0].mxu0
  %671 = vdwg.mxu0
  %672 = vmatprep.subr.bf16.mxu0 0
  %673 = vmatpush1.bf16.msra.mxu0 %v504
  %674 = vmatprep.subr.bf16.mxu0 0
  %675 = vmatpush1.bf16.msra.mxu0 %v505
  %676 = vmatprep.subr.bf16.mxu0 0
  %677 = vmatpush1.bf16.msra.mxu0 %v506
  %678 = vmatprep.subr.bf16.mxu0 0
  %679 = vmatpush1.bf16.msra.mxu0 %v507
  %680 = vmatprep.subr.bf16.mxu0 0
  %681 = vmatpush1.bf16.msra.mxu0 %v508
  %682 = vmatprep.subr.bf16.mxu0 0
  %683 = vmatpush1.bf16.msra.mxu0 %v509
  %684 = vmatprep.subr.bf16.mxu0 0
  %685 = vmatpush1.bf16.msra.mxu0 %v510
  %686 = vmatprep.subr.bf16.mxu0 0
  %687 = vmatpush1.bf16.msra.mxu0 %v511
  %688 = vmatprep.subr.bf16.mxu0 0
  %689 = vmatpush1.bf16.msra.mxu0 %v512
  %690 = vmatprep.subr.bf16.mxu0 0
  %691 = vmatpush1.bf16.msra.mxu0 %v513
  %692 = vmatprep.subr.bf16.mxu0 0
  %693 = vmatpush1.bf16.msra.mxu0 %v514
  %694 = vmatprep.subr.bf16.mxu0 0
  %695 = vmatpush1.bf16.msra.mxu0 %v515
  %696 = vmatprep.subr.bf16.mxu0 0
  %697 = vmatpush1.bf16.msra.mxu0 %v516
  %698 = vmatprep.subr.bf16.mxu0 0
  %699 = vmatpush1.bf16.msra.mxu0 %v517
  %700 = vmatprep.subr.bf16.mxu0 0
  %701 = vmatpush1.bf16.msra.mxu0 %v518
  %702 = vmatprep.subr.bf16.mxu0 0
  %703 = vmatpush1.bf16.msra.mxu0 %v519
  %704 = vmatprep.mubr.bf16.mxu0 %v185
  %705 = vmatmul.mubr.bf16.gmra.mrb[0].mxu0 %v184
  %v706 = vpop.f32.mrb[0].mxu0
  %v707 = vadd.f32 %v667, %v706
  %v708 = vpop.f32.mrb[0].mxu0
  %v709 = vpop.f32.mrb[0].mxu0
  %v710 = vpop.f32.mrb[0].mxu0
  %711 = vdwg.mxu0
  %712 = vmatprep.subr.bf16.mxu0 0
  %713 = vmatpush1.bf16.msra.mxu0 %v520
  %714 = vmatprep.subr.bf16.mxu0 0
  %715 = vmatpush1.bf16.msra.mxu0 %v521
  %716 = vmatprep.subr.bf16.mxu0 0
  %717 = vmatpush1.bf16.msra.mxu0 %v522
  %718 = vmatprep.subr.bf16.mxu0 0
  %719 = vmatpush1.bf16.msra.mxu0 %v523
  %720 = vmatprep.subr.bf16.mxu0 0
  %721 = vmatpush1.bf16.msra.mxu0 %v524
  %722 = vmatprep.subr.bf16.mxu0 0
  %723 = vmatpush1.bf16.msra.mxu0 %v525
  %724 = vmatprep.subr.bf16.mxu0 0
  %725 = vmatpush1.bf16.msra.mxu0 %v526
  %726 = vmatprep.subr.bf16.mxu0 0
  %727 = vmatpush1.bf16.msra.mxu0 %v527
  %728 = vmatprep.subr.bf16.mxu0 0
  %729 = vmatpush1.bf16.msra.mxu0 %v528
  %730 = vmatprep.subr.bf16.mxu0 0
  %731 = vmatpush1.bf16.msra.mxu0 %v529
  %732 = vmatprep.subr.bf16.mxu0 0
  %733 = vmatpush1.bf16.msra.mxu0 %v530
  %734 = vmatprep.subr.bf16.mxu0 0
  %735 = vmatpush1.bf16.msra.mxu0 %v531
  %736 = vmatprep.subr.bf16.mxu0 0
  %737 = vmatpush1.bf16.msra.mxu0 %v532
  %738 = vmatprep.subr.bf16.mxu0 0
  %739 = vmatpush1.bf16.msra.mxu0 %v533
  %740 = vmatprep.subr.bf16.mxu0 0
  %741 = vmatpush1.bf16.msra.mxu0 %v534
  %742 = vmatprep.subr.bf16.mxu0 0
  %743 = vmatpush1.bf16.msra.mxu0 %v535
  %744 = vmatprep.mubr.bf16.mxu0 %v187
  %745 = vmatmul.mubr.bf16.gmra.mrb[0].mxu0 %v186
  %v746 = vpop.f32.mrb[0].mxu0
  %v747 = vadd.f32 %v707, %v746
  %v748 = vpop.f32.mrb[0].mxu0
  %v749 = vpop.f32.mrb[0].mxu0
  %v750 = vpop.f32.mrb[0].mxu0
  %751 = vdwg.mxu0
  %752 = vmatprep.subr.bf16.mxu0 0
  %753 = vmatpush1.bf16.msra.mxu0 %v536
  %754 = vmatprep.subr.bf16.mxu0 0
  %755 = vmatpush1.bf16.msra.mxu0 %v537
  %756 = vmatprep.subr.bf16.mxu0 0
  %757 = vmatpush1.bf16.msra.mxu0 %v538
  %758 = vmatprep.subr.bf16.mxu0 0
  %759 = vmatpush1.bf16.msra.mxu0 %v539
  %760 = vmatprep.subr.bf16.mxu0 0
  %761 = vmatpush1.bf16.msra.mxu0 %v540
  %762 = vmatprep.subr.bf16.mxu0 0
  %763 = vmatpush1.bf16.msra.mxu0 %v541
  %764 = vmatprep.subr.bf16.mxu0 0
  %765 = vmatpush1.bf16.msra.mxu0 %v542
  %766 = vmatprep.subr.bf16.mxu0 0
  %767 = vmatpush1.bf16.msra.mxu0 %v543
  %768 = vmatprep.subr.bf16.mxu0 0
  %769 = vmatpush1.bf16.msra.mxu0 %v544
  %770 = vmatprep.subr.bf16.mxu0 0
  %771 = vmatpush1.bf16.msra.mxu0 %v545
  %772 = vmatprep.subr.bf16.mxu0 0
  %773 = vmatpush1.bf16.msra.mxu0 %v546
  %774 = vmatprep.subr.bf16.mxu0 0
  %775 = vmatpush1.bf16.msra.mxu0 %v547
  %776 = vmatprep.subr.bf16.mxu0 0
  %777 = vmatpush1.bf16.msra.mxu0 %v548
  %778 = vmatprep.subr.bf16.mxu0 0
  %779 = vmatpush1.bf16.msra.mxu0 %v549
  %780 = vmatprep.subr.bf16.mxu0 0
  %781 = vmatpush1.bf16.msra.mxu0 %v550
  %782 = vmatprep.subr.bf16.mxu0 0
  %783 = vmatpush1.bf16.msra.mxu0 %v551
  %784 = vmatprep.mubr.bf16.mxu0 %v189
  %785 = vmatmul.mubr.bf16.gmra.mrb[0].mxu0 %v188
  %v786 = vpop.f32.mrb[0].mxu0
  %v787 = vadd.f32 %v747, %v786
  %v788 = vpop.f32.mrb[0].mxu0
  %v789 = vpop.f32.mrb[0].mxu0
  %v790 = vpop.f32.mrb[0].mxu0
  %791 = vdwg.mxu0
  %792 = vmatprep.subr.bf16.mxu0 0
  %793 = vmatpush1.bf16.msra.mxu0 %v552
  %794 = vmatprep.subr.bf16.mxu0 0
  %795 = vmatpush1.bf16.msra.mxu0 %v553
  %796 = vmatprep.subr.bf16.mxu0 0
  %797 = vmatpush1.bf16.msra.mxu0 %v554
  %798 = vmatprep.subr.bf16.mxu0 0
  %799 = vmatpush1.bf16.msra.mxu0 %v555
  %800 = vmatprep.subr.bf16.mxu0 0
  %801 = vmatpush1.bf16.msra.mxu0 %v556
  %802 = vmatprep.subr.bf16.mxu0 0
  %803 = vmatpush1.bf16.msra.mxu0 %v557
  %804 = vmatprep.subr.bf16.mxu0 0
  %805 = vmatpush1.bf16.msra.mxu0 %v558
  %806 = vmatprep.subr.bf16.mxu0 0
  %807 = vmatpush1.bf16.msra.mxu0 %v559
  %808 = vmatprep.subr.bf16.mxu0 0
  %809 = vmatpush1.bf16.msra.mxu0 0
  %810 = vmatprep.subr.bf16.mxu0 0
  %811 = vmatpush1.bf16.msra.mxu0 0
  %812 = vmatprep.subr.bf16.mxu0 0
  %813 = vmatpush1.bf16.msra.mxu0 0
  %814 = vmatprep.subr.bf16.mxu0 0
  %815 = vmatpush1.bf16.msra.mxu0 0
  %816 = vmatprep.subr.bf16.mxu0 0
  %817 = vmatpush1.bf16.msra.mxu0 0
  %818 = vmatprep.subr.bf16.mxu0 0
  %819 = vmatpush1.bf16.msra.mxu0 0
  %820 = vmatprep.subr.bf16.mxu0 0
  %821 = vmatpush1.bf16.msra.mxu0 0
  %822 = vmatprep.subr.bf16.mxu0 0
  %823 = vmatpush1.bf16.msra.mxu0 0
  %824 = vmatprep.mubr.bf16.mxu0 0
  %825 = vmatmul.mubr.bf16.gmra.mrb[0].mxu0 %v190
  %v826 = vpop.f32.mrb[0].mxu0
  %v827 = vadd.f32 %v787, %v826
  %v828 = vpop.f32.mrb[0].mxu0
  %v829 = vpop.f32.mrb[0].mxu0
  %v830 = vpop.f32.mrb[0].mxu0
  %831 = vdwg.mxu0
  %s832 = sld [smem:[#allocation2]]
  %v833 = vstv %s832
  %v834 = vmul.f32 %v827, %v833
  %v835 = vld [vmem:[%s2] sm:$0x1]
  %v837 = vlaneseq
  %v838 = vshrl.u32 %v837, 7
  %v839 = vsub.s32 0, %v838
  %v840 = vrot.slane %v835, %v839
  %v842 = vadd.f32 %v834, %v840
  %v843 = vmax.f32 %v842, 0.0
  %v844 = vpack.c.bf16 %v843, %v843
  %845 = vst [vmem:[%s4] sm:$0xf] %v844
  // Predicated region
  $region18: #{nature_cnn_forward.6} parent=0 // pred_check
    _
  $region19: #{nature_cnn_forward.6} parent=0 // pred_check_branch
    %847 = sbr.rel (0) target = $region21
  $region20: #{nature_cnn_forward.6} parent=0 // pred_region
    _
  $region21: #{nature_cnn_forward.6} parent=0 // pred_fallthru
    _
  // Predicated region
  $region22: #{nature_cnn_forward.6} parent=0 // pred_check
    _
  $region23: #{nature_cnn_forward.6} parent=0 // pred_check_branch
    %849 = sbr.rel (0) target = $region25
  $region24: #{nature_cnn_forward.6} parent=0 // pred_region
    _
  $region25: #{nature_cnn_forward.6} parent=0 // pred_fallthru
    _

// kernel: nature_cnn_forward.5
$region0: #{nature_cnn_forward.5}
  #allocation0 [shape = 'u32[]', space=smem, size = 0x4, offset = 0x4, fixed_abs, tag = 'smem constant byte address 0x4 - core index']
  #allocation1 [shape = 'u32[144,128]{1,0:T(1,128)}', space=vmem, size = 0x12000, scoped, tag = 'internal scratch']
  #allocation2 [shape = 'f32[1]{0:T(128)S(6)}', space=smem, size = 0x200, scoped, tag = 'scoped memory for nature_cnn_forward.5']
  %s0 = inlined_call_operand.vmem [shape: bf16[24,2048], index: 0, kind: input, shape index: {}]
  %s1 = inlined_call_operand.vmem [shape: bf16[2048,128], index: 1, kind: input, shape index: {}]
  %s2 = inlined_call_operand.vmem [shape: f32[1,128], index: 2, kind: input, shape index: {}]
  %s3 = inlined_call_operand.<no memory space> [shape: f32[1], index: 3, kind: input, shape index: {}]
  %s4 = inlined_call_operand.vmem [shape: bf16[24,128], index: 4, kind: output, shape index: {}]
  %s5 = sld [smem:[#allocation0]]
  $region26: #{nature_cnn_forward.5} parent=0
    _
  %s7 = ssub.s32 1, %s5
  %s8 = scalar_select 0, %s7, %s5
  %9 = sst [smem:[#allocation2]] %s3
  // Predicated region
  $region2: #{nature_cnn_forward.5} parent=0 // pred_check
    _
  $region3: #{nature_cnn_forward.5} parent=0 // pred_check_branch
    %11 = sbr.rel (0) target = $region5
  $region4: #{nature_cnn_forward.5} parent=0 // pred_region
    _
  $region5: #{nature_cnn_forward.5} parent=0 // pred_fallthru
    _
  // Predicated region
  $region6: #{nature_cnn_forward.5} parent=0 // pred_check
    _
  $region7: #{nature_cnn_forward.5} parent=0 // pred_check_branch
    %13 = sbr.rel (0) target = $region9
  $region8: #{nature_cnn_forward.5} parent=0 // pred_region
    _
  $region9: #{nature_cnn_forward.5} parent=0 // pred_fallthru
    _
  // Predicated region
  $region10: #{nature_cnn_forward.5} parent=0 // pred_check
    _
  $region11: #{nature_cnn_forward.5} parent=0 // pred_check_branch
    %15 = sbr.rel (0) target = $region13
  $region12: #{nature_cnn_forward.5} parent=0 // pred_region
    _
  $region13: #{nature_cnn_forward.5} parent=0 // pred_fallthru
    _
  // Predicated region
  $region14: #{nature_cnn_forward.5} parent=0 // pred_check
    _
  $region15: #{nature_cnn_forward.5} parent=0 // pred_check_branch
    %17 = sbr.rel (0) target = $region17
  $region16: #{nature_cnn_forward.5} parent=0 // pred_region
    _
  $region17: #{nature_cnn_forward.5} parent=0 // pred_fallthru
    _
  %v19 = vld [vmem:[%s0] sm:$0xff]
  %v20 = vld [vmem:[%s0 + $0x8] sm:$0xff]
  %v21 = vld [vmem:[%s0 + $0x10] sm:$0xff]
  %v22 = vld [vmem:[%s0 + $0x18] sm:$0xff]
  %v23 = vld [vmem:[%s0 + $0x20] sm:$0xff]
  %v24 = vld [vmem:[%s0 + $0x28] sm:$0xff]
  %v25 = vld [vmem:[%s0 + $0x30] sm:$0xff]
  %v26 = vld [vmem:[%s0 + $0x38] sm:$0xff]
  %v27 = vld [vmem:[%s0 + $0x40] sm:$0xff]
  %v28 = vld [vmem:[%s0 + $0x48] sm:$0xff]
  %v29 = vld [vmem:[%s0 + $0x50] sm:$0xff]
  %v30 = vld [vmem:[%s0 + $0x58] sm:$0xff]
  %v31 = vld [vmem:[%s0 + $0x60] sm:$0xff]
  %v32 = vld [vmem:[%s0 + $0x68] sm:$0xff]
  %v33 = vld [vmem:[%s0 + $0x70] sm:$0xff]
  %v34 = vld [vmem:[%s0 + $0x78] sm:$0xff]
  %v35 = vld [vmem:[%s0 + $0x80] sm:$0xff]
  %v36 = vld [vmem:[%s0 + $0x88] sm:$0xff]
  %v37 = vld [vmem:[%s0 + $0x90] sm:$0xff]
  %v38 = vld [vmem:[%s0 + $0x98] sm:$0xff]
  %v39 = vld [vmem:[%s0 + $0xa0] sm:$0xff]
  %v40 = vld [vmem:[%s0 + $0xa8] sm:$0xff]
  %v41 = vld [vmem:[%s0 + $0xb0] sm:$0xff]
  %v42 = vld [vmem:[%s0 + $0xb8] sm:$0xff]
  %v43 = vld [vmem:[%s1] sm:$0xf]
  %v44 = vld [vmem:[%s1 + $0x4] sm:$0xf]
  %v45 = vld [vmem:[%s1 + $0x8] sm:$0xf]
  %v46 = vld [vmem:[%s1 + $0xc] sm:$0xf]
  %v47 = vld [vmem:[%s1 + $0x10] sm:$0xf]
  %v48 = vld [vmem:[%s1 + $0x14] sm:$0xf]
  %v49 = vld [vmem:[%s1 + $0x18] sm:$0xf]
  %v50 = vld [vmem:[%s1 + $0x1c] sm:$0xf]
  %v51 = vld [vmem:[%s1 + $0x20] sm:$0xf]
  %v52 = vld [vmem:[%s1 + $0x24] sm:$0xf]
  %v53 = vld [vmem:[%s1 + $0x28] sm:$0xf]
  %v54 = vld [vmem:[%s1 + $0x2c] sm:$0xf]
  %v55 = vld [vmem:[%s1 + $0x30] sm:$0xf]
  %v56 = vld [vmem:[%s1 + $0x34] sm:$0xf]
  %v57 = vld [vmem:[%s1 + $0x38] sm:$0xf]
  %v58 = vld [vmem:[%s1 + $0x3c] sm:$0xf]
  %v59 = vld [vmem:[%s1 + $0x40] sm:$0xf]
  %v60 = vld [vmem:[%s1 + $0x44] sm:$0xf]
  %v61 = vld [vmem:[%s1 + $0x48] sm:$0xf]
  %v62 = vld [vmem:[%s1 + $0x4c] sm:$0xf]
  %v63 = vld [vmem:[%s1 + $0x50] sm:$0xf]
  %v64 = vld [vmem:[%s1 + $0x54] sm:$0xf]
  %v65 = vld [vmem:[%s1 + $0x58] sm:$0xf]
  %v66 = vld [vmem:[%s1 + $0x5c] sm:$0xf]
  %v67 = vld [vmem:[%s1 + $0x60] sm:$0xf]
  %v68 = vld [vmem:[%s1 + $0x64] sm:$0xf]
  %v69 = vld [vmem:[%s1 + $0x68] sm:$0xf]
  %v70 = vld [vmem:[%s1 + $0x6c] sm:$0xf]
  %v71 = vld [vmem:[%s1 + $0x70] sm:$0xf]
  %v72 = vld [vmem:[%s1 + $0x74] sm:$0xf]
  %v73 = vld [vmem:[%s1 + $0x78] sm:$0xf]
  %v74 = vld [vmem:[%s1 + $0x7c] sm:$0xf]
  %v75 = vld [vmem:[%s1 + $0x80] sm:$0xf]
  %v76 = vld [vmem:[%s1 + $0x84] sm:$0xf]
  %v77 = vld [vmem:[%s1 + $0x88] sm:$0xf]
  %v78 = vld [vmem:[%s1 + $0x8c] sm:$0xf]
  %v79 = vld [vmem:[%s1 + $0x90] sm:$0xf]
  %v80 = vld [vmem:[%s1 + $0x94] sm:$0xf]
  %v81 = vld [vmem:[%s1 + $0x98] sm:$0xf]
  %v82 = vld [vmem:[%s1 + $0x9c] sm:$0xf]
  %v83 = vld [vmem:[%s1 + $0xa0] sm:$0xf]
  %v84 = vld [vmem:[%s1 + $0xa4] sm:$0xf]
  %v85 = vld [vmem:[%s1 + $0xa8] sm:$0xf]
  %v86 = vld [vmem:[%s1 + $0xac] sm:$0xf]
  %v87 = vld [vmem:[%s1 + $0xb0] sm:$0xf]
  %v88 = vld [vmem:[%s1 + $0xb4] sm:$0xf]
  %v89 = vld [vmem:[%s1 + $0xb8] sm:$0xf]
  %v90 = vld [vmem:[%s1 + $0xbc] sm:$0xf]
  %v91 = vld [vmem:[%s1 + $0xc0] sm:$0xf]
  %v92 = vld [vmem:[%s1 + $0xc4] sm:$0xf]
  %v93 = vld [vmem:[%s1 + $0xc8] sm:$0xf]
  %v94 = vld [vmem:[%s1 + $0xcc] sm:$0xf]
  %v95 = vld [vmem:[%s1 + $0xd0] sm:$0xf]
  %v96 = vld [vmem:[%s1 + $0xd4] sm:$0xf]
  %v97 = vld [vmem:[%s1 + $0xd8] sm:$0xf]
  %v98 = vld [vmem:[%s1 + $0xdc] sm:$0xf]
  %v99 = vld [vmem:[%s1 + $0xe0] sm:$0xf]
  %v100 = vld [vmem:[%s1 + $0xe4] sm:$0xf]
  %v101 = vld [vmem:[%s1 + $0xe8] sm:$0xf]
  %v102 = vld [vmem:[%s1 + $0xec] sm:$0xf]
  %v103 = vld [vmem:[%s1 + $0xf0] sm:$0xf]
  %v104 = vld [vmem:[%s1 + $0xf4] sm:$0xf]
  %v105 = vld [vmem:[%s1 + $0xf8] sm:$0xf]
  %v106 = vld [vmem:[%s1 + $0xfc] sm:$0xf]
  %v107 = vld [vmem:[%s1 + $0x100] sm:$0xf]
  %v108 = vld [vmem:[%s1 + $0x104] sm:$0xf]
  %v109 = vld [vmem:[%s1 + $0x108] sm:$0xf]
  %v110 = vld [vmem:[%s1 + $0x10c] sm:$0xf]
  %v111 = vld [vmem:[%s1 + $0x110] sm:$0xf]
  %v112 = vld [vmem:[%s1 + $0x114] sm:$0xf]
  %v113 = vld [vmem:[%s1 + $0x118] sm:$0xf]
  %v114 = vld [vmem:[%s1 + $0x11c] sm:$0xf]
  %v115 = vld [vmem:[%s1 + $0x120] sm:$0xf]
  %v116 = vld [vmem:[%s1 + $0x124] sm:$0xf]
  %v117 = vld [vmem:[%s1 + $0x128] sm:$0xf]
  %v118 = vld [vmem:[%s1 + $0x12c] sm:$0xf]
  %v119 = vld [vmem:[%s1 + $0x130] sm:$0xf]
  %v120 = vld [vmem:[%s1 + $0x134] sm:$0xf]
  %v121 = vld [vmem:[%s1 + $0x138] sm:$0xf]
  %v122 = vld [vmem:[%s1 + $0x13c] sm:$0xf]
  %v123 = vld [vmem:[%s1 + $0x140] sm:$0xf]
  %v124 = vld [vmem:[%s1 + $0x144] sm:$0xf]
  %v125 = vld [vmem:[%s1 + $0x148] sm:$0xf]
  %v126 = vld [vmem:[%s1 + $0x14c] sm:$0xf]
  %v127 = vld [vmem:[%s1 + $0x150] sm:$0xf]
  %v128 = vld [vmem:[%s1 + $0x154] sm:$0xf]
  %v129 = vld [vmem:[%s1 + $0x158] sm:$0xf]
  %v130 = vld [vmem:[%s1 + $0x15c] sm:$0xf]
  %v131 = vld [vmem:[%s1 + $0x160] sm:$0xf]
  %v132 = vld [vmem:[%s1 + $0x164] sm:$0xf]
  %v133 = vld [vmem:[%s1 + $0x168] sm:$0xf]
  %v134 = vld [vmem:[%s1 + $0x16c] sm:$0xf]
  %v135 = vld [vmem:[%s1 + $0x170] sm:$0xf]
  %v136 = vld [vmem:[%s1 + $0x174] sm:$0xf]
  %v137 = vld [vmem:[%s1 + $0x178] sm:$0xf]
  %v138 = vld [vmem:[%s1 + $0x17c] sm:$0xf]
  %v139 = vld [vmem:[%s1 + $0x180] sm:$0xf]
  %v140 = vld [vmem:[%s1 + $0x184] sm:$0xf]
  %v141 = vld [vmem:[%s1 + $0x188] sm:$0xf]
  %v142 = vld [vmem:[%s1 + $0x18c] sm:$0xf]
  %v143 = vld [vmem:[%s1 + $0x190] sm:$0xf]
  %v144 = vld [vmem:[%s1 + $0x194] sm:$0xf]
  %v145 = vld [vmem:[%s1 + $0x198] sm:$0xf]
  %v146 = vld [vmem:[%s1 + $0x19c] sm:$0xf]
  %v147 = vld [vmem:[%s1 + $0x1a0] sm:$0xf]
  %v148 = vld [vmem:[%s1 + $0x1a4] sm:$0xf]
  %v149 = vld [vmem:[%s1 + $0x1a8] sm:$0xf]
  %v150 = vld [vmem:[%s1 + $0x1ac] sm:$0xf]
  %v151 = vld [vmem:[%s1 + $0x1b0] sm:$0xf]
  %v152 = vld [vmem:[%s1 + $0x1b4] sm:$0xf]
  %v153 = vld [vmem:[%s1 + $0x1b8] sm:$0xf]
  %v154 = vld [vmem:[%s1 + $0x1bc] sm:$0xf]
  %v155 = vld [vmem:[%s1 + $0x1c0] sm:$0xf]
  %v156 = vld [vmem:[%s1 + $0x1c4] sm:$0xf]
  %v157 = vld [vmem:[%s1 + $0x1c8] sm:$0xf]
  %v158 = vld [vmem:[%s1 + $0x1cc] sm:$0xf]
  %v159 = vld [vmem:[%s1 + $0x1d0] sm:$0xf]
  %v160 = vld [vmem:[%s1 + $0x1d4] sm:$0xf]
  %v161 = vld [vmem:[%s1 + $0x1d8] sm:$0xf]
  %v162 = vld [vmem:[%s1 + $0x1dc] sm:$0xf]
  %v163 = vld [vmem:[%s1 + $0x1e0] sm:$0xf]
  %v164 = vld [vmem:[%s1 + $0x1e4] sm:$0xf]
  %v165 = vld [vmem:[%s1 + $0x1e8] sm:$0xf]
  %v166 = vld [vmem:[%s1 + $0x1ec] sm:$0xf]
  %v167 = vld [vmem:[%s1 + $0x1f0] sm:$0xf]
  %v168 = vld [vmem:[%s1 + $0x1f4] sm:$0xf]
  %v169 = vld [vmem:[%s1 + $0x1f8] sm:$0xf]
  %v170 = vld [vmem:[%s1 + $0x1fc] sm:$0xf]
  %v171 = vld [vmem:[%s1 + $0x200] sm:$0xf]
  %v172 = vld [vmem:[%s1 + $0x204] sm:$0xf]
  %v173 = vld [vmem:[%s1 + $0x208] sm:$0xf]
  %v174 = vld [vmem:[%s1 + $0x20c] sm:$0xf]
  %v175 = vld [vmem:[%s1 + $0x210] sm:$0xf]
  %v176 = vld [vmem:[%s1 + $0x214] sm:$0xf]
  %v177 = vld [vmem:[%s1 + $0x218] sm:$0xf]
  %v178 = vld [vmem:[%s1 + $0x21c] sm:$0xf]
  %v179 = vld [vmem:[%s1 + $0x220] sm:$0xf]
  %v180 = vld [vmem:[%s1 + $0x224] sm:$0xf]
  %v181 = vld [vmem:[%s1 + $0x228] sm:$0xf]
  %v182 = vld [vmem:[%s1 + $0x22c] sm:$0xf]
  %v183 = vld [vmem:[%s1 + $0x230] sm:$0xf]
  %v184 = vld [vmem:[%s1 + $0x234] sm:$0xf]
  %v185 = vld [vmem:[%s1 + $0x238] sm:$0xf]
  %v186 = vld [vmem:[%s1 + $0x23c] sm:$0xf]
  %v187 = vld [vmem:[%s1 + $0x240] sm:$0xf]
  %v188 = vld [vmem:[%s1 + $0x244] sm:$0xf]
  %v189 = vld [vmem:[%s1 + $0x248] sm:$0xf]
  %v190 = vld [vmem:[%s1 + $0x24c] sm:$0xf]
  %v191 = vld [vmem:[%s1 + $0x250] sm:$0xf]
  %v192 = vld [vmem:[%s1 + $0x254] sm:$0xf]
  %v193 = vld [vmem:[%s1 + $0x258] sm:$0xf]
  %v194 = vld [vmem:[%s1 + $0x25c] sm:$0xf]
  %v195 = vld [vmem:[%s1 + $0x260] sm:$0xf]
  %v196 = vld [vmem:[%s1 + $0x264] sm:$0xf]
  %v197 = vld [vmem:[%s1 + $0x268] sm:$0xf]
  %v198 = vld [vmem:[%s1 + $0x26c] sm:$0xf]
  %v199 = vld [vmem:[%s1 + $0x270] sm:$0xf]
  %v200 = vld [vmem:[%s1 + $0x274] sm:$0xf]
  %v201 = vld [vmem:[%s1 + $0x278] sm:$0xf]
  %v202 = vld [vmem:[%s1 + $0x27c] sm:$0xf]
  %v203 = vld [vmem:[%s1 + $0x280] sm:$0xf]
  %v204 = vld [vmem:[%s1 + $0x284] sm:$0xf]
  %v205 = vld [vmem:[%s1 + $0x288] sm:$0xf]
  %v206 = vld [vmem:[%s1 + $0x28c] sm:$0xf]
  %v207 = vld [vmem:[%s1 + $0x290] sm:$0xf]
  %v208 = vld [vmem:[%s1 + $0x294] sm:$0xf]
  %v209 = vld [vmem:[%s1 + $0x298] sm:$0xf]
  %v210 = vld [vmem:[%s1 + $0x29c] sm:$0xf]
  %v211 = vld [vmem:[%s1 + $0x2a0] sm:$0xf]
  %v212 = vld [vmem:[%s1 + $0x2a4] sm:$0xf]
  %v213 = vld [vmem:[%s1 + $0x2a8] sm:$0xf]
  %v214 = vld [vmem:[%s1 + $0x2ac] sm:$0xf]
  %v215 = vld [vmem:[%s1 + $0x2b0] sm:$0xf]
  %v216 = vld [vmem:[%s1 + $0x2b4] sm:$0xf]
  %v217 = vld [vmem:[%s1 + $0x2b8] sm:$0xf]
  %v218 = vld [vmem:[%s1 + $0x2bc] sm:$0xf]
  %v219 = vld [vmem:[%s1 + $0x2c0] sm:$0xf]
  %v220 = vld [vmem:[%s1 + $0x2c4] sm:$0xf]
  %v221 = vld [vmem:[%s1 + $0x2c8] sm:$0xf]
  %v222 = vld [vmem:[%s1 + $0x2cc] sm:$0xf]
  %v223 = vld [vmem:[%s1 + $0x2d0] sm:$0xf]
  %v224 = vld [vmem:[%s1 + $0x2d4] sm:$0xf]
  %v225 = vld [vmem:[%s1 + $0x2d8] sm:$0xf]
  %v226 = vld [vmem:[%s1 + $0x2dc] sm:$0xf]
  %v227 = vld [vmem:[%s1 + $0x2e0] sm:$0xf]
  %v228 = vld [vmem:[%s1 + $0x2e4] sm:$0xf]
  %v229 = vld [vmem:[%s1 + $0x2e8] sm:$0xf]
  %v230 = vld [vmem:[%s1 + $0x2ec] sm:$0xf]
  %v231 = vld [vmem:[%s1 + $0x2f0] sm:$0xf]
  %v232 = vld [vmem:[%s1 + $0x2f4] sm:$0xf]
  %v233 = vld [vmem:[%s1 + $0x2f8] sm:$0xf]
  %v234 = vld [vmem:[%s1 + $0x2fc] sm:$0xf]
  %v235 = vld [vmem:[%s1 + $0x300] sm:$0xf]
  %v236 = vld [vmem:[%s1 + $0x304] sm:$0xf]
  %v237 = vld [vmem:[%s1 + $0x308] sm:$0xf]
  %v238 = vld [vmem:[%s1 + $0x30c] sm:$0xf]
  %v239 = vld [vmem:[%s1 + $0x310] sm:$0xf]
  %v240 = vld [vmem:[%s1 + $0x314] sm:$0xf]
  %v241 = vld [vmem:[%s1 + $0x318] sm:$0xf]
  %v242 = vld [vmem:[%s1 + $0x31c] sm:$0xf]
  %v243 = vld [vmem:[%s1 + $0x320] sm:$0xf]
  %v244 = vld [vmem:[%s1 + $0x324] sm:$0xf]
  %v245 = vld [vmem:[%s1 + $0x328] sm:$0xf]
  %v246 = vld [vmem:[%s1 + $0x32c] sm:$0xf]
  %v247 = vld [vmem:[%s1 + $0x330] sm:$0xf]
  %v248 = vld [vmem:[%s1 + $0x334] sm:$0xf]
  %v249 = vld [vmem:[%s1 + $0x338] sm:$0xf]
  %v250 = vld [vmem:[%s1 + $0x33c] sm:$0xf]
  %v251 = vld [vmem:[%s1 + $0x340] sm:$0xf]
  %v252 = vld [vmem:[%s1 + $0x344] sm:$0xf]
  %v253 = vld [vmem:[%s1 + $0x348] sm:$0xf]
  %v254 = vld [vmem:[%s1 + $0x34c] sm:$0xf]
  %v255 = vld [vmem:[%s1 + $0x350] sm:$0xf]
  %v256 = vld [vmem:[%s1 + $0x354] sm:$0xf]
  %v257 = vld [vmem:[%s1 + $0x358] sm:$0xf]
  %v258 = vld [vmem:[%s1 + $0x35c] sm:$0xf]
  %v259 = vld [vmem:[%s1 + $0x360] sm:$0xf]
  %v260 = vld [vmem:[%s1 + $0x364] sm:$0xf]
  %v261 = vld [vmem:[%s1 + $0x368] sm:$0xf]
  %v262 = vld [vmem:[%s1 + $0x36c] sm:$0xf]
  %v263 = vld [vmem:[%s1 + $0x370] sm:$0xf]
  %v264 = vld [vmem:[%s1 + $0x374] sm:$0xf]
  %v265 = vld [vmem:[%s1 + $0x378] sm:$0xf]
  %v266 = vld [vmem:[%s1 + $0x37c] sm:$0xf]
  %v267 = vld [vmem:[%s1 + $0x380] sm:$0xf]
  %v268 = vld [vmem:[%s1 + $0x384] sm:$0xf]
  %v269 = vld [vmem:[%s1 + $0x388] sm:$0xf]
  %v270 = vld [vmem:[%s1 + $0x38c] sm:$0xf]
  %v271 = vld [vmem:[%s1 + $0x390] sm:$0xf]
  %v272 = vld [vmem:[%s1 + $0x394] sm:$0xf]
  %v273 = vld [vmem:[%s1 + $0x398] sm:$0xf]
  %v274 = vld [vmem:[%s1 + $0x39c] sm:$0xf]
  %v275 = vld [vmem:[%s1 + $0x3a0] sm:$0xf]
  %v276 = vld [vmem:[%s1 + $0x3a4] sm:$0xf]
  %v277 = vld [vmem:[%s1 + $0x3a8] sm:$0xf]
  %v278 = vld [vmem:[%s1 + $0x3ac] sm:$0xf]
  %v279 = vld [vmem:[%s1 + $0x3b0] sm:$0xf]
  %v280 = vld [vmem:[%s1 + $0x3b4] sm:$0xf]
  %v281 = vld [vmem:[%s1 + $0x3b8] sm:$0xf]
  %v282 = vld [vmem:[%s1 + $0x3bc] sm:$0xf]
  %v283 = vld [vmem:[%s1 + $0x3c0] sm:$0xf]
  %v284 = vld [vmem:[%s1 + $0x3c4] sm:$0xf]
  %v285 = vld [vmem:[%s1 + $0x3c8] sm:$0xf]
  %v286 = vld [vmem:[%s1 + $0x3cc] sm:$0xf]
  %v287 = vld [vmem:[%s1 + $0x3d0] sm:$0xf]
  %v288 = vld [vmem:[%s1 + $0x3d4] sm:$0xf]
  %v289 = vld [vmem:[%s1 + $0x3d8] sm:$0xf]
  %v290 = vld [vmem:[%s1 + $0x3dc] sm:$0xf]
  %v291 = vld [vmem:[%s1 + $0x3e0] sm:$0xf]
  %v292 = vld [vmem:[%s1 + $0x3e4] sm:$0xf]
  %v293 = vld [vmem:[%s1 + $0x3e8] sm:$0xf]
  %v294 = vld [vmem:[%s1 + $0x3ec] sm:$0xf]
  %v295 = vld [vmem:[%s1 + $0x3f0] sm:$0xf]
  %v296 = vld [vmem:[%s1 + $0x3f4] sm:$0xf]
  %v297 = vld [vmem:[%s1 + $0x3f8] sm:$0xf]
  %v298 = vld [vmem:[%s1 + $0x3fc] sm:$0xf]
  %v323 = vunpack.c.l.b16 %v19
  %v324 = vunpack.c.h.b16 %v19
  %v325 = vunpack.c.l.b16 %v20
  %v326 = vunpack.c.h.b16 %v20
  %v327 = vunpack.c.l.b16 %v21
  %v328 = vunpack.c.h.b16 %v21
  %v329 = vunpack.c.l.b16 %v22
  %v330 = vunpack.c.h.b16 %v22
  %v331 = vunpack.c.l.b16 %v23
  %v332 = vunpack.c.h.b16 %v23
  %v333 = vunpack.c.l.b16 %v24
  %v334 = vunpack.c.h.b16 %v24
  %v335 = vunpack.c.l.b16 %v25
  %v336 = vunpack.c.h.b16 %v25
  %v337 = vunpack.c.l.b16 %v26
  %v338 = vunpack.c.h.b16 %v26
  %v339 = vunpack.c.l.b16 %v27
  %v340 = vunpack.c.h.b16 %v27
  %v341 = vunpack.c.l.b16 %v28
  %v342 = vunpack.c.h.b16 %v28
  %v343 = vunpack.c.l.b16 %v29
  %v344 = vunpack.c.h.b16 %v29
  %v345 = vunpack.c.l.b16 %v30
  %v346 = vunpack.c.h.b16 %v30
  %v347 = vunpack.c.l.b16 %v31
  %v348 = vunpack.c.h.b16 %v31
  %v349 = vunpack.c.l.b16 %v32
  %v350 = vunpack.c.h.b16 %v32
  %v351 = vunpack.c.l.b16 %v33
  %v352 = vunpack.c.h.b16 %v33
  %v353 = vunpack.c.l.b16 %v34
  %v354 = vunpack.c.h.b16 %v34
  %v355 = vunpack.c.l.b16 %v35
  %v356 = vunpack.c.h.b16 %v35
  %v357 = vunpack.c.l.b16 %v36
  %v358 = vunpack.c.h.b16 %v36
  %v359 = vunpack.c.l.b16 %v37
  %v360 = vunpack.c.h.b16 %v37
  %v361 = vunpack.c.l.b16 %v38
  %v362 = vunpack.c.h.b16 %v38
  %v363 = vunpack.c.l.b16 %v39
  %v364 = vunpack.c.h.b16 %v39
  %v365 = vunpack.c.l.b16 %v40
  %v366 = vunpack.c.h.b16 %v40
  %v367 = vunpack.c.l.b16 %v41
  %v368 = vunpack.c.h.b16 %v41
  %v369 = vunpack.c.l.b16 %v42
  %v370 = vunpack.c.h.b16 %v42
  %v371 = vpack.c.b16 %v339, %v323
  %v372 = vpack.c.b16 %v340, %v324
  %v373 = vpack.c.b16 %v341, %v325
  %v374 = vpack.c.b16 %v342, %v326
  %v375 = vpack.c.b16 %v343, %v327
  %v376 = vpack.c.b16 %v344, %v328
  %v377 = vpack.c.b16 %v345, %v329
  %v378 = vpack.c.b16 %v346, %v330
  %v379 = vpack.c.b16 %v347, %v331
  %v380 = vpack.c.b16 %v348, %v332
  %v381 = vpack.c.b16 %v349, %v333
  %v382 = vpack.c.b16 %v350, %v334
  %v383 = vpack.c.b16 %v351, %v335
  %v384 = vpack.c.b16 %v352, %v336
  %v385 = vpack.c.b16 %v353, %v337
  %v386 = vpack.c.b16 %v354, %v338
  %v387 = vpack.c.b16 %v355, %v355
  %v388 = vpack.c.b16 %v356, %v356
  %v389 = vpack.c.b16 %v357, %v357
  %v390 = vpack.c.b16 %v358, %v358
  %v391 = vpack.c.b16 %v359, %v359
  %v392 = vpack.c.b16 %v360, %v360
  %v393 = vpack.c.b16 %v361, %v361
  %v394 = vpack.c.b16 %v362, %v362
  %v395 = vpack.c.b16 %v363, %v363
  %v396 = vpack.c.b16 %v364, %v364
  %v397 = vpack.c.b16 %v365, %v365
  %v398 = vpack.c.b16 %v366, %v366
  %v399 = vpack.c.b16 %v367, %v367
  %v400 = vpack.c.b16 %v368, %v368
  %v401 = vpack.c.b16 %v369, %v369
  %v402 = vpack.c.b16 %v370, %v370
  %v691 = vunpack.c.l.b16 %v43
  %v692 = vunpack.c.l.b16 %v44
  %v693 = vunpack.c.l.b16 %v45
  %v694 = vunpack.c.l.b16 %v46
  %v695 = vunpack.c.l.b16 %v47
  %v696 = vunpack.c.l.b16 %v48
  %v697 = vunpack.c.l.b16 %v49
  %v698 = vunpack.c.l.b16 %v50
  %v699 = vunpack.c.l.b16 %v51
  %v700 = vunpack.c.l.b16 %v52
  %v701 = vunpack.c.l.b16 %v53
  %v702 = vunpack.c.l.b16 %v54
  %v703 = vunpack.c.l.b16 %v55
  %v704 = vunpack.c.l.b16 %v56
  %v705 = vunpack.c.l.b16 %v57
  %v706 = vunpack.c.l.b16 %v58
  %v707 = vunpack.c.l.b16 %v59
  %v708 = vunpack.c.l.b16 %v60
  %v709 = vunpack.c.l.b16 %v61
  %v710 = vunpack.c.l.b16 %v62
  %v711 = vunpack.c.l.b16 %v63
  %v712 = vunpack.c.l.b16 %v64
  %v713 = vunpack.c.l.b16 %v65
  %v714 = vunpack.c.l.b16 %v66
  %v715 = vunpack.c.l.b16 %v67
  %v716 = vunpack.c.l.b16 %v68
  %v717 = vunpack.c.l.b16 %v69
  %v718 = vunpack.c.l.b16 %v70
  %v719 = vunpack.c.l.b16 %v71
  %v720 = vunpack.c.l.b16 %v72
  %v721 = vunpack.c.l.b16 %v73
  %v722 = vunpack.c.l.b16 %v74
  %v723 = vunpack.c.l.b16 %v75
  %v724 = vunpack.c.l.b16 %v76
  %v725 = vunpack.c.l.b16 %v77
  %v726 = vunpack.c.l.b16 %v78
  %v727 = vunpack.c.l.b16 %v79
  %v728 = vunpack.c.l.b16 %v80
  %v729 = vunpack.c.l.b16 %v81
  %v730 = vunpack.c.l.b16 %v82
  %v731 = vunpack.c.l.b16 %v83
  %v732 = vunpack.c.l.b16 %v84
  %v733 = vunpack.c.l.b16 %v85
  %v734 = vunpack.c.l.b16 %v86
  %v735 = vunpack.c.l.b16 %v87
  %v736 = vunpack.c.l.b16 %v88
  %v737 = vunpack.c.l.b16 %v89
  %v738 = vunpack.c.l.b16 %v90
  %v739 = vunpack.c.l.b16 %v91
  %v740 = vunpack.c.l.b16 %v92
  %v741 = vunpack.c.l.b16 %v93
  %v742 = vunpack.c.l.b16 %v94
  %v743 = vunpack.c.l.b16 %v95
  %v744 = vunpack.c.l.b16 %v96
  %v745 = vunpack.c.l.b16 %v97
  %v746 = vunpack.c.l.b16 %v98
  %v747 = vunpack.c.l.b16 %v99
  %v748 = vunpack.c.l.b16 %v100
  %v749 = vunpack.c.l.b16 %v101
  %v750 = vunpack.c.l.b16 %v102
  %v751 = vunpack.c.l.b16 %v103
  %v752 = vunpack.c.l.b16 %v104
  %v753 = vunpack.c.l.b16 %v105
  %v754 = vunpack.c.l.b16 %v106
  %v755 = vunpack.c.l.b16 %v107
  %v756 = vunpack.c.l.b16 %v108
  %v757 = vunpack.c.l.b16 %v109
  %v758 = vunpack.c.l.b16 %v110
  %v759 = vunpack.c.l.b16 %v111
  %v760 = vunpack.c.l.b16 %v112
  %v761 = vunpack.c.l.b16 %v113
  %v762 = vunpack.c.l.b16 %v114
  %v763 = vunpack.c.l.b16 %v115
  %v764 = vunpack.c.l.b16 %v116
  %v765 = vunpack.c.l.b16 %v117
  %v766 = vunpack.c.l.b16 %v118
  %v767 = vunpack.c.l.b16 %v119
  %v768 = vunpack.c.l.b16 %v120
  %v769 = vunpack.c.l.b16 %v121
  %v770 = vunpack.c.l.b16 %v122
  %v771 = vunpack.c.l.b16 %v123
  %v772 = vunpack.c.l.b16 %v124
  %v773 = vunpack.c.l.b16 %v125
  %v774 = vunpack.c.l.b16 %v126
  %v775 = vunpack.c.l.b16 %v127
  %v776 = vunpack.c.l.b16 %v128
  %v777 = vunpack.c.l.b16 %v129
  %v778 = vunpack.c.l.b16 %v130
  %v779 = vunpack.c.l.b16 %v131
  %v780 = vunpack.c.l.b16 %v132
  %v781 = vunpack.c.l.b16 %v133
  %v782 = vunpack.c.l.b16 %v134
  %v783 = vunpack.c.l.b16 %v135
  %v784 = vunpack.c.l.b16 %v136
  %v785 = vunpack.c.l.b16 %v137
  %v786 = vunpack.c.l.b16 %v138
  %v787 = vunpack.c.l.b16 %v139
  %v788 = vunpack.c.l.b16 %v140
  %v789 = vunpack.c.l.b16 %v141
  %v790 = vunpack.c.l.b16 %v142
  %v791 = vunpack.c.l.b16 %v143
  %v792 = vunpack.c.l.b16 %v144
  %v793 = vunpack.c.l.b16 %v145
  %v794 = vunpack.c.l.b16 %v146
  %v795 = vunpack.c.l.b16 %v147
  %v796 = vunpack.c.l.b16 %v148
  %v797 = vunpack.c.l.b16 %v149
  %v798 = vunpack.c.l.b16 %v150
  %v799 = vunpack.c.l.b16 %v151
  %v800 = vunpack.c.l.b16 %v152
  %v801 = vunpack.c.l.b16 %v153
  %v802 = vunpack.c.l.b16 %v154
  %v803 = vunpack.c.l.b16 %v155
  %v804 = vunpack.c.l.b16 %v156
  %v805 = vunpack.c.l.b16 %v157
  %v806 = vunpack.c.l.b16 %v158
  %v807 = vunpack.c.l.b16 %v159
  %v808 = vunpack.c.l.b16 %v160
  %v809 = vunpack.c.l.b16 %v161
  %v810 = vunpack.c.l.b16 %v162
  %v811 = vunpack.c.l.b16 %v163
  %v812 = vunpack.c.l.b16 %v164
  %v813 = vunpack.c.l.b16 %v165
  %v814 = vunpack.c.l.b16 %v166
  %v815 = vunpack.c.l.b16 %v167
  %v816 = vunpack.c.l.b16 %v168
  %v817 = vunpack.c.l.b16 %v169
  %v818 = vunpack.c.l.b16 %v170
  %v819 = vunpack.c.l.b16 %v171
  %v820 = vunpack.c.l.b16 %v172
  %v821 = vunpack.c.l.b16 %v173
  %v822 = vunpack.c.l.b16 %v174
  %v823 = vunpack.c.l.b16 %v175
  %v824 = vunpack.c.l.b16 %v176
  %v825 = vunpack.c.l.b16 %v177
  %v826 = vunpack.c.l.b16 %v178
  %v827 = vunpack.c.l.b16 %v179
  %v828 = vunpack.c.l.b16 %v180
  %v829 = vunpack.c.l.b16 %v181
  %v830 = vunpack.c.l.b16 %v182
  %v831 = vunpack.c.l.b16 %v183
  %v832 = vunpack.c.l.b16 %v184
  %v833 = vunpack.c.l.b16 %v185
  %v834 = vunpack.c.l.b16 %v186
  %v835 = vunpack.c.l.b16 %v187
  %v836 = vunpack.c.l.b16 %v188
  %v837 = vunpack.c.l.b16 %v189
  %v838 = vunpack.c.l.b16 %v190
  %v839 = vunpack.c.l.b16 %v191
  %v840 = vunpack.c.l.b16 %v192
  %v841 = vunpack.c.l.b16 %v193
  %v842 = vunpack.c.l.b16 %v194
  %v843 = vunpack.c.l.b16 %v195
  %v844 = vunpack.c.l.b16 %v196
  %v845 = vunpack.c.l.b16 %v197
  %v846 = vunpack.c.l.b16 %v198
  %v847 = vunpack.c.l.b16 %v199
  %v848 = vunpack.c.l.b16 %v200
  %v849 = vunpack.c.l.b16 %v201
  %v850 = vunpack.c.l.b16 %v202
  %v851 = vunpack.c.l.b16 %v203
  %v852 = vunpack.c.l.b16 %v204
  %v853 = vunpack.c.l.b16 %v205
  %v854 = vunpack.c.l.b16 %v206
  %v855 = vunpack.c.l.b16 %v207
  %v856 = vunpack.c.l.b16 %v208
  %v857 = vunpack.c.l.b16 %v209
  %v858 = vunpack.c.l.b16 %v210
  %v859 = vunpack.c.l.b16 %v211
  %v860 = vunpack.c.l.b16 %v212
  %v861 = vunpack.c.l.b16 %v213
  %v862 = vunpack.c.l.b16 %v214
  %v863 = vunpack.c.l.b16 %v215
  %v864 = vunpack.c.l.b16 %v216
  %v865 = vunpack.c.l.b16 %v217
  %v866 = vunpack.c.l.b16 %v218
  %v867 = vunpack.c.l.b16 %v219
  %v868 = vunpack.c.l.b16 %v220
  %v869 = vunpack.c.l.b16 %v221
  %v870 = vunpack.c.l.b16 %v222
  %v871 = vunpack.c.l.b16 %v223
  %v872 = vunpack.c.l.b16 %v224
  %v873 = vunpack.c.l.b16 %v225
  %v874 = vunpack.c.l.b16 %v226
  %v875 = vunpack.c.l.b16 %v227
  %v876 = vunpack.c.l.b16 %v228
  %v877 = vunpack.c.l.b16 %v229
  %v878 = vunpack.c.l.b16 %v230
  %v879 = vunpack.c.l.b16 %v231
  %v880 = vunpack.c.l.b16 %v232
  %v881 = vunpack.c.l.b16 %v233
  %v882 = vunpack.c.l.b16 %v234
  %v883 = vunpack.c.l.b16 %v235
  %v884 = vunpack.c.l.b16 %v236
  %v885 = vunpack.c.l.b16 %v237
  %v886 = vunpack.c.l.b16 %v238
  %v887 = vunpack.c.l.b16 %v239
  %v888 = vunpack.c.l.b16 %v240
  %v889 = vunpack.c.l.b16 %v241
  %v890 = vunpack.c.l.b16 %v242
  %v891 = vunpack.c.l.b16 %v243
  %v892 = vunpack.c.l.b16 %v244
  %v893 = vunpack.c.l.b16 %v245
  %v894 = vunpack.c.l.b16 %v246
  %v895 = vunpack.c.l.b16 %v247
  %v896 = vunpack.c.l.b16 %v248
  %v897 = vunpack.c.l.b16 %v249
  %v898 = vunpack.c.l.b16 %v250
  %v899 = vunpack.c.l.b16 %v251
  %v900 = vunpack.c.l.b16 %v252
  %v901 = vunpack.c.l.b16 %v253
  %v902 = vunpack.c.l.b16 %v254
  %v903 = vunpack.c.l.b16 %v255
  %v904 = vunpack.c.l.b16 %v256
  %v905 = vunpack.c.l.b16 %v257
  %v906 = vunpack.c.l.b16 %v258
  %v907 = vunpack.c.l.b16 %v259
  %v908 = vunpack.c.l.b16 %v260
  %v909 = vunpack.c.l.b16 %v261
  %v910 = vunpack.c.l.b16 %v262
  %v911 = vunpack.c.l.b16 %v263
  %v912 = vunpack.c.l.b16 %v264
  %v913 = vunpack.c.l.b16 %v265
  %v914 = vunpack.c.l.b16 %v266
  %v915 = vunpack.c.l.b16 %v267
  %v916 = vunpack.c.l.b16 %v268
  %v917 = vunpack.c.l.b16 %v269
  %v918 = vunpack.c.l.b16 %v270
  %v919 = vunpack.c.l.b16 %v271
  %v920 = vunpack.c.l.b16 %v272
  %v921 = vunpack.c.l.b16 %v273
  %v922 = vunpack.c.l.b16 %v274
  %v923 = vunpack.c.l.b16 %v275
  %v924 = vunpack.c.l.b16 %v276
  %v925 = vunpack.c.l.b16 %v277
  %v926 = vunpack.c.l.b16 %v278
  %v927 = vunpack.c.l.b16 %v279
  %v928 = vunpack.c.l.b16 %v280
  %v929 = vunpack.c.l.b16 %v281
  %v930 = vunpack.c.l.b16 %v282
  %v931 = vunpack.c.l.b16 %v283
  %v932 = vunpack.c.l.b16 %v284
  %v933 = vunpack.c.l.b16 %v285
  %v934 = vunpack.c.l.b16 %v286
  %v935 = vunpack.c.l.b16 %v287
  %v936 = vunpack.c.l.b16 %v288
  %v937 = vunpack.c.l.b16 %v289
  %v938 = vunpack.c.l.b16 %v290
  %v939 = vunpack.c.l.b16 %v291
  %v940 = vunpack.c.l.b16 %v292
  %v941 = vunpack.c.l.b16 %v293
  %v942 = vunpack.c.l.b16 %v294
  %v943 = vunpack.c.l.b16 %v295
  %v944 = vunpack.c.l.b16 %v296
  %v945 = vunpack.c.l.b16 %v297
  %v946 = vunpack.c.l.b16 %v298
  %v947 = vpack.c.b16 %v692, %v691
  %v948 = vpack.c.b16 %v694, %v693
  %v949 = vpack.c.b16 %v696, %v695
  %v950 = vpack.c.b16 %v698, %v697
  %v951 = vpack.c.b16 %v700, %v699
  %v952 = vpack.c.b16 %v702, %v701
  %v953 = vpack.c.b16 %v704, %v703
  %v954 = vpack.c.b16 %v706, %v705
  %v955 = vpack.c.b16 %v708, %v707
  %v956 = vpack.c.b16 %v710, %v709
  %v957 = vpack.c.b16 %v712, %v711
  %v958 = vpack.c.b16 %v714, %v713
  %v959 = vpack.c.b16 %v716, %v715
  %v960 = vpack.c.b16 %v718, %v717
  %v961 = vpack.c.b16 %v720, %v719
  %v962 = vpack.c.b16 %v722, %v721
  %v963 = vpack.c.b16 %v724, %v723
  %v964 = vpack.c.b16 %v726, %v725
  %v965 = vpack.c.b16 %v728, %v727
  %v966 = vpack.c.b16 %v730, %v729
  %v967 = vpack.c.b16 %v732, %v731
  %v968 = vpack.c.b16 %v734, %v733
  %v969 = vpack.c.b16 %v736, %v735
  %v970 = vpack.c.b16 %v738, %v737
  %v971 = vpack.c.b16 %v740, %v739
  %v972 = vpack.c.b16 %v742, %v741
  %v973 = vpack.c.b16 %v744, %v743
  %v974 = vpack.c.b16 %v746, %v745
  %v975 = vpack.c.b16 %v748, %v747
  %v976 = vpack.c.b16 %v750, %v749
  %v977 = vpack.c.b16 %v752, %v751
  %v978 = vpack.c.b16 %v754, %v753
  %v979 = vpack.c.b16 %v756, %v755
  %v980 = vpack.c.b16 %v758, %v757
  %v981 = vpack.c.b16 %v760, %v759
  %v982 = vpack.c.b16 %v762, %v761
  %v983 = vpack.c.b16 %v764, %v763
  %v984 = vpack.c.b16 %v766, %v765
  %v985 = vpack.c.b16 %v768, %v767
  %v986 = vpack.c.b16 %v770, %v769
  %v987 = vpack.c.b16 %v772, %v771
  %v988 = vpack.c.b16 %v774, %v773
  %v989 = vpack.c.b16 %v776, %v775
  %v990 = vpack.c.b16 %v778, %v777
  %v991 = vpack.c.b16 %v780, %v779
  %v992 = vpack.c.b16 %v782, %v781
  %v993 = vpack.c.b16 %v784, %v783
  %v994 = vpack.c.b16 %v786, %v785
  %v995 = vpack.c.b16 %v788, %v787
  %v996 = vpack.c.b16 %v790, %v789
  %v997 = vpack.c.b16 %v792, %v791
  %v998 = vpack.c.b16 %v794, %v793
  %v999 = vpack.c.b16 %v796, %v795
  %v1000 = vpack.c.b16 %v798, %v797
  %v1001 = vpack.c.b16 %v800, %v799
  %v1002 = vpack.c.b16 %v802, %v801
  %v1003 = vpack.c.b16 %v804, %v803
  %v1004 = vpack.c.b16 %v806, %v805
  %v1005 = vpack.c.b16 %v808, %v807
  %v1006 = vpack.c.b16 %v810, %v809
  %v1007 = vpack.c.b16 %v812, %v811
  %v1008 = vpack.c.b16 %v814, %v813
  %v1009 = vpack.c.b16 %v816, %v815
  %v1010 = vpack.c.b16 %v818, %v817
  %v1011 = vpack.c.b16 %v820, %v819
  %v1012 = vpack.c.b16 %v822, %v821
  %v1013 = vpack.c.b16 %v824, %v823
  %v1014 = vpack.c.b16 %v826, %v825
  %v1015 = vpack.c.b16 %v828, %v827
  %v1016 = vpack.c.b16 %v830, %v829
  %v1017 = vpack.c.b16 %v832, %v831
  %v1018 = vpack.c.b16 %v834, %v833
  %v1019 = vpack.c.b16 %v836, %v835
  %v1020 = vpack.c.b16 %v838, %v837
  %v1021 = vpack.c.b16 %v840, %v839
  %v1022 = vpack.c.b16 %v842, %v841
  %v1023 = vpack.c.b16 %v844, %v843
  %v1024 = vpack.c.b16 %v846, %v845
  %v1025 = vpack.c.b16 %v848, %v847
  %v1026 = vpack.c.b16 %v850, %v849
  %v1027 = vpack.c.b16 %v852, %v851
  %v1028 = vpack.c.b16 %v854, %v853
  %v1029 = vpack.c.b16 %v856, %v855
  %v1030 = vpack.c.b16 %v858, %v857
  %v1031 = vpack.c.b16 %v860, %v859
  %v1032 = vpack.c.b16 %v862, %v861
  %v1033 = vpack.c.b16 %v864, %v863
  %v1034 = vpack.c.b16 %v866, %v865
  %v1035 = vpack.c.b16 %v868, %v867
  %v1036 = vpack.c.b16 %v870, %v869
  %v1037 = vpack.c.b16 %v872, %v871
  %v1038 = vpack.c.b16 %v874, %v873
  %v1039 = vpack.c.b16 %v876, %v875
  %v1040 = vpack.c.b16 %v878, %v877
  %v1041 = vpack.c.b16 %v880, %v879
  %v1042 = vpack.c.b16 %v882, %v881
  %v1043 = vpack.c.b16 %v884, %v883
  %v1044 = vpack.c.b16 %v886, %v885
  %v1045 = vpack.c.b16 %v888, %v887
  %v1046 = vpack.c.b16 %v890, %v889
  %v1047 = vpack.c.b16 %v892, %v891
  %v1048 = vpack.c.b16 %v894, %v893
  %v1049 = vpack.c.b16 %v896, %v895
  %v1050 = vpack.c.b16 %v898, %v897
  %v1051 = vpack.c.b16 %v900, %v899
  %v1052 = vpack.c.b16 %v902, %v901
  %v1053 = vpack.c.b16 %v904, %v903
  %v1054 = vpack.c.b16 %v906, %v905
  %v1055 = vpack.c.b16 %v908, %v907
  %v1056 = vpack.c.b16 %v910, %v909
  %v1057 = vpack.c.b16 %v912, %v911
  %v1058 = vpack.c.b16 %v914, %v913
  %v1059 = vpack.c.b16 %v916, %v915
  %v1060 = vpack.c.b16 %v918, %v917
  %v1061 = vpack.c.b16 %v920, %v919
  %v1062 = vpack.c.b16 %v922, %v921
  %v1063 = vpack.c.b16 %v924, %v923
  %v1064 = vpack.c.b16 %v926, %v925
  %v1065 = vpack.c.b16 %v928, %v927
  %v1066 = vpack.c.b16 %v930, %v929
  %v1067 = vpack.c.b16 %v932, %v931
  %v1068 = vpack.c.b16 %v934, %v933
  %v1069 = vpack.c.b16 %v936, %v935
  %v1070 = vpack.c.b16 %v938, %v937
  %v1071 = vpack.c.b16 %v940, %v939
  %v1072 = vpack.c.b16 %v942, %v941
  %v1073 = vpack.c.b16 %v944, %v943
  %v1074 = vpack.c.b16 %v946, %v945
  %1203 = vmatprep.subr.bf16.mxu0 0
  %1204 = vmatpush1.bf16.msra.mxu0 %v947
  %1205 = vmatprep.subr.bf16.mxu0 0
  %1206 = vmatpush1.bf16.msra.mxu0 %v948
  %1207 = vmatprep.subr.bf16.mxu0 0
  %1208 = vmatpush1.bf16.msra.mxu0 %v949
  %1209 = vmatprep.subr.bf16.mxu0 0
  %1210 = vmatpush1.bf16.msra.mxu0 %v950
  %1211 = vmatprep.subr.bf16.mxu0 0
  %1212 = vmatpush1.bf16.msra.mxu0 %v951
  %1213 = vmatprep.subr.bf16.mxu0 0
  %1214 = vmatpush1.bf16.msra.mxu0 %v952
  %1215 = vmatprep.subr.bf16.mxu0 0
  %1216 = vmatpush1.bf16.msra.mxu0 %v953
  %1217 = vmatprep.subr.bf16.mxu0 0
  %1218 = vmatpush1.bf16.msra.mxu0 %v954
  %1219 = vmatprep.subr.bf16.mxu0 0
  %1220 = vmatpush1.bf16.msra.mxu0 %v955
  %1221 = vmatprep.subr.bf16.mxu0 0
  %1222 = vmatpush1.bf16.msra.mxu0 %v956
  %1223 = vmatprep.subr.bf16.mxu0 0
  %1224 = vmatpush1.bf16.msra.mxu0 %v957
  %1225 = vmatprep.subr.bf16.mxu0 0
  %1226 = vmatpush1.bf16.msra.mxu0 %v958
  %1227 = vmatprep.subr.bf16.mxu0 0
  %1228 = vmatpush1.bf16.msra.mxu0 %v959
  %1229 = vmatprep.subr.bf16.mxu0 0
  %1230 = vmatpush1.bf16.msra.mxu0 %v960
  %1231 = vmatprep.subr.bf16.mxu0 0
  %1232 = vmatpush1.bf16.msra.mxu0 %v961
  %1233 = vmatprep.subr.bf16.mxu0 0
  %1234 = vmatpush1.bf16.msra.mxu0 %v962
  %1235 = vmatprep.mubr.bf16.mxu0 %v372
  %1236 = vmatmul.mubr.bf16.gmra.mrb[0].mxu0 %v371
  %v1237 = vpop.f32.mrb[0].mxu0
  %v1238 = vadd.f32 0.0, %v1237
  %v1239 = vpop.f32.mrb[0].mxu0
  %v1240 = vpop.f32.mrb[0].mxu0
  %v1241 = vadd.f32 0.0, %v1240
  %v1242 = vpop.f32.mrb[0].mxu0
  %1243 = vmatprep.mubr.bf16.mxu0 %v388
  %1244 = vmatmul.mubr.bf16.gmra.mrb[0].mxu0 %v387
  %v1245 = vpop.f32.mrb[0].mxu0
  %v1246 = vadd.f32 0.0, %v1245
  %v1247 = vpop.f32.mrb[0].mxu0
  %v1248 = vpop.f32.mrb[0].mxu0
  %v1249 = vpop.f32.mrb[0].mxu0
  %1250 = vdwg.mxu0
  %1251 = vmatprep.subr.bf16.mxu0 0
  %1252 = vmatpush1.bf16.msra.mxu0 %v963
  %1253 = vmatprep.subr.bf16.mxu0 0
  %1254 = vmatpush1.bf16.msra.mxu0 %v964
  %1255 = vmatprep.subr.bf16.mxu0 0
  %1256 = vmatpush1.bf16.msra.mxu0 %v965
  %1257 = vmatprep.subr.bf16.mxu0 0
  %1258 = vmatpush1.bf16.msra.mxu0 %v966
  %1259 = vmatprep.subr.bf16.mxu0 0
  %1260 = vmatpush1.bf16.msra.mxu0 %v967
  %1261 = vmatprep.subr.bf16.mxu0 0
  %1262 = vmatpush1.bf16.msra.mxu0 %v968
  %1263 = vmatprep.subr.bf16.mxu0 0
  %1264 = vmatpush1.bf16.msra.mxu0 %v969
  %1265 = vmatprep.subr.bf16.mxu0 0
  %1266 = vmatpush1.bf16.msra.mxu0 %v970
  %1267 = vmatprep.subr.bf16.mxu0 0
  %1268 = vmatpush1.bf16.msra.mxu0 %v971
  %1269 = vmatprep.subr.bf16.mxu0 0
  %1270 = vmatpush1.bf16.msra.mxu0 %v972
  %1271 = vmatprep.subr.bf16.mxu0 0
  %1272 = vmatpush1.bf16.msra.mxu0 %v973
  %1273 = vmatprep.subr.bf16.mxu0 0
  %1274 = vmatpush1.bf16.msra.mxu0 %v974
  %1275 = vmatprep.subr.bf16.mxu0 0
  %1276 = vmatpush1.bf16.msra.mxu0 %v975
  %1277 = vmatprep.subr.bf16.mxu0 0
  %1278 = vmatpush1.bf16.msra.mxu0 %v976
  %1279 = vmatprep.subr.bf16.mxu0 0
  %1280 = vmatpush1.bf16.msra.mxu0 %v977
  %1281 = vmatprep.subr.bf16.mxu0 0
  %1282 = vmatpush1.bf16.msra.mxu0 %v978
  %1283 = vmatprep.mubr.bf16.mxu0 %v374
  %1284 = vmatmul.mubr.bf16.gmra.mrb[0].mxu0 %v373
  %v1285 = vpop.f32.mrb[0].mxu0
  %v1286 = vadd.f32 %v1238, %v1285
  %v1287 = vpop.f32.mrb[0].mxu0
  %v1288 = vpop.f32.mrb[0].mxu0
  %v1289 = vadd.f32 %v1241, %v1288
  %v1290 = vpop.f32.mrb[0].mxu0
  %1291 = vmatprep.mubr.bf16.mxu0 %v390
  %1292 = vmatmul.mubr.bf16.gmra.mrb[0].mxu0 %v389
  %v1293 = vpop.f32.mrb[0].mxu0
  %v1294 = vadd.f32 %v1246, %v1293
  %v1295 = vpop.f32.mrb[0].mxu0
  %v1296 = vpop.f32.mrb[0].mxu0
  %v1297 = vpop.f32.mrb[0].mxu0
  %1298 = vdwg.mxu0
  %1299 = vmatprep.subr.bf16.mxu0 0
  %1300 = vmatpush1.bf16.msra.mxu0 %v979
  %1301 = vmatprep.subr.bf16.mxu0 0
  %1302 = vmatpush1.bf16.msra.mxu0 %v980
  %1303 = vmatprep.subr.bf16.mxu0 0
  %1304 = vmatpush1.bf16.msra.mxu0 %v981
  %1305 = vmatprep.subr.bf16.mxu0 0
  %1306 = vmatpush1.bf16.msra.mxu0 %v982
  %1307 = vmatprep.subr.bf16.mxu0 0
  %1308 = vmatpush1.bf16.msra.mxu0 %v983
  %1309 = vmatprep.subr.bf16.mxu0 0
  %1310 = vmatpush1.bf16.msra.mxu0 %v984
  %1311 = vmatprep.subr.bf16.mxu0 0
  %1312 = vmatpush1.bf16.msra.mxu0 %v985
  %1313 = vmatprep.subr.bf16.mxu0 0
  %1314 = vmatpush1.bf16.msra.mxu0 %v986
  %1315 = vmatprep.subr.bf16.mxu0 0
  %1316 = vmatpush1.bf16.msra.mxu0 %v987
  %1317 = vmatprep.subr.bf16.mxu0 0
  %1318 = vmatpush1.bf16.msra.mxu0 %v988
  %1319 = vmatprep.subr.bf16.mxu0 0
  %1320 = vmatpush1.bf16.msra.mxu0 %v989
  %1321 = vmatprep.subr.bf16.mxu0 0
  %1322 = vmatpush1.bf16.msra.mxu0 %v990
  %1323 = vmatprep.subr.bf16.mxu0 0
  %1324 = vmatpush1.bf16.msra.mxu0 %v991
  %1325 = vmatprep.subr.bf16.mxu0 0
  %1326 = vmatpush1.bf16.msra.mxu0 %v992
  %1327 = vmatprep.subr.bf16.mxu0 0
  %1328 = vmatpush1.bf16.msra.mxu0 %v993
  %1329 = vmatprep.subr.bf16.mxu0 0
  %1330 = vmatpush1.bf16.msra.mxu0 %v994
  %1331 = vmatprep.mubr.bf16.mxu0 %v376
  %1332 = vmatmul.mubr.bf16.gmra.mrb[0].mxu0 %v375
  %v1333 = vpop.f32.mrb[0].mxu0
  %v1334 = vadd.f32 %v1286, %v1333
  %v1335 = vpop.f32.mrb[0].mxu0
  %v1336 = vpop.f32.mrb[0].mxu0
  %v1337 = vadd.f32 %v1289, %v1336
  %v1338 = vpop.f32.mrb[0].mxu0
  %1339 = vmatprep.mubr.bf16.mxu0 %v392
  %1340 = vmatmul.mubr.bf16.gmra.mrb[0].mxu0 %v391
  %v1341 = vpop.f32.mrb[0].mxu0
  %v1342 = vadd.f32 %v1294, %v1341
  %v1343 = vpop.f32.mrb[0].mxu0
  %v1344 = vpop.f32.mrb[0].mxu0
  %v1345 = vpop.f32.mrb[0].mxu0
  %1346 = vdwg.mxu0
  %1347 = vmatprep.subr.bf16.mxu0 0
  %1348 = vmatpush1.bf16.msra.mxu0 %v995
  %1349 = vmatprep.subr.bf16.mxu0 0
  %1350 = vmatpush1.bf16.msra.mxu0 %v996
  %1351 = vmatprep.subr.bf16.mxu0 0
  %1352 = vmatpush1.bf16.msra.mxu0 %v997
  %1353 = vmatprep.subr.bf16.mxu0 0
  %1354 = vmatpush1.bf16.msra.mxu0 %v998
  %1355 = vmatprep.subr.bf16.mxu0 0
  %1356 = vmatpush1.bf16.msra.mxu0 %v999
  %1357 = vmatprep.subr.bf16.mxu0 0
  %1358 = vmatpush1.bf16.msra.mxu0 %v1000
  %1359 = vmatprep.subr.bf16.mxu0 0
  %1360 = vmatpush1.bf16.msra.mxu0 %v1001
  %1361 = vmatprep.subr.bf16.mxu0 0
  %1362 = vmatpush1.bf16.msra.mxu0 %v1002
  %1363 = vmatprep.subr.bf16.mxu0 0
  %1364 = vmatpush1.bf16.msra.mxu0 %v1003
  %1365 = vmatprep.subr.bf16.mxu0 0
  %1366 = vmatpush1.bf16.msra.mxu0 %v1004
  %1367 = vmatprep.subr.bf16.mxu0 0
  %1368 = vmatpush1.bf16.msra.mxu0 %v1005
  %1369 = vmatprep.subr.bf16.mxu0 0
  %1370 = vmatpush1.bf16.msra.mxu0 %v1006
  %1371 = vmatprep.subr.bf16.mxu0 0
  %1372 = vmatpush1.bf16.msra.mxu0 %v1007
  %1373 = vmatprep.subr.bf16.mxu0 0
  %1374 = vmatpush1.bf16.msra.mxu0 %v1008
  %1375 = vmatprep.subr.bf16.mxu0 0
  %1376 = vmatpush1.bf16.msra.mxu0 %v1009
  %1377 = vmatprep.subr.bf16.mxu0 0
  %1378 = vmatpush1.bf16.msra.mxu0 %v1010
  %1379 = vmatprep.mubr.bf16.mxu0 %v378
  %1380 = vmatmul.mubr.bf16.gmra.mrb[0].mxu0 %v377
  %v1381 = vpop.f32.mrb[0].mxu0
  %v1382 = vadd.f32 %v1334, %v1381
  %v1383 = vpop.f32.mrb[0].mxu0
  %v1384 = vpop.f32.mrb[0].mxu0
  %v1385 = vadd.f32 %v1337, %v1384
  %v1386 = vpop.f32.mrb[0].mxu0
  %1387 = vmatprep.mubr.bf16.mxu0 %v394
  %1388 = vmatmul.mubr.bf16.gmra.mrb[0].mxu0 %v393
  %v1389 = vpop.f32.mrb[0].mxu0
  %v1390 = vadd.f32 %v1342, %v1389
  %v1391 = vpop.f32.mrb[0].mxu0
  %v1392 = vpop.f32.mrb[0].mxu0
  %v1393 = vpop.f32.mrb[0].mxu0
  %1394 = vdwg.mxu0
  %1395 = vmatprep.subr.bf16.mxu0 0
  %1396 = vmatpush1.bf16.msra.mxu0 %v1011
  %1397 = vmatprep.subr.bf16.mxu0 0
  %1398 = vmatpush1.bf16.msra.mxu0 %v1012
  %1399 = vmatprep.subr.bf16.mxu0 0
  %1400 = vmatpush1.bf16.msra.mxu0 %v1013
  %1401 = vmatprep.subr.bf16.mxu0 0
  %1402 = vmatpush1.bf16.msra.mxu0 %v1014
  %1403 = vmatprep.subr.bf16.mxu0 0
  %1404 = vmatpush1.bf16.msra.mxu0 %v1015
  %1405 = vmatprep.subr.bf16.mxu0 0
  %1406 = vmatpush1.bf16.msra.mxu0 %v1016
  %1407 = vmatprep.subr.bf16.mxu0 0
  %1408 = vmatpush1.bf16.msra.mxu0 %v1017
  %1409 = vmatprep.subr.bf16.mxu0 0
  %1410 = vmatpush1.bf16.msra.mxu0 %v1018
  %1411 = vmatprep.subr.bf16.mxu0 0
  %1412 = vmatpush1.bf16.msra.mxu0 %v1019
  %1413 = vmatprep.subr.bf16.mxu0 0
  %1414 = vmatpush1.bf16.msra.mxu0 %v1020
  %1415 = vmatprep.subr.bf16.mxu0 0
  %1416 = vmatpush1.bf16.msra.mxu0 %v1021
  %1417 = vmatprep.subr.bf16.mxu0 0
  %1418 = vmatpush1.bf16.msra.mxu0 %v1022
  %1419 = vmatprep.subr.bf16.mxu0 0
  %1420 = vmatpush1.bf16.msra.mxu0 %v1023
  %1421 = vmatprep.subr.bf16.mxu0 0
  %1422 = vmatpush1.bf16.msra.mxu0 %v1024
  %1423 = vmatprep.subr.bf16.mxu0 0
  %1424 = vmatpush1.bf16.msra.mxu0 %v1025
  %1425 = vmatprep.subr.bf16.mxu0 0
  %1426 = vmatpush1.bf16.msra.mxu0 %v1026
  %1427 = vmatprep.mubr.bf16.mxu0 %v380
  %1428 = vmatmul.mubr.bf16.gmra.mrb[0].mxu0 %v379
  %v1429 = vpop.f32.mrb[0].mxu0
  %v1430 = vadd.f32 %v1382, %v1429
  %v1431 = vpop.f32.mrb[0].mxu0
  %v1432 = vpop.f32.mrb[0].mxu0
  %v1433 = vadd.f32 %v1385, %v1432
  %v1434 = vpop.f32.mrb[0].mxu0
  %1435 = vmatprep.mubr.bf16.mxu0 %v396
  %1436 = vmatmul.mubr.bf16.gmra.mrb[0].mxu0 %v395
  %v1437 = vpop.f32.mrb[0].mxu0
  %v1438 = vadd.f32 %v1390, %v1437
  %v1439 = vpop.f32.mrb[0].mxu0
  %v1440 = vpop.f32.mrb[0].mxu0
  %v1441 = vpop.f32.mrb[0].mxu0
  %1442 = vdwg.mxu0
  %1443 = vmatprep.subr.bf16.mxu0 0
  %1444 = vmatpush1.bf16.msra.mxu0 %v1027
  %1445 = vmatprep.subr.bf16.mxu0 0
  %1446 = vmatpush1.bf16.msra.mxu0 %v1028
  %1447 = vmatprep.subr.bf16.mxu0 0
  %1448 = vmatpush1.bf16.msra.mxu0 %v1029
  %1449 = vmatprep.subr.bf16.mxu0 0
  %1450 = vmatpush1.bf16.msra.mxu0 %v1030
  %1451 = vmatprep.subr.bf16.mxu0 0
  %1452 = vmatpush1.bf16.msra.mxu0 %v1031
  %1453 = vmatprep.subr.bf16.mxu0 0
  %1454 = vmatpush1.bf16.msra.mxu0 %v1032
  %1455 = vmatprep.subr.bf16.mxu0 0
  %1456 = vmatpush1.bf16.msra.mxu0 %v1033
  %1457 = vmatprep.subr.bf16.mxu0 0
  %1458 = vmatpush1.bf16.msra.mxu0 %v1034
  %1459 = vmatprep.subr.bf16.mxu0 0
  %1460 = vmatpush1.bf16.msra.mxu0 %v1035
  %1461 = vmatprep.subr.bf16.mxu0 0
  %1462 = vmatpush1.bf16.msra.mxu0 %v1036
  %1463 = vmatprep.subr.bf16.mxu0 0
  %1464 = vmatpush1.bf16.msra.mxu0 %v1037
  %1465 = vmatprep.subr.bf16.mxu0 0
  %1466 = vmatpush1.bf16.msra.mxu0 %v1038
  %1467 = vmatprep.subr.bf16.mxu0 0
  %1468 = vmatpush1.bf16.msra.mxu0 %v1039
  %1469 = vmatprep.subr.bf16.mxu0 0
  %1470 = vmatpush1.bf16.msra.mxu0 %v1040
  %1471 = vmatprep.subr.bf16.mxu0 0
  %1472 = vmatpush1.bf16.msra.mxu0 %v1041
  %1473 = vmatprep.subr.bf16.mxu0 0
  %1474 = vmatpush1.bf16.msra.mxu0 %v1042
  %1475 = vmatprep.mubr.bf16.mxu0 %v382
  %1476 = vmatmul.mubr.bf16.gmra.mrb[0].mxu0 %v381
  %v1477 = vpop.f32.mrb[0].mxu0
  %v1478 = vadd.f32 %v1430, %v1477
  %v1479 = vpop.f32.mrb[0].mxu0
  %v1480 = vpop.f32.mrb[0].mxu0
  %v1481 = vadd.f32 %v1433, %v1480
  %v1482 = vpop.f32.mrb[0].mxu0
  %1483 = vmatprep.mubr.bf16.mxu0 %v398
  %1484 = vmatmul.mubr.bf16.gmra.mrb[0].mxu0 %v397
  %v1485 = vpop.f32.mrb[0].mxu0
  %v1486 = vadd.f32 %v1438, %v1485
  %v1487 = vpop.f32.mrb[0].mxu0
  %v1488 = vpop.f32.mrb[0].mxu0
  %v1489 = vpop.f32.mrb[0].mxu0
  %1490 = vdwg.mxu0
  %1491 = vmatprep.subr.bf16.mxu0 0
  %1492 = vmatpush1.bf16.msra.mxu0 %v1043
  %1493 = vmatprep.subr.bf16.mxu0 0
  %1494 = vmatpush1.bf16.msra.mxu0 %v1044
  %1495 = vmatprep.subr.bf16.mxu0 0
  %1496 = vmatpush1.bf16.msra.mxu0 %v1045
  %1497 = vmatprep.subr.bf16.mxu0 0
  %1498 = vmatpush1.bf16.msra.mxu0 %v1046
  %1499 = vmatprep.subr.bf16.mxu0 0
  %1500 = vmatpush1.bf16.msra.mxu0 %v1047
  %1501 = vmatprep.subr.bf16.mxu0 0
  %1502 = vmatpush1.bf16.msra.mxu0 %v1048
  %1503 = vmatprep.subr.bf16.mxu0 0
  %1504 = vmatpush1.bf16.msra.mxu0 %v1049
  %1505 = vmatprep.subr.bf16.mxu0 0
  %1506 = vmatpush1.bf16.msra.mxu0 %v1050
  %1507 = vmatprep.subr.bf16.mxu0 0
  %1508 = vmatpush1.bf16.msra.mxu0 %v1051
  %1509 = vmatprep.subr.bf16.mxu0 0
  %1510 = vmatpush1.bf16.msra.mxu0 %v1052
  %1511 = vmatprep.subr.bf16.mxu0 0
  %1512 = vmatpush1.bf16.msra.mxu0 %v1053
  %1513 = vmatprep.subr.bf16.mxu0 0
  %1514 = vmatpush1.bf16.msra.mxu0 %v1054
  %1515 = vmatprep.subr.bf16.mxu0 0
  %1516 = vmatpush1.bf16.msra.mxu0 %v1055
  %1517 = vmatprep.subr.bf16.mxu0 0
  %1518 = vmatpush1.bf16.msra.mxu0 %v1056
  %1519 = vmatprep.subr.bf16.mxu0 0
  %1520 = vmatpush1.bf16.msra.mxu0 %v1057
  %1521 = vmatprep.subr.bf16.mxu0 0
  %1522 = vmatpush1.bf16.msra.mxu0 %v1058
  %1523 = vmatprep.mubr.bf16.mxu0 %v384
  %1524 = vmatmul.mubr.bf16.gmra.mrb[0].mxu0 %v383
  %v1525 = vpop.f32.mrb[0].mxu0
  %v1526 = vadd.f32 %v1478, %v1525
  %v1527 = vpop.f32.mrb[0].mxu0
  %v1528 = vpop.f32.mrb[0].mxu0
  %v1529 = vadd.f32 %v1481, %v1528
  %v1530 = vpop.f32.mrb[0].mxu0
  %1531 = vmatprep.mubr.bf16.mxu0 %v400
  %1532 = vmatmul.mubr.bf16.gmra.mrb[0].mxu0 %v399
  %v1533 = vpop.f32.mrb[0].mxu0
  %v1534 = vadd.f32 %v1486, %v1533
  %v1535 = vpop.f32.mrb[0].mxu0
  %v1536 = vpop.f32.mrb[0].mxu0
  %v1537 = vpop.f32.mrb[0].mxu0
  %1538 = vdwg.mxu0
  %1539 = vmatprep.subr.bf16.mxu0 0
  %1540 = vmatpush1.bf16.msra.mxu0 %v1059
  %1541 = vmatprep.subr.bf16.mxu0 0
  %1542 = vmatpush1.bf16.msra.mxu0 %v1060
  %1543 = vmatprep.subr.bf16.mxu0 0
  %1544 = vmatpush1.bf16.msra.mxu0 %v1061
  %1545 = vmatprep.subr.bf16.mxu0 0
  %1546 = vmatpush1.bf16.msra.mxu0 %v1062
  %1547 = vmatprep.subr.bf16.mxu0 0
  %1548 = vmatpush1.bf16.msra.mxu0 %v1063
  %1549 = vmatprep.subr.bf16.mxu0 0
  %1550 = vmatpush1.bf16.msra.mxu0 %v1064
  %1551 = vmatprep.subr.bf16.mxu0 0
  %1552 = vmatpush1.bf16.msra.mxu0 %v1065
  %1553 = vmatprep.subr.bf16.mxu0 0
  %1554 = vmatpush1.bf16.msra.mxu0 %v1066
  %1555 = vmatprep.subr.bf16.mxu0 0
  %1556 = vmatpush1.bf16.msra.mxu0 %v1067
  %1557 = vmatprep.subr.bf16.mxu0 0
  %1558 = vmatpush1.bf16.msra.mxu0 %v1068
  %1559 = vmatprep.subr.bf16.mxu0 0
  %1560 = vmatpush1.bf16.msra.mxu0 %v1069
  %1561 = vmatprep.subr.bf16.mxu0 0
  %1562 = vmatpush1.bf16.msra.mxu0 %v1070
  %1563 = vmatprep.subr.bf16.mxu0 0
  %1564 = vmatpush1.bf16.msra.mxu0 %v1071
  %1565 = vmatprep.subr.bf16.mxu0 0
  %1566 = vmatpush1.bf16.msra.mxu0 %v1072
  %1567 = vmatprep.subr.bf16.mxu0 0
  %1568 = vmatpush1.bf16.msra.mxu0 %v1073
  %1569 = vmatprep.subr.bf16.mxu0 0
  %1570 = vmatpush1.bf16.msra.mxu0 %v1074
  %1571 = vmatprep.mubr.bf16.mxu0 %v386
  %1572 = vmatmul.mubr.bf16.gmra.mrb[0].mxu0 %v385
  %v1573 = vpop.f32.mrb[0].mxu0
  %v1574 = vadd.f32 %v1526, %v1573
  %v1575 = vpop.f32.mrb[0].mxu0
  %v1576 = vpop.f32.mrb[0].mxu0
  %v1577 = vadd.f32 %v1529, %v1576
  %v1578 = vpop.f32.mrb[0].mxu0
  %1579 = vmatprep.mubr.bf16.mxu0 %v402
  %1580 = vmatmul.mubr.bf16.gmra.mrb[0].mxu0 %v401
  %v1581 = vpop.f32.mrb[0].mxu0
  %v1582 = vadd.f32 %v1534, %v1581
  %v1583 = vpop.f32.mrb[0].mxu0
  %v1584 = vpop.f32.mrb[0].mxu0
  %v1585 = vpop.f32.mrb[0].mxu0
  %1586 = vdwg.mxu0
  %s1587 = sld [smem:[#allocation2]]
  %v1588 = vstv %s1587
  %v1589 = vmul.f32 %v1574, %v1588
  %v1590 = vmul.f32 %v1577, %v1588
  %v1591 = vmul.f32 %v1582, %v1588
  %v1592 = vld [vmem:[%s2] sm:$0x1]
  %v1594 = vlaneseq
  %v1595 = vshrl.u32 %v1594, 7
  %v1596 = vsub.s32 0, %v1595
  %v1597 = vrot.slane %v1592, %v1596
  %v1599 = vadd.f32 %v1589, %v1597
  %v1600 = vadd.f32 %v1590, %v1597
  %v1601 = vadd.f32 %v1591, %v1597
  %v1602 = vmax.f32 %v1599, 0.0
  %v1603 = vmax.f32 %v1600, 0.0
  %v1604 = vmax.f32 %v1601, 0.0
  %v1605 = vpack.c.bf16 %v1603, %v1602
  %v1606 = vpack.c.bf16 %v1604, %v1604
  %v1609 = vunpack.c.l.b16 %v1605
  %v1610 = vunpack.c.h.b16 %v1605
  %v1611 = vunpack.c.l.b16 %v1606
  %v1612 = vpack.c.b16 %v1609, %v1609
  %v1613 = vpack.c.b16 %v1610, %v1610
  %v1614 = vpack.c.b16 %v1611, %v1611
  %1618 = vst [vmem:[%s4] sm:$0xf] %v1612
  %1619 = vst [vmem:[%s4 + $0x4] sm:$0xf] %v1613
  %1620 = vst [vmem:[%s4 + $0x8] sm:$0xf] %v1614
  // Predicated region
  $region18: #{nature_cnn_forward.5} parent=0 // pred_check
    _
  $region19: #{nature_cnn_forward.5} parent=0 // pred_check_branch
    %1622 = sbr.rel (0) target = $region21
  $region20: #{nature_cnn_forward.5} parent=0 // pred_region
    _
  $region21: #{nature_cnn_forward.5} parent=0 // pred_fallthru
    _
  // Predicated region
  $region22: #{nature_cnn_forward.5} parent=0 // pred_check
    _
  $region23: #{nature_cnn_forward.5} parent=0 // pred_check_branch
    %1624 = sbr.rel (0) target = $region25
  $region24: #{nature_cnn_forward.5} parent=0 // pred_region
    _
  $region25: #{nature_cnn_forward.5} parent=0 // pred_fallthru
    _

</llo_original>
